<compile_context>
chip_gen: v5e
topology: v5e:2x2
jax: 0.10.0
libtpu: 0.0.40
codegen_flags: <defaults>
</compile_context>

<pallas_src>
import math

import numpy as np
import jax
import jax.numpy as jnp
from jax.experimental import pallas as pl
from jax.experimental.pallas import tpu as pltpu


# --------------------------------------------------------------------------- #
# In-kernel helpers
# --------------------------------------------------------------------------- #
def _sigmoid(v):
    # sigmoid(v) == 0.5*tanh(0.5*v) + 0.5 : single EUP op, no inf intermediates.
    return 0.5 * jnp.tanh(0.5 * v) + 0.5


def _softmax_sublane(z):
    # Softmax over axis 0 (sublane axis) of a 2-D array.
    m = jnp.max(z, axis=0, keepdims=True)
    e = jnp.exp(z - m)
    return e / jnp.sum(e, axis=0, keepdims=True)


def _row_to_col(row):
    """(1, n) -> (n, 1) via iota mask + lane reduction (robust Mosaic lowering)."""
    n = row.shape[-1]
    ii = jax.lax.broadcasted_iota(jnp.int32, (n, n), 0)
    jj = jax.lax.broadcasted_iota(jnp.int32, (n, n), 1)
    diag = jnp.where(ii == jj, jnp.broadcast_to(row, (n, n)), 0.0)
    return jnp.sum(diag, axis=1, keepdims=True)


def _shift_rows_zero(a, s):
    """shifted[p] = a[p + s] if 0 <= p + s < rows else 0 (static s, axis 0)."""
    rows = a.shape[0]
    if s == 0:
        return a
    pad = jnp.zeros((abs(s),) + a.shape[1:], a.dtype)
    if s > 0:
        return jnp.concatenate([a[s:], pad], axis=0)
    return jnp.concatenate([pad, a[:rows + s]], axis=0)


def _colmasks(rows, C, W):
    """Column-wrap masks (x > 0, x < W-1) for a row-major flattened image."""
    idx = jax.lax.broadcasted_iota(jnp.int32, (rows, C), 0)
    if W & (W - 1) == 0:        # power of two: pure bitwise ops, no vector rem
        xi = idx & (W - 1)
    else:
        xi = idx % W
    return xi >= 1, xi <= W - 2


def _dwconv3x3_flat(a, w3, not_left, not_right, W):
    """Depthwise 3x3 conv (padding=1, groups=C) on a flat (H*W [+pad], C) image.

    Only four zero-padded sublane shifts per conv: two column bases (dx = +/-1,
    shared by all three row taps) and the +/-W shifts of the per-dy partial
    sums.  w3: (3, 3, C) with [dy+1, dx+1] tap indexing.  Zero pad rows (if the
    coarsest level was padded to a sublane multiple of 8) stay out of the real
    output rows by construction.
    """
    left = jnp.where(not_left, _shift_rows_zero(a, -1), 0.0)    # in[y, x-1]
    right = jnp.where(not_right, _shift_rows_zero(a, 1), 0.0)   # in[y, x+1]
    row = [left * w3[ky, 0] + a * w3[ky, 1] + right * w3[ky, 2] for ky in range(3)]
    return _shift_rows_zero(row[0], -W) + row[1] + _shift_rows_zero(row[2], W)


def _dmff_fuse(x1, x2, wk, wv1, wv2):
    """DMFF(x1, x2) on flat (HW, C) values -> fused (HW, C) output."""
    C = x1.shape[-1]
    scale = float(C) ** -0.5
    x12 = x1 + x2
    q1 = jnp.mean(x1, axis=0, keepdims=True)                      # (1, C)
    q2 = jnp.mean(x2, axis=0, keepdims=True)
    k = jnp.dot(q1 + q2, wk, preferred_element_type=jnp.float32)  # (1, Ck)
    v1 = jnp.dot(q1, wv1, preferred_element_type=jnp.float32)
    v2 = jnp.dot(q2, wv2, preferred_element_type=jnp.float32)
    kcol = _row_to_col(k)                                         # (Ck, 1)
    a1 = _softmax_sublane(kcol * q1 * scale)                      # (Ck, C)
    a2 = _softmax_sublane(kcol * q2 * scale)
    g1 = _sigmoid(jnp.sum(a1 * _row_to_col(v1), axis=0, keepdims=True))   # (1, C)
    g2 = _sigmoid(jnp.sum(a2 * _row_to_col(v2), axis=0, keepdims=True))
    return x12 + x1 * g1 + x2 * g2


# --------------------------------------------------------------------------- #
# Fused whole-module kernel (one grid step per image)
# --------------------------------------------------------------------------- #
def _make_lpam_kernel(H, W):
    W1, W2, W3 = W // 2, W // 4, W // 8

    def kernel(x_ref, wd_ref, wk_ref, bk_ref, wv_ref, bv_ref, wu_ref,
               wdw_ref, dmk_ref, dmv1_ref, dmv2_ref,
               p2_ref, p4_ref, p8_ref, u32_ref, u21_ref, u10_ref,
               fuse_ref, out_ref):
        f32 = jnp.float32
        x = x_ref[0]                                              # (HW, C)
        C = x.shape[-1]
        Cr = wd_ref.shape[1]

        # ---- lcfe: 1x1 conv -> ReLU -> pooled channel-attention gate -> 1x1 conv
        y = jnp.maximum(jnp.dot(x, wd_ref[...], preferred_element_type=f32), 0.0)
        q = jnp.mean(y, axis=0, keepdims=True)                    # (1, Cr)
        k = jnp.dot(q, wk_ref[...], preferred_element_type=f32) + bk_ref[...]
        v = jnp.dot(q, wv_ref[...], preferred_element_type=f32) + bv_ref[...]
        attn = _softmax_sublane(_row_to_col(k) * q * (float(Cr) ** -0.5))
        gate = _sigmoid(jnp.sum(attn * _row_to_col(v), axis=0, keepdims=True))
        x1 = jnp.dot(y * (1.0 + gate), wu_ref[...],
                     preferred_element_type=f32)                  # (HW, C)

        # ---- multi-scale area pyramid (pool matmuls; level 3 zero-padded rows)
        x1_1 = jnp.dot(p2_ref[...], x1, preferred_element_type=f32)   # (HW/4,  C)
        x1_2 = jnp.dot(p4_ref[...], x1, preferred_element_type=f32)   # (HW/16, C)
        x1_3 = jnp.dot(p8_ref[...], x1, preferred_element_type=f32)   # (pad8,  C)

        # per-level column-wrap masks (shared by both convs at a level)
        m0 = _colmasks(x1.shape[0], C, W)
        m1 = _colmasks(x1_1.shape[0], C, W1)
        m2 = _colmasks(x1_2.shape[0], C, W2)
        m3 = _colmasks(x1_3.shape[0], C, W3)

        # ---- level 3 -> 2
        x1_3_depth = _dwconv3x3_flat(x1_3, wdw_ref[1], m3[0], m3[1], W3)
        x1_3_up = jnp.dot(u32_ref[...], x1_3_depth, preferred_element_type=f32)
        x1_2_depth = _dwconv3x3_flat(x1_2, wdw_ref[0], m2[0], m2[1], W2)
        x1_2_fuse = _dmff_fuse(x1_2_depth, x1_3_up,
                               dmk_ref[0], dmv1_ref[0], dmv2_ref[0])

        # ---- level 2 -> 1
        x1_1_depth = _dwconv3x3_flat(x1_1, wdw_ref[2], m1[0], m1[1], W1)
        x1_2_fuse_depth = _dwconv3x3_flat(x1_2_fuse, wdw_ref[3], m2[0], m2[1], W2)
        x1_2_fuse_up = jnp.dot(u21_ref[...], x1_2_fuse_depth,
                               preferred_element_type=f32)
        x1_1_fuse = _dmff_fuse(x1_1_depth, x1_2_fuse_up,
                               dmk_ref[1], dmv1_ref[1], dmv2_ref[1])

        # ---- level 1 -> 0, plus the module's final sigmoid gating of x
        x1_depth = _dwconv3x3_flat(x1, wdw_ref[4], m0[0], m0[1], W)
        x1_1_fuse_depth = _dwconv3x3_flat(x1_1_fuse, wdw_ref[5], m1[0], m1[1], W1)
        x1_1_fuse_up = jnp.dot(u10_ref[...], x1_1_fuse_depth,
                               preferred_element_type=f32)
        x1_fuse = _dmff_fuse(x1_depth, x1_1_fuse_up,
                             dmk_ref[2], dmv1_ref[2], dmv2_ref[2])

        fuse_ref[0] = x1_fuse
        out_ref[0] = x * _sigmoid(x1_fuse)

    return kernel


# --------------------------------------------------------------------------- #
# Constant pool / upsample matrices (built at trace time)
# --------------------------------------------------------------------------- #
def _area_pool_matrix(H, W, f, out_rows=None):
    """(H*W/f^2 [, padded], H*W) area-pool matrix; pad rows are all zero."""
    Ho, Wo = H // f, W // f
    n_out = Ho * Wo
    rows = out_rows if out_rows is not None else n_out
    m = np.zeros((rows, H * W), np.float32)
    for i in range(n_out):
        oy, ox = divmod(i, Wo)
        for dy in range(f):
            for dx in range(f):
                m[i, (oy * f + dy) * W + (ox * f + dx)] = 1.0 / (f * f)
    return m


def _nearest_up2_matrix(h, w, in_cols=None):
    """(4*h*w, h*w [, padded]) nearest 2x upsample matrix; pad cols are zero."""
    Ho, Wo = 2 * h, 2 * w
    cols = in_cols if in_cols is not None else h * w
    m = np.zeros((Ho * Wo, cols), np.float32)
    for p in range(Ho * Wo):
        oy, ox = divmod(p, Wo)
        m[p, (oy // 2) * w + (ox // 2)] = 1.0
    return m


def _padded_bytes(shape, itemsize=4):
    """f32 bytes of a block after (8, 128) sublane/lane padding."""
    s = list(shape)
    s[-1] = -(-s[-1] // 128) * 128
    if len(s) >= 2:
        s[-2] = -(-s[-2] // 8) * 8
    return itemsize * math.prod(s)


# --------------------------------------------------------------------------- #
# Forward wrapper
# --------------------------------------------------------------------------- #
def lpam_head_forward(x_nchw, p):
    """LPAM_head.forward.  x_nchw: (N, C, H, W) -> (out, x1_fuse), both NCHW."""
    N, C, H, W = x_nchw.shape
    assert H % 8 == 0 and W % 8 == 0, "area pyramid needs H, W divisible by 8"
    assert ((H // 2) * (W // 2)) % 8 == 0 and ((H // 4) * (W // 4)) % 8 == 0
    HW = H * W
    hw3 = (H // 8) * (W // 8)
    hw3_pad = max(8, -(-hw3 // 8) * 8)     # coarsest level padded to sublane x8

    x = jnp.transpose(x_nchw, (0, 2, 3, 1)).astype(jnp.float32).reshape(N, HW, C)

    # Stacked weights so the kernel signature stays small.
    wdw = jnp.stack(p['wdw'], axis=0)                        # (6, 3, 3, C)
    dmk = jnp.stack([d[0] for d in p['dmff']], axis=0)       # (3, C, Ck)
    dmv1 = jnp.stack([d[1] for d in p['dmff']], axis=0)
    dmv2 = jnp.stack([d[2] for d in p['dmff']], axis=0)

    # Constant pool / upsample matrices (trace-time constants under jit).
    p2 = jnp.asarray(_area_pool_matrix(H, W, 2))
    p4 = jnp.asarray(_area_pool_matrix(H, W, 4))
    p8 = jnp.asarray(_area_pool_matrix(H, W, 8, out_rows=hw3_pad))
    u32 = jnp.asarray(_nearest_up2_matrix(H // 8, W // 8, in_cols=hw3_pad))
    u21 = jnp.asarray(_nearest_up2_matrix(H // 4, W // 4))
    u10 = jnp.asarray(_nearest_up2_matrix(H // 2, W // 2))

    weights = (p['wd'], p['wk_att'], p['bk_att'], p['wv_att'], p['bv_att'],
               p['wu'], wdw, dmk, dmv1, dmv2, p2, p4, p8, u32, u21, u10)

    img = pl.BlockSpec((1, HW, C), lambda n: (n, 0, 0))

    def full(a):
        z = (0,) * a.ndim
        return pl.BlockSpec(tuple(a.shape), lambda n, _z=z: _z)

    # VMEM budget from lane-padded block sizes (double-buffered IO) plus a
    # generous allowance for the in-kernel pyramid intermediates; <= 48 MiB so
    # v7x (64 MiB physical) keeps compiler-scratch headroom.
    io = sum(_padded_bytes(s) for s in ([(1, HW, C)] * 3
                                        + [tuple(w.shape) for w in weights]))
    limit = int(min(max(2 * io + 24 * _padded_bytes((1, HW, C)), 16 << 20),
                    48 << 20))

    fuse, out = pl.pallas_call(
        _make_lpam_kernel(H, W),
        out_shape=(jax.ShapeDtypeStruct((N, HW, C), jnp.float32),
                   jax.ShapeDtypeStruct((N, HW, C), jnp.float32)),
        grid=(N,),
        in_specs=[img] + [full(w) for w in weights],
        out_specs=(img, img),
        compiler_params=pltpu.CompilerParams(
            dimension_semantics=("parallel",), vmem_limit_bytes=limit),
    )(x, *weights)

    out = jnp.transpose(out.reshape(N, H, W, C), (0, 3, 1, 2))
    fuse = jnp.transpose(fuse.reshape(N, H, W, C), (0, 3, 1, 2))
    return out, fuse


# --------------------------------------------------------------------------- #
# Pure-JAX reference (for validation)
# --------------------------------------------------------------------------- #
def _area_downsample(x, f):
    N, H, W, C = x.shape
    return x.reshape(N, H // f, f, W // f, f, C).mean(axis=(2, 4))


def _nearest_upsample2(x):
    return jnp.repeat(jnp.repeat(x, 2, axis=1), 2, axis=2)


def lpam_head_reference(x_nchw, p):
    hi = jax.lax.Precision.HIGHEST
    x = jnp.transpose(x_nchw, (0, 2, 3, 1)).astype(jnp.float32)
    Cr = p['wd'].shape[1]

    y = jnp.maximum(jnp.einsum('nhwc,cr->nhwr', x, p['wd'], precision=hi), 0.0)
    q = y.mean(axis=(1, 2))
    k = q @ p['wk_att'] + p['bk_att']
    v = q @ p['wv_att'] + p['bv_att']
    logits = q[:, :, None] * k[:, None, :] * (float(Cr) ** -0.5)
    attn = jax.nn.softmax(logits, axis=-1)
    gate = jax.nn.sigmoid(jnp.sum(attn * v[:, None, :], axis=-1))
    y = y * (1.0 + gate[:, None, None, :])
    x1 = jnp.einsum('nhwr,rc->nhwc', y, p['wu'], precision=hi)

    def dw(h, w):
        hh, ww = h.shape[1], h.shape[2]
        hpad = jnp.pad(h, ((0, 0), (1, 1), (1, 1), (0, 0)))
        acc = jnp.zeros_like(h)
        for ky in range(3):
            for kx in range(3):
                acc = acc + hpad[:, ky:ky + hh, kx:kx + ww, :] * w[ky, kx]
        return acc

    def dmff(a, b, wk, wv1, wv2):
        c = a.shape[-1]
        x12 = a + b
        q1 = a.mean(axis=(1, 2)); q2 = b.mean(axis=(1, 2)); p12 = x12.mean(axis=(1, 2))
        kk = p12 @ wk
        v1 = q1 @ wv1
        v2 = q2 @ wv2
        s = float(c) ** -0.5
        a1 = jax.nn.softmax(q1[:, :, None] * kk[:, None, :] * s, axis=-1)
        a2 = jax.nn.softmax(q2[:, :, None] * kk[:, None, :] * s, axis=-1)
        g1 = jax.nn.sigmoid(jnp.sum(a1 * v1[:, None, :], axis=-1))
        g2 = jax.nn.sigmoid(jnp.sum(a2 * v2[:, None, :], axis=-1))
        return x12 + a * g1[:, None, None, :] + b * g2[:, None, None, :]

    x1_1 = _area_downsample(x1, 2)
    x1_2 = _area_downsample(x1, 4)
    x1_3 = _area_downsample(x1, 8)

    x1_2_depth = dw(x1_2, p['wdw'][0])
    x1_3_depth = dw(x1_3, p['wdw'][1])
    x1_2_fuse = dmff(x1_2_depth, _nearest_upsample2(x1_3_depth), *p['dmff'][0])

    x1_1_depth = dw(x1_1, p['wdw'][2])
    x1_2_fuse_depth = dw(x1_2_fuse, p['wdw'][3])
    x1_1_fuse = dmff(x1_1_depth, _nearest_upsample2(x1_2_fuse_depth), *p['dmff'][1])

    x1_depth = dw(x1, p['wdw'][4])
    x1_1_fuse_depth = dw(x1_1_fuse, p['wdw'][5])
    x1_fuse = dmff(x1_depth, _nearest_upsample2(x1_1_fuse_depth), *p['dmff'][2])

    out = x * jax.nn.sigmoid(x1_fuse)
    return (jnp.transpose(out, (0, 3, 1, 2)), jnp.transpose(x1_fuse, (0, 3, 1, 2)))


# --------------------------------------------------------------------------- #
if __name__ == "__main__":
    N, C, H, W = 2, 48, 16, 16            # LPAM_head defaults: channel=48
    reduction, dmff_reduction = 4, 16     # num_head = 1 (module default)
    Cr, Ck = C // reduction, C // dmff_reduction

    key = jax.random.PRNGKey(0)
    keys = jax.random.split(key, 16)

    def w(k, shape, s=0.1):
        return s * jax.random.normal(k, shape, dtype=jnp.float32)

    x = jax.random.normal(keys[0], (N, C, H, W), dtype=jnp.float32)

    params = {
        # lcfe[0]: Conv2d(C, C//r, 1, bias=False) in matmul form (C, Cr).
        'wd': w(keys[1], (C, Cr)),
        # Attention.conv_kv: Conv2d(Cr, 2Cr, 1) split into k / v halves (+ bias rows).
        'wk_att': w(keys[2], (Cr, Cr)),
        'bk_att': w(keys[3], (1, Cr)),
        'wv_att': w(keys[4], (Cr, Cr)),
        'bv_att': w(keys[5], (1, Cr)),
        # lcfe[3]: Conv2d(C//r, C, 1, bias=False) in matmul form (Cr, C).
        'wu': w(keys[6], (Cr, C)),
        # depth[0..5]: Conv2d(C, C, 3, padding=1, groups=C, bias=False) as (3, 3, C).
        'wdw': [w(keys[7 + i], (3, 3, C)) for i in range(6)],
        # dmff[0..2]: (conv_k, conv_v1, conv_v2), each Conv2d(C, C//16, 1, bias=False) as (C, Ck).
        'dmff': [tuple(w(kk, (C, Ck)) for kk in jax.random.split(keys[13 + i], 3))
                 for i in range(3)],
    }

    fwd = jax.jit(lpam_head_forward)
    out, x1_fuse = fwd(x, params)
    out = jax.block_until_ready(out)
    x1_fuse = jax.block_until_ready(x1_fuse)

    ref_out, ref_fuse = lpam_head_reference(x, params)
    ref_out = jax.block_until_ready(ref_out)

    assert out.shape == (N, C, H, W) and x1_fuse.shape == (N, C, H, W)
    assert bool(jnp.all(jnp.isfinite(out))) and bool(jnp.all(jnp.isfinite(x1_fuse)))
    assert bool(jnp.allclose(out, ref_out, rtol=2e-3, atol=2e-3)), "out mismatch vs reference"
    assert bool(jnp.allclose(x1_fuse, ref_fuse, rtol=2e-3, atol=2e-3)), "x1_fuse mismatch vs reference"

    print("KERNEL_OK")
</pallas_src>

<mosaic_0001>
module attributes {stable_mosaic.version = 11 : i64} {
  func.func @kernel(%arg0: i32, %arg1: memref<1x256x48xf32, #tpu.memory_space<vmem>>, %arg2: memref<48x12xf32, #tpu.memory_space<vmem>>, %arg3: memref<12x12xf32, #tpu.memory_space<vmem>>, %arg4: memref<1x12xf32, #tpu.memory_space<vmem>>, %arg5: memref<12x12xf32, #tpu.memory_space<vmem>>, %arg6: memref<1x12xf32, #tpu.memory_space<vmem>>, %arg7: memref<12x48xf32, #tpu.memory_space<vmem>>, %arg8: memref<6x3x3x48xf32, #tpu.memory_space<vmem>>, %arg9: memref<3x48x3xf32, #tpu.memory_space<vmem>>, %arg10: memref<3x48x3xf32, #tpu.memory_space<vmem>>, %arg11: memref<3x48x3xf32, #tpu.memory_space<vmem>>, %arg12: memref<64x256xf32, #tpu.memory_space<vmem>>, %arg13: memref<16x256xf32, #tpu.memory_space<vmem>>, %arg14: memref<8x256xf32, #tpu.memory_space<vmem>>, %arg15: memref<16x8xf32, #tpu.memory_space<vmem>>, %arg16: memref<64x16xf32, #tpu.memory_space<vmem>>, %arg17: memref<256x64xf32, #tpu.memory_space<vmem>>, %arg18: memref<1x256x48xf32, #tpu.memory_space<vmem>>, %arg19: memref<1x256x48xf32, #tpu.memory_space<vmem>>) attributes {dimension_semantics = [#tpu.dimension_semantics<parallel>], iteration_bounds = array<i64: 2>, scalar_prefetch = 0 : i64, scratch_operands = 0 : i64, tpu.core_type = #tpu.core_type<tc>, window_params = [{transform_indices = @transform_0, window_bounds = array<i64: 1, 256, 48>}, {pipeline_mode = #tpu.pipeline_mode<synchronous>, transform_indices = @transform_1, window_bounds = array<i64: 48, 12>}, {pipeline_mode = #tpu.pipeline_mode<synchronous>, transform_indices = @transform_2, window_bounds = array<i64: 12, 12>}, {pipeline_mode = #tpu.pipeline_mode<synchronous>, transform_indices = @transform_3, window_bounds = array<i64: 1, 12>}, {pipeline_mode = #tpu.pipeline_mode<synchronous>, transform_indices = @transform_4, window_bounds = array<i64: 12, 12>}, {pipeline_mode = #tpu.pipeline_mode<synchronous>, transform_indices = @transform_5, window_bounds = array<i64: 1, 12>}, {pipeline_mode = #tpu.pipeline_mode<synchronous>, transform_indices = @transform_6, window_bounds = array<i64: 12, 48>}, {pipeline_mode = #tpu.pipeline_mode<synchronous>, transform_indices = @transform_7, window_bounds = array<i64: 6, 3, 3, 48>}, {pipeline_mode = #tpu.pipeline_mode<synchronous>, transform_indices = @transform_8, window_bounds = array<i64: 3, 48, 3>}, {pipeline_mode = #tpu.pipeline_mode<synchronous>, transform_indices = @transform_9, window_bounds = array<i64: 3, 48, 3>}, {pipeline_mode = #tpu.pipeline_mode<synchronous>, transform_indices = @transform_10, window_bounds = array<i64: 3, 48, 3>}, {pipeline_mode = #tpu.pipeline_mode<synchronous>, transform_indices = @transform_11, window_bounds = array<i64: 64, 256>}, {pipeline_mode = #tpu.pipeline_mode<synchronous>, transform_indices = @transform_12, window_bounds = array<i64: 16, 256>}, {pipeline_mode = #tpu.pipeline_mode<synchronous>, transform_indices = @transform_13, window_bounds = array<i64: 8, 256>}, {pipeline_mode = #tpu.pipeline_mode<synchronous>, transform_indices = @transform_14, window_bounds = array<i64: 16, 8>}, {pipeline_mode = #tpu.pipeline_mode<synchronous>, transform_indices = @transform_15, window_bounds = array<i64: 64, 16>}, {pipeline_mode = #tpu.pipeline_mode<synchronous>, transform_indices = @transform_16, window_bounds = array<i64: 256, 64>}, {transform_indices = @transform_17, window_bounds = array<i64: 1, 256, 48>}, {transform_indices = @transform_18, window_bounds = array<i64: 1, 256, 48>}]} {
    %c0 = arith.constant 0 : index
    %c0_0 = arith.constant 0 : index
    %c0_1 = arith.constant 0 : index
    %0 = vector.load %arg1[%c0, %c0_0, %c0_1] : memref<1x256x48xf32, #tpu.memory_space<vmem>>, vector<1x256x48xf32>
    %1 = vector.shape_cast %0 : vector<1x256x48xf32> to vector<256x48xf32>
    %c0_2 = arith.constant 0 : index
    %c0_3 = arith.constant 0 : index
    %2 = vector.load %arg2[%c0_2, %c0_3] : memref<48x12xf32, #tpu.memory_space<vmem>>, vector<48x12xf32>
    %cst = arith.constant dense<0.000000e+00> : vector<256x12xf32>
    %3 = tpu.matmul %1, %2, %cst {dimension_numbers = #tpu.dot_dimension_numbers<[1], [0], [0], [1], [0, 0, 1, 1], [], []>} : vector<256x48xf32>, vector<48x12xf32>, vector<256x12xf32> -> vector<256x12xf32>
    %cst_4 = arith.constant 0.000000e+00 : f32
    %4 = vector.broadcast %cst_4 : f32 to vector<256x12xf32>
    %5 = arith.maximumf %3, %4 : vector<256x12xf32>
    %cst_5 = arith.constant dense<0.000000e+00> : vector<12xf32>
    %6 = vector.multi_reduction <add>, %5, %cst_5 [0] : vector<256x12xf32> to vector<12xf32>
    %7 = vector.shape_cast %6 : vector<12xf32> to vector<1x12xf32>
    %cst_6 = arith.constant 2.560000e+02 : f32
    %8 = vector.broadcast %cst_6 : f32 to vector<1x12xf32>
    %9 = arith.divf %7, %8 : vector<1x12xf32>
    %c0_7 = arith.constant 0 : index
    %c0_8 = arith.constant 0 : index
    %10 = vector.load %arg3[%c0_7, %c0_8] : memref<12x12xf32, #tpu.memory_space<vmem>>, vector<12x12xf32>
    %cst_9 = arith.constant dense<0.000000e+00> : vector<1x12xf32>
    %11 = tpu.matmul %9, %10, %cst_9 {dimension_numbers = #tpu.dot_dimension_numbers<[1], [0], [0], [1], [0, 0, 1, 1], [], []>} : vector<1x12xf32>, vector<12x12xf32>, vector<1x12xf32> -> vector<1x12xf32>
    %c0_10 = arith.constant 0 : index
    %c0_11 = arith.constant 0 : index
    %12 = vector.load %arg4[%c0_10, %c0_11] : memref<1x12xf32, #tpu.memory_space<vmem>>, vector<1x12xf32>
    %13 = arith.addf %11, %12 : vector<1x12xf32>
    %c0_12 = arith.constant 0 : index
    %c0_13 = arith.constant 0 : index
    %14 = vector.load %arg5[%c0_12, %c0_13] : memref<12x12xf32, #tpu.memory_space<vmem>>, vector<12x12xf32>
    %cst_14 = arith.constant dense<0.000000e+00> : vector<1x12xf32>
    %15 = tpu.matmul %9, %14, %cst_14 {dimension_numbers = #tpu.dot_dimension_numbers<[1], [0], [0], [1], [0, 0, 1, 1], [], []>} : vector<1x12xf32>, vector<12x12xf32>, vector<1x12xf32> -> vector<1x12xf32>
    %c0_15 = arith.constant 0 : index
    %c0_16 = arith.constant 0 : index
    %16 = vector.load %arg6[%c0_15, %c0_16] : memref<1x12xf32, #tpu.memory_space<vmem>>, vector<1x12xf32>
    %17 = arith.addf %15, %16 : vector<1x12xf32>
    %18 = tpu.iota {dimensions = array<i32: 0>} : vector<12x12xi32>
    %19 = tpu.iota {dimensions = array<i32: 1>} : vector<12x12xi32>
    %20 = arith.cmpi eq, %18, %19 : vector<12x12xi32>
    %21 = vector.shape_cast %13 : vector<1x12xf32> to vector<1x12xf32>
    %22 = vector.broadcast %21 : vector<1x12xf32> to vector<12x12xf32>
    %cst_17 = arith.constant 0.000000e+00 : f32
    %23 = vector.broadcast %cst_17 : f32 to vector<12x12xf32>
    %24 = arith.select %20, %22, %23 : vector<12x12xi1>, vector<12x12xf32>
    %cst_18 = arith.constant dense<0.000000e+00> : vector<12xf32>
    %25 = vector.multi_reduction <add>, %24, %cst_18 [1] : vector<12x12xf32> to vector<12xf32>
    %26 = vector.shape_cast %25 : vector<12xf32> to vector<12x1xf32>
    %27 = vector.broadcast %26 : vector<12x1xf32> to vector<12x12xf32>
    %28 = vector.broadcast %9 : vector<1x12xf32> to vector<12x12xf32>
    %29 = arith.mulf %27, %28 : vector<12x12xf32>
    %cst_19 = arith.constant 0.288675129 : f32
    %30 = vector.broadcast %cst_19 : f32 to vector<12x12xf32>
    %31 = arith.mulf %29, %30 : vector<12x12xf32>
    %cst_20 = arith.constant dense<0xFF800000> : vector<12xf32>
    %32 = vector.multi_reduction <maximumf>, %31, %cst_20 [0] : vector<12x12xf32> to vector<12xf32>
    %33 = vector.shape_cast %32 : vector<12xf32> to vector<1x12xf32>
    %34 = vector.broadcast %33 : vector<1x12xf32> to vector<12x12xf32>
    %35 = arith.subf %31, %34 : vector<12x12xf32>
    %36 = math.exp %35 : vector<12x12xf32>
    %cst_21 = arith.constant dense<0.000000e+00> : vector<12xf32>
    %37 = vector.multi_reduction <add>, %36, %cst_21 [0] : vector<12x12xf32> to vector<12xf32>
    %38 = vector.shape_cast %37 : vector<12xf32> to vector<1x12xf32>
    %39 = vector.broadcast %38 : vector<1x12xf32> to vector<12x12xf32>
    %40 = arith.divf %36, %39 : vector<12x12xf32>
    %41 = tpu.iota {dimensions = array<i32: 0>} : vector<12x12xi32>
    %42 = tpu.iota {dimensions = array<i32: 1>} : vector<12x12xi32>
    %43 = arith.cmpi eq, %41, %42 : vector<12x12xi32>
    %44 = vector.shape_cast %17 : vector<1x12xf32> to vector<1x12xf32>
    %45 = vector.broadcast %44 : vector<1x12xf32> to vector<12x12xf32>
    %cst_22 = arith.constant 0.000000e+00 : f32
    %46 = vector.broadcast %cst_22 : f32 to vector<12x12xf32>
    %47 = arith.select %43, %45, %46 : vector<12x12xi1>, vector<12x12xf32>
    %cst_23 = arith.constant dense<0.000000e+00> : vector<12xf32>
    %48 = vector.multi_reduction <add>, %47, %cst_23 [1] : vector<12x12xf32> to vector<12xf32>
    %49 = vector.shape_cast %48 : vector<12xf32> to vector<12x1xf32>
    %50 = vector.broadcast %49 : vector<12x1xf32> to vector<12x12xf32>
    %51 = arith.mulf %40, %50 : vector<12x12xf32>
    %cst_24 = arith.constant dense<0.000000e+00> : vector<12xf32>
    %52 = vector.multi_reduction <add>, %51, %cst_24 [0] : vector<12x12xf32> to vector<12xf32>
    %53 = vector.shape_cast %52 : vector<12xf32> to vector<1x12xf32>
    %cst_25 = arith.constant 5.000000e-01 : f32
    %54 = vector.broadcast %cst_25 : f32 to vector<1x12xf32>
    %55 = arith.mulf %54, %53 : vector<1x12xf32>
    %56 = math.tanh %55 : vector<1x12xf32>
    %cst_26 = arith.constant 5.000000e-01 : f32
    %57 = vector.broadcast %cst_26 : f32 to vector<1x12xf32>
    %58 = arith.mulf %57, %56 : vector<1x12xf32>
    %cst_27 = arith.constant 5.000000e-01 : f32
    %59 = vector.broadcast %cst_27 : f32 to vector<1x12xf32>
    %60 = arith.addf %58, %59 : vector<1x12xf32>
    %cst_28 = arith.constant 1.000000e+00 : f32
    %61 = vector.broadcast %cst_28 : f32 to vector<1x12xf32>
    %62 = arith.addf %61, %60 : vector<1x12xf32>
    %63 = vector.broadcast %62 : vector<1x12xf32> to vector<256x12xf32>
    %64 = arith.mulf %5, %63 : vector<256x12xf32>
    %c0_29 = arith.constant 0 : index
    %c0_30 = arith.constant 0 : index
    %65 = vector.load %arg7[%c0_29, %c0_30] : memref<12x48xf32, #tpu.memory_space<vmem>>, vector<12x48xf32>
    %cst_31 = arith.constant dense<0.000000e+00> : vector<256x48xf32>
    %66 = tpu.matmul %64, %65, %cst_31 {dimension_numbers = #tpu.dot_dimension_numbers<[1], [0], [0], [1], [0, 0, 1, 1], [], []>} : vector<256x12xf32>, vector<12x48xf32>, vector<256x48xf32> -> vector<256x48xf32>
    %c0_32 = arith.constant 0 : index
    %c0_33 = arith.constant 0 : index
    %67 = vector.load %arg12[%c0_32, %c0_33] : memref<64x256xf32, #tpu.memory_space<vmem>>, vector<64x256xf32>
    %cst_34 = arith.constant dense<0.000000e+00> : vector<64x48xf32>
    %68 = tpu.matmul %67, %66, %cst_34 {dimension_numbers = #tpu.dot_dimension_numbers<[1], [0], [0], [1], [0, 0, 1, 1], [], []>} : vector<64x256xf32>, vector<256x48xf32>, vector<64x48xf32> -> vector<64x48xf32>
    %c0_35 = arith.constant 0 : index
    %c0_36 = arith.constant 0 : index
    %69 = vector.load %arg13[%c0_35, %c0_36] : memref<16x256xf32, #tpu.memory_space<vmem>>, vector<16x256xf32>
    %cst_37 = arith.constant dense<0.000000e+00> : vector<16x48xf32>
    %70 = tpu.matmul %69, %66, %cst_37 {dimension_numbers = #tpu.dot_dimension_numbers<[1], [0], [0], [1], [0, 0, 1, 1], [], []>} : vector<16x256xf32>, vector<256x48xf32>, vector<16x48xf32> -> vector<16x48xf32>
    %c0_38 = arith.constant 0 : index
    %c0_39 = arith.constant 0 : index
    %71 = vector.load %arg14[%c0_38, %c0_39] : memref<8x256xf32, #tpu.memory_space<vmem>>, vector<8x256xf32>
    %cst_40 = arith.constant dense<0.000000e+00> : vector<8x48xf32>
    %72 = tpu.matmul %71, %66, %cst_40 {dimension_numbers = #tpu.dot_dimension_numbers<[1], [0], [0], [1], [0, 0, 1, 1], [], []>} : vector<8x256xf32>, vector<256x48xf32>, vector<8x48xf32> -> vector<8x48xf32>
    %73 = tpu.iota {dimensions = array<i32: 0>} : vector<256x48xi32>
    %c15_i32 = arith.constant 15 : i32
    %74 = vector.broadcast %c15_i32 : i32 to vector<256x48xi32>
    %75 = arith.andi %73, %74 : vector<256x48xi32>
    %c1_i32 = arith.constant 1 : i32
    %76 = vector.broadcast %c1_i32 : i32 to vector<256x48xi32>
    %77 = arith.cmpi sge, %75, %76 : vector<256x48xi32>
    %c14_i32 = arith.constant 14 : i32
    %78 = vector.broadcast %c14_i32 : i32 to vector<256x48xi32>
    %79 = arith.cmpi sle, %75, %78 : vector<256x48xi32>
    %80 = tpu.iota {dimensions = array<i32: 0>} : vector<64x48xi32>
    %c7_i32 = arith.constant 7 : i32
    %81 = vector.broadcast %c7_i32 : i32 to vector<64x48xi32>
    %82 = arith.andi %80, %81 : vector<64x48xi32>
    %c1_i32_41 = arith.constant 1 : i32
    %83 = vector.broadcast %c1_i32_41 : i32 to vector<64x48xi32>
    %84 = arith.cmpi sge, %82, %83 : vector<64x48xi32>
    %c6_i32 = arith.constant 6 : i32
    %85 = vector.broadcast %c6_i32 : i32 to vector<64x48xi32>
    %86 = arith.cmpi sle, %82, %85 : vector<64x48xi32>
    %87 = tpu.iota {dimensions = array<i32: 0>} : vector<16x48xi32>
    %c3_i32 = arith.constant 3 : i32
    %88 = vector.broadcast %c3_i32 : i32 to vector<16x48xi32>
    %89 = arith.andi %87, %88 : vector<16x48xi32>
    %c1_i32_42 = arith.constant 1 : i32
    %90 = vector.broadcast %c1_i32_42 : i32 to vector<16x48xi32>
    %91 = arith.cmpi sge, %89, %90 : vector<16x48xi32>
    %c2_i32 = arith.constant 2 : i32
    %92 = vector.broadcast %c2_i32 : i32 to vector<16x48xi32>
    %93 = arith.cmpi sle, %89, %92 : vector<16x48xi32>
    %94 = tpu.iota {dimensions = array<i32: 0>} : vector<8x48xi32>
    %c1_i32_43 = arith.constant 1 : i32
    %95 = vector.broadcast %c1_i32_43 : i32 to vector<8x48xi32>
    %96 = arith.andi %94, %95 : vector<8x48xi32>
    %c1_i32_44 = arith.constant 1 : i32
    %97 = vector.broadcast %c1_i32_44 : i32 to vector<8x48xi32>
    %98 = arith.cmpi sge, %96, %97 : vector<8x48xi32>
    %c0_i32 = arith.constant 0 : i32
    %99 = vector.broadcast %c0_i32 : i32 to vector<8x48xi32>
    %100 = arith.cmpi sle, %96, %99 : vector<8x48xi32>
    %c1 = arith.constant 1 : index
    %c0_45 = arith.constant 0 : index
    %c0_46 = arith.constant 0 : index
    %c0_47 = arith.constant 0 : index
    %101 = vector.load %arg8[%c1, %c0_45, %c0_46, %c0_47] : memref<6x3x3x48xf32, #tpu.memory_space<vmem>>, vector<1x3x3x48xf32>
    %102 = vector.shape_cast %101 : vector<1x3x3x48xf32> to vector<3x3x48xf32>
    %cst_48 = arith.constant 0.000000e+00 : f32
    %103 = vector.broadcast %cst_48 : f32 to vector<1x48xf32>
    %104 = vector.extract_strided_slice %72 {offsets = [0, 0], sizes = [7, 48], strides = [1, 1]} : vector<8x48xf32> to vector<7x48xf32>
    %105 = tpu.concatenate %103, %104 in 0 : vector<1x48xf32>, vector<7x48xf32> -> vector<8x48xf32>
    %cst_49 = arith.constant 0.000000e+00 : f32
    %106 = vector.broadcast %cst_49 : f32 to vector<8x48xf32>
    %107 = arith.select %98, %105, %106 : vector<8x48xi1>, vector<8x48xf32>
    %cst_50 = arith.constant 0.000000e+00 : f32
    %108 = vector.broadcast %cst_50 : f32 to vector<1x48xf32>
    %109 = vector.extract_strided_slice %72 {offsets = [1, 0], sizes = [7, 48], strides = [1, 1]} : vector<8x48xf32> to vector<7x48xf32>
    %110 = tpu.concatenate %109, %108 in 0 : vector<7x48xf32>, vector<1x48xf32> -> vector<8x48xf32>
    %cst_51 = arith.constant 0.000000e+00 : f32
    %111 = vector.broadcast %cst_51 : f32 to vector<8x48xf32>
    %112 = arith.select %100, %110, %111 : vector<8x48xi1>, vector<8x48xf32>
    %113 = vector.extract_strided_slice %102 {offsets = [0, 0, 0], sizes = [1, 1, 48], strides = [1, 1, 1]} : vector<3x3x48xf32> to vector<1x1x48xf32>
    %114 = vector.shape_cast %113 : vector<1x1x48xf32> to vector<48xf32>
    %115 = vector.shape_cast %114 : vector<48xf32> to vector<1x48xf32>
    %116 = vector.broadcast %115 : vector<1x48xf32> to vector<8x48xf32>
    %117 = arith.mulf %107, %116 : vector<8x48xf32>
    %118 = vector.extract_strided_slice %102 {offsets = [0, 1, 0], sizes = [1, 1, 48], strides = [1, 1, 1]} : vector<3x3x48xf32> to vector<1x1x48xf32>
    %119 = vector.shape_cast %118 : vector<1x1x48xf32> to vector<48xf32>
    %120 = vector.shape_cast %119 : vector<48xf32> to vector<1x48xf32>
    %121 = vector.broadcast %120 : vector<1x48xf32> to vector<8x48xf32>
    %122 = arith.mulf %72, %121 : vector<8x48xf32>
    %123 = arith.addf %117, %122 : vector<8x48xf32>
    %124 = vector.extract_strided_slice %102 {offsets = [0, 2, 0], sizes = [1, 1, 48], strides = [1, 1, 1]} : vector<3x3x48xf32> to vector<1x1x48xf32>
    %125 = vector.shape_cast %124 : vector<1x1x48xf32> to vector<48xf32>
    %126 = vector.shape_cast %125 : vector<48xf32> to vector<1x48xf32>
    %127 = vector.broadcast %126 : vector<1x48xf32> to vector<8x48xf32>
    %128 = arith.mulf %112, %127 : vector<8x48xf32>
    %129 = arith.addf %123, %128 : vector<8x48xf32>
    %130 = vector.extract_strided_slice %102 {offsets = [1, 0, 0], sizes = [1, 1, 48], strides = [1, 1, 1]} : vector<3x3x48xf32> to vector<1x1x48xf32>
    %131 = vector.shape_cast %130 : vector<1x1x48xf32> to vector<48xf32>
    %132 = vector.shape_cast %131 : vector<48xf32> to vector<1x48xf32>
    %133 = vector.broadcast %132 : vector<1x48xf32> to vector<8x48xf32>
    %134 = arith.mulf %107, %133 : vector<8x48xf32>
    %135 = vector.extract_strided_slice %102 {offsets = [1, 1, 0], sizes = [1, 1, 48], strides = [1, 1, 1]} : vector<3x3x48xf32> to vector<1x1x48xf32>
    %136 = vector.shape_cast %135 : vector<1x1x48xf32> to vector<48xf32>
    %137 = vector.shape_cast %136 : vector<48xf32> to vector<1x48xf32>
    %138 = vector.broadcast %137 : vector<1x48xf32> to vector<8x48xf32>
    %139 = arith.mulf %72, %138 : vector<8x48xf32>
    %140 = arith.addf %134, %139 : vector<8x48xf32>
    %141 = vector.extract_strided_slice %102 {offsets = [1, 2, 0], sizes = [1, 1, 48], strides = [1, 1, 1]} : vector<3x3x48xf32> to vector<1x1x48xf32>
    %142 = vector.shape_cast %141 : vector<1x1x48xf32> to vector<48xf32>
    %143 = vector.shape_cast %142 : vector<48xf32> to vector<1x48xf32>
    %144 = vector.broadcast %143 : vector<1x48xf32> to vector<8x48xf32>
    %145 = arith.mulf %112, %144 : vector<8x48xf32>
    %146 = arith.addf %140, %145 : vector<8x48xf32>
    %147 = vector.extract_strided_slice %102 {offsets = [2, 0, 0], sizes = [1, 1, 48], strides = [1, 1, 1]} : vector<3x3x48xf32> to vector<1x1x48xf32>
    %148 = vector.shape_cast %147 : vector<1x1x48xf32> to vector<48xf32>
    %149 = vector.shape_cast %148 : vector<48xf32> to vector<1x48xf32>
    %150 = vector.broadcast %149 : vector<1x48xf32> to vector<8x48xf32>
    %151 = arith.mulf %107, %150 : vector<8x48xf32>
    %152 = vector.extract_strided_slice %102 {offsets = [2, 1, 0], sizes = [1, 1, 48], strides = [1, 1, 1]} : vector<3x3x48xf32> to vector<1x1x48xf32>
    %153 = vector.shape_cast %152 : vector<1x1x48xf32> to vector<48xf32>
    %154 = vector.shape_cast %153 : vector<48xf32> to vector<1x48xf32>
    %155 = vector.broadcast %154 : vector<1x48xf32> to vector<8x48xf32>
    %156 = arith.mulf %72, %155 : vector<8x48xf32>
    %157 = arith.addf %151, %156 : vector<8x48xf32>
    %158 = vector.extract_strided_slice %102 {offsets = [2, 2, 0], sizes = [1, 1, 48], strides = [1, 1, 1]} : vector<3x3x48xf32> to vector<1x1x48xf32>
    %159 = vector.shape_cast %158 : vector<1x1x48xf32> to vector<48xf32>
    %160 = vector.shape_cast %159 : vector<48xf32> to vector<1x48xf32>
    %161 = vector.broadcast %160 : vector<1x48xf32> to vector<8x48xf32>
    %162 = arith.mulf %112, %161 : vector<8x48xf32>
    %163 = arith.addf %157, %162 : vector<8x48xf32>
    %cst_52 = arith.constant 0.000000e+00 : f32
    %164 = vector.broadcast %cst_52 : f32 to vector<2x48xf32>
    %165 = vector.extract_strided_slice %129 {offsets = [0, 0], sizes = [6, 48], strides = [1, 1]} : vector<8x48xf32> to vector<6x48xf32>
    %166 = tpu.concatenate %164, %165 in 0 : vector<2x48xf32>, vector<6x48xf32> -> vector<8x48xf32>
    %167 = arith.addf %166, %146 : vector<8x48xf32>
    %cst_53 = arith.constant 0.000000e+00 : f32
    %168 = vector.broadcast %cst_53 : f32 to vector<2x48xf32>
    %169 = vector.extract_strided_slice %163 {offsets = [2, 0], sizes = [6, 48], strides = [1, 1]} : vector<8x48xf32> to vector<6x48xf32>
    %170 = tpu.concatenate %169, %168 in 0 : vector<6x48xf32>, vector<2x48xf32> -> vector<8x48xf32>
    %171 = arith.addf %167, %170 : vector<8x48xf32>
    %c0_54 = arith.constant 0 : index
    %c0_55 = arith.constant 0 : index
    %172 = vector.load %arg15[%c0_54, %c0_55] : memref<16x8xf32, #tpu.memory_space<vmem>>, vector<16x8xf32>
    %cst_56 = arith.constant dense<0.000000e+00> : vector<16x48xf32>
    %173 = tpu.matmul %172, %171, %cst_56 {dimension_numbers = #tpu.dot_dimension_numbers<[1], [0], [0], [1], [0, 0, 1, 1], [], []>} : vector<16x8xf32>, vector<8x48xf32>, vector<16x48xf32> -> vector<16x48xf32>
    %c0_57 = arith.constant 0 : index
    %c0_58 = arith.constant 0 : index
    %c0_59 = arith.constant 0 : index
    %c0_60 = arith.constant 0 : index
    %174 = vector.load %arg8[%c0_57, %c0_58, %c0_59, %c0_60] : memref<6x3x3x48xf32, #tpu.memory_space<vmem>>, vector<1x3x3x48xf32>
    %175 = vector.shape_cast %174 : vector<1x3x3x48xf32> to vector<3x3x48xf32>
    %cst_61 = arith.constant 0.000000e+00 : f32
    %176 = vector.broadcast %cst_61 : f32 to vector<1x48xf32>
    %177 = vector.extract_strided_slice %70 {offsets = [0, 0], sizes = [15, 48], strides = [1, 1]} : vector<16x48xf32> to vector<15x48xf32>
    %178 = tpu.concatenate %176, %177 in 0 : vector<1x48xf32>, vector<15x48xf32> -> vector<16x48xf32>
    %cst_62 = arith.constant 0.000000e+00 : f32
    %179 = vector.broadcast %cst_62 : f32 to vector<16x48xf32>
    %180 = arith.select %91, %178, %179 : vector<16x48xi1>, vector<16x48xf32>
    %cst_63 = arith.constant 0.000000e+00 : f32
    %181 = vector.broadcast %cst_63 : f32 to vector<1x48xf32>
    %182 = vector.extract_strided_slice %70 {offsets = [1, 0], sizes = [15, 48], strides = [1, 1]} : vector<16x48xf32> to vector<15x48xf32>
    %183 = tpu.concatenate %182, %181 in 0 : vector<15x48xf32>, vector<1x48xf32> -> vector<16x48xf32>
    %cst_64 = arith.constant 0.000000e+00 : f32
    %184 = vector.broadcast %cst_64 : f32 to vector<16x48xf32>
    %185 = arith.select %93, %183, %184 : vector<16x48xi1>, vector<16x48xf32>
    %186 = vector.extract_strided_slice %175 {offsets = [0, 0, 0], sizes = [1, 1, 48], strides = [1, 1, 1]} : vector<3x3x48xf32> to vector<1x1x48xf32>
    %187 = vector.shape_cast %186 : vector<1x1x48xf32> to vector<48xf32>
    %188 = vector.shape_cast %187 : vector<48xf32> to vector<1x48xf32>
    %189 = vector.broadcast %188 : vector<1x48xf32> to vector<16x48xf32>
    %190 = arith.mulf %180, %189 : vector<16x48xf32>
    %191 = vector.extract_strided_slice %175 {offsets = [0, 1, 0], sizes = [1, 1, 48], strides = [1, 1, 1]} : vector<3x3x48xf32> to vector<1x1x48xf32>
    %192 = vector.shape_cast %191 : vector<1x1x48xf32> to vector<48xf32>
    %193 = vector.shape_cast %192 : vector<48xf32> to vector<1x48xf32>
    %194 = vector.broadcast %193 : vector<1x48xf32> to vector<16x48xf32>
    %195 = arith.mulf %70, %194 : vector<16x48xf32>
    %196 = arith.addf %190, %195 : vector<16x48xf32>
    %197 = vector.extract_strided_slice %175 {offsets = [0, 2, 0], sizes = [1, 1, 48], strides = [1, 1, 1]} : vector<3x3x48xf32> to vector<1x1x48xf32>
    %198 = vector.shape_cast %197 : vector<1x1x48xf32> to vector<48xf32>
    %199 = vector.shape_cast %198 : vector<48xf32> to vector<1x48xf32>
    %200 = vector.broadcast %199 : vector<1x48xf32> to vector<16x48xf32>
    %201 = arith.mulf %185, %200 : vector<16x48xf32>
    %202 = arith.addf %196, %201 : vector<16x48xf32>
    %203 = vector.extract_strided_slice %175 {offsets = [1, 0, 0], sizes = [1, 1, 48], strides = [1, 1, 1]} : vector<3x3x48xf32> to vector<1x1x48xf32>
    %204 = vector.shape_cast %203 : vector<1x1x48xf32> to vector<48xf32>
    %205 = vector.shape_cast %204 : vector<48xf32> to vector<1x48xf32>
    %206 = vector.broadcast %205 : vector<1x48xf32> to vector<16x48xf32>
    %207 = arith.mulf %180, %206 : vector<16x48xf32>
    %208 = vector.extract_strided_slice %175 {offsets = [1, 1, 0], sizes = [1, 1, 48], strides = [1, 1, 1]} : vector<3x3x48xf32> to vector<1x1x48xf32>
    %209 = vector.shape_cast %208 : vector<1x1x48xf32> to vector<48xf32>
    %210 = vector.shape_cast %209 : vector<48xf32> to vector<1x48xf32>
    %211 = vector.broadcast %210 : vector<1x48xf32> to vector<16x48xf32>
    %212 = arith.mulf %70, %211 : vector<16x48xf32>
    %213 = arith.addf %207, %212 : vector<16x48xf32>
    %214 = vector.extract_strided_slice %175 {offsets = [1, 2, 0], sizes = [1, 1, 48], strides = [1, 1, 1]} : vector<3x3x48xf32> to vector<1x1x48xf32>
    %215 = vector.shape_cast %214 : vector<1x1x48xf32> to vector<48xf32>
    %216 = vector.shape_cast %215 : vector<48xf32> to vector<1x48xf32>
    %217 = vector.broadcast %216 : vector<1x48xf32> to vector<16x48xf32>
    %218 = arith.mulf %185, %217 : vector<16x48xf32>
    %219 = arith.addf %213, %218 : vector<16x48xf32>
    %220 = vector.extract_strided_slice %175 {offsets = [2, 0, 0], sizes = [1, 1, 48], strides = [1, 1, 1]} : vector<3x3x48xf32> to vector<1x1x48xf32>
    %221 = vector.shape_cast %220 : vector<1x1x48xf32> to vector<48xf32>
    %222 = vector.shape_cast %221 : vector<48xf32> to vector<1x48xf32>
    %223 = vector.broadcast %222 : vector<1x48xf32> to vector<16x48xf32>
    %224 = arith.mulf %180, %223 : vector<16x48xf32>
    %225 = vector.extract_strided_slice %175 {offsets = [2, 1, 0], sizes = [1, 1, 48], strides = [1, 1, 1]} : vector<3x3x48xf32> to vector<1x1x48xf32>
    %226 = vector.shape_cast %225 : vector<1x1x48xf32> to vector<48xf32>
    %227 = vector.shape_cast %226 : vector<48xf32> to vector<1x48xf32>
    %228 = vector.broadcast %227 : vector<1x48xf32> to vector<16x48xf32>
    %229 = arith.mulf %70, %228 : vector<16x48xf32>
    %230 = arith.addf %224, %229 : vector<16x48xf32>
    %231 = vector.extract_strided_slice %175 {offsets = [2, 2, 0], sizes = [1, 1, 48], strides = [1, 1, 1]} : vector<3x3x48xf32> to vector<1x1x48xf32>
    %232 = vector.shape_cast %231 : vector<1x1x48xf32> to vector<48xf32>
    %233 = vector.shape_cast %232 : vector<48xf32> to vector<1x48xf32>
    %234 = vector.broadcast %233 : vector<1x48xf32> to vector<16x48xf32>
    %235 = arith.mulf %185, %234 : vector<16x48xf32>
    %236 = arith.addf %230, %235 : vector<16x48xf32>
    %cst_65 = arith.constant 0.000000e+00 : f32
    %237 = vector.broadcast %cst_65 : f32 to vector<4x48xf32>
    %238 = vector.extract_strided_slice %202 {offsets = [0, 0], sizes = [12, 48], strides = [1, 1]} : vector<16x48xf32> to vector<12x48xf32>
    %239 = tpu.concatenate %237, %238 in 0 : vector<4x48xf32>, vector<12x48xf32> -> vector<16x48xf32>
    %240 = arith.addf %239, %219 : vector<16x48xf32>
    %cst_66 = arith.constant 0.000000e+00 : f32
    %241 = vector.broadcast %cst_66 : f32 to vector<4x48xf32>
    %242 = vector.extract_strided_slice %236 {offsets = [4, 0], sizes = [12, 48], strides = [1, 1]} : vector<16x48xf32> to vector<12x48xf32>
    %243 = tpu.concatenate %242, %241 in 0 : vector<12x48xf32>, vector<4x48xf32> -> vector<16x48xf32>
    %244 = arith.addf %240, %243 : vector<16x48xf32>
    %c0_67 = arith.constant 0 : index
    %c0_68 = arith.constant 0 : index
    %c0_69 = arith.constant 0 : index
    %245 = vector.load %arg9[%c0_67, %c0_68, %c0_69] : memref<3x48x3xf32, #tpu.memory_space<vmem>>, vector<1x48x3xf32>
    %246 = vector.shape_cast %245 : vector<1x48x3xf32> to vector<48x3xf32>
    %c0_70 = arith.constant 0 : index
    %c0_71 = arith.constant 0 : index
    %c0_72 = arith.constant 0 : index
    %247 = vector.load %arg10[%c0_70, %c0_71, %c0_72] : memref<3x48x3xf32, #tpu.memory_space<vmem>>, vector<1x48x3xf32>
    %248 = vector.shape_cast %247 : vector<1x48x3xf32> to vector<48x3xf32>
    %c0_73 = arith.constant 0 : index
    %c0_74 = arith.constant 0 : index
    %c0_75 = arith.constant 0 : index
    %249 = vector.load %arg11[%c0_73, %c0_74, %c0_75] : memref<3x48x3xf32, #tpu.memory_space<vmem>>, vector<1x48x3xf32>
    %250 = vector.shape_cast %249 : vector<1x48x3xf32> to vector<48x3xf32>
    %251 = arith.addf %244, %173 : vector<16x48xf32>
    %cst_76 = arith.constant dense<0.000000e+00> : vector<48xf32>
    %252 = vector.multi_reduction <add>, %244, %cst_76 [0] : vector<16x48xf32> to vector<48xf32>
    %253 = vector.shape_cast %252 : vector<48xf32> to vector<1x48xf32>
    %cst_77 = arith.constant 1.600000e+01 : f32
    %254 = vector.broadcast %cst_77 : f32 to vector<1x48xf32>
    %255 = arith.divf %253, %254 : vector<1x48xf32>
    %cst_78 = arith.constant dense<0.000000e+00> : vector<48xf32>
    %256 = vector.multi_reduction <add>, %173, %cst_78 [0] : vector<16x48xf32> to vector<48xf32>
    %257 = vector.shape_cast %256 : vector<48xf32> to vector<1x48xf32>
    %cst_79 = arith.constant 1.600000e+01 : f32
    %258 = vector.broadcast %cst_79 : f32 to vector<1x48xf32>
    %259 = arith.divf %257, %258 : vector<1x48xf32>
    %260 = arith.addf %255, %259 : vector<1x48xf32>
    %cst_80 = arith.constant dense<0.000000e+00> : vector<1x3xf32>
    %261 = tpu.matmul %260, %246, %cst_80 {dimension_numbers = #tpu.dot_dimension_numbers<[1], [0], [0], [1], [0, 0, 1, 1], [], []>} : vector<1x48xf32>, vector<48x3xf32>, vector<1x3xf32> -> vector<1x3xf32>
    %cst_81 = arith.constant dense<0.000000e+00> : vector<1x3xf32>
    %262 = tpu.matmul %255, %248, %cst_81 {dimension_numbers = #tpu.dot_dimension_numbers<[1], [0], [0], [1], [0, 0, 1, 1], [], []>} : vector<1x48xf32>, vector<48x3xf32>, vector<1x3xf32> -> vector<1x3xf32>
    %cst_82 = arith.constant dense<0.000000e+00> : vector<1x3xf32>
    %263 = tpu.matmul %259, %250, %cst_82 {dimension_numbers = #tpu.dot_dimension_numbers<[1], [0], [0], [1], [0, 0, 1, 1], [], []>} : vector<1x48xf32>, vector<48x3xf32>, vector<1x3xf32> -> vector<1x3xf32>
    %264 = tpu.iota {dimensions = array<i32: 0>} : vector<3x3xi32>
    %265 = tpu.iota {dimensions = array<i32: 1>} : vector<3x3xi32>
    %266 = arith.cmpi eq, %264, %265 : vector<3x3xi32>
    %267 = vector.shape_cast %261 : vector<1x3xf32> to vector<1x3xf32>
    %268 = vector.broadcast %267 : vector<1x3xf32> to vector<3x3xf32>
    %cst_83 = arith.constant 0.000000e+00 : f32
    %269 = vector.broadcast %cst_83 : f32 to vector<3x3xf32>
    %270 = arith.select %266, %268, %269 : vector<3x3xi1>, vector<3x3xf32>
    %cst_84 = arith.constant dense<0.000000e+00> : vector<3xf32>
    %271 = vector.multi_reduction <add>, %270, %cst_84 [1] : vector<3x3xf32> to vector<3xf32>
    %272 = vector.shape_cast %271 : vector<3xf32> to vector<3x1xf32>
    %273 = vector.broadcast %272 : vector<3x1xf32> to vector<3x48xf32>
    %274 = vector.broadcast %255 : vector<1x48xf32> to vector<3x48xf32>
    %275 = arith.mulf %273, %274 : vector<3x48xf32>
    %cst_85 = arith.constant 0.144337565 : f32
    %276 = vector.broadcast %cst_85 : f32 to vector<3x48xf32>
    %277 = arith.mulf %275, %276 : vector<3x48xf32>
    %cst_86 = arith.constant dense<0xFF800000> : vector<48xf32>
    %278 = vector.multi_reduction <maximumf>, %277, %cst_86 [0] : vector<3x48xf32> to vector<48xf32>
    %279 = vector.shape_cast %278 : vector<48xf32> to vector<1x48xf32>
    %280 = vector.broadcast %279 : vector<1x48xf32> to vector<3x48xf32>
    %281 = arith.subf %277, %280 : vector<3x48xf32>
    %282 = math.exp %281 : vector<3x48xf32>
    %cst_87 = arith.constant dense<0.000000e+00> : vector<48xf32>
    %283 = vector.multi_reduction <add>, %282, %cst_87 [0] : vector<3x48xf32> to vector<48xf32>
    %284 = vector.shape_cast %283 : vector<48xf32> to vector<1x48xf32>
    %285 = vector.broadcast %284 : vector<1x48xf32> to vector<3x48xf32>
    %286 = arith.divf %282, %285 : vector<3x48xf32>
    %287 = vector.broadcast %272 : vector<3x1xf32> to vector<3x48xf32>
    %288 = vector.broadcast %259 : vector<1x48xf32> to vector<3x48xf32>
    %289 = arith.mulf %287, %288 : vector<3x48xf32>
    %cst_88 = arith.constant 0.144337565 : f32
    %290 = vector.broadcast %cst_88 : f32 to vector<3x48xf32>
    %291 = arith.mulf %289, %290 : vector<3x48xf32>
    %cst_89 = arith.constant dense<0xFF800000> : vector<48xf32>
    %292 = vector.multi_reduction <maximumf>, %291, %cst_89 [0] : vector<3x48xf32> to vector<48xf32>
    %293 = vector.shape_cast %292 : vector<48xf32> to vector<1x48xf32>
    %294 = vector.broadcast %293 : vector<1x48xf32> to vector<3x48xf32>
    %295 = arith.subf %291, %294 : vector<3x48xf32>
    %296 = math.exp %295 : vector<3x48xf32>
    %cst_90 = arith.constant dense<0.000000e+00> : vector<48xf32>
    %297 = vector.multi_reduction <add>, %296, %cst_90 [0] : vector<3x48xf32> to vector<48xf32>
    %298 = vector.shape_cast %297 : vector<48xf32> to vector<1x48xf32>
    %299 = vector.broadcast %298 : vector<1x48xf32> to vector<3x48xf32>
    %300 = arith.divf %296, %299 : vector<3x48xf32>
    %301 = tpu.iota {dimensions = array<i32: 0>} : vector<3x3xi32>
    %302 = tpu.iota {dimensions = array<i32: 1>} : vector<3x3xi32>
    %303 = arith.cmpi eq, %301, %302 : vector<3x3xi32>
    %304 = vector.shape_cast %262 : vector<1x3xf32> to vector<1x3xf32>
    %305 = vector.broadcast %304 : vector<1x3xf32> to vector<3x3xf32>
    %cst_91 = arith.constant 0.000000e+00 : f32
    %306 = vector.broadcast %cst_91 : f32 to vector<3x3xf32>
    %307 = arith.select %303, %305, %306 : vector<3x3xi1>, vector<3x3xf32>
    %cst_92 = arith.constant dense<0.000000e+00> : vector<3xf32>
    %308 = vector.multi_reduction <add>, %307, %cst_92 [1] : vector<3x3xf32> to vector<3xf32>
    %309 = vector.shape_cast %308 : vector<3xf32> to vector<3x1xf32>
    %310 = vector.broadcast %309 : vector<3x1xf32> to vector<3x48xf32>
    %311 = arith.mulf %286, %310 : vector<3x48xf32>
    %cst_93 = arith.constant dense<0.000000e+00> : vector<48xf32>
    %312 = vector.multi_reduction <add>, %311, %cst_93 [0] : vector<3x48xf32> to vector<48xf32>
    %313 = vector.shape_cast %312 : vector<48xf32> to vector<1x48xf32>
    %cst_94 = arith.constant 5.000000e-01 : f32
    %314 = vector.broadcast %cst_94 : f32 to vector<1x48xf32>
    %315 = arith.mulf %314, %313 : vector<1x48xf32>
    %316 = math.tanh %315 : vector<1x48xf32>
    %cst_95 = arith.constant 5.000000e-01 : f32
    %317 = vector.broadcast %cst_95 : f32 to vector<1x48xf32>
    %318 = arith.mulf %317, %316 : vector<1x48xf32>
    %cst_96 = arith.constant 5.000000e-01 : f32
    %319 = vector.broadcast %cst_96 : f32 to vector<1x48xf32>
    %320 = arith.addf %318, %319 : vector<1x48xf32>
    %321 = tpu.iota {dimensions = array<i32: 0>} : vector<3x3xi32>
    %322 = tpu.iota {dimensions = array<i32: 1>} : vector<3x3xi32>
    %323 = arith.cmpi eq, %321, %322 : vector<3x3xi32>
    %324 = vector.shape_cast %263 : vector<1x3xf32> to vector<1x3xf32>
    %325 = vector.broadcast %324 : vector<1x3xf32> to vector<3x3xf32>
    %cst_97 = arith.constant 0.000000e+00 : f32
    %326 = vector.broadcast %cst_97 : f32 to vector<3x3xf32>
    %327 = arith.select %323, %325, %326 : vector<3x3xi1>, vector<3x3xf32>
    %cst_98 = arith.constant dense<0.000000e+00> : vector<3xf32>
    %328 = vector.multi_reduction <add>, %327, %cst_98 [1] : vector<3x3xf32> to vector<3xf32>
    %329 = vector.shape_cast %328 : vector<3xf32> to vector<3x1xf32>
    %330 = vector.broadcast %329 : vector<3x1xf32> to vector<3x48xf32>
    %331 = arith.mulf %300, %330 : vector<3x48xf32>
    %cst_99 = arith.constant dense<0.000000e+00> : vector<48xf32>
    %332 = vector.multi_reduction <add>, %331, %cst_99 [0] : vector<3x48xf32> to vector<48xf32>
    %333 = vector.shape_cast %332 : vector<48xf32> to vector<1x48xf32>
    %cst_100 = arith.constant 5.000000e-01 : f32
    %334 = vector.broadcast %cst_100 : f32 to vector<1x48xf32>
    %335 = arith.mulf %334, %333 : vector<1x48xf32>
    %336 = math.tanh %335 : vector<1x48xf32>
    %cst_101 = arith.constant 5.000000e-01 : f32
    %337 = vector.broadcast %cst_101 : f32 to vector<1x48xf32>
    %338 = arith.mulf %337, %336 : vector<1x48xf32>
    %cst_102 = arith.constant 5.000000e-01 : f32
    %339 = vector.broadcast %cst_102 : f32 to vector<1x48xf32>
    %340 = arith.addf %338, %339 : vector<1x48xf32>
    %341 = vector.broadcast %320 : vector<1x48xf32> to vector<16x48xf32>
    %342 = arith.mulf %244, %341 : vector<16x48xf32>
    %343 = arith.addf %251, %342 : vector<16x48xf32>
    %344 = vector.broadcast %340 : vector<1x48xf32> to vector<16x48xf32>
    %345 = arith.mulf %173, %344 : vector<16x48xf32>
    %346 = arith.addf %343, %345 : vector<16x48xf32>
    %c2 = arith.constant 2 : index
    %c0_103 = arith.constant 0 : index
    %c0_104 = arith.constant 0 : index
    %c0_105 = arith.constant 0 : index
    %347 = vector.load %arg8[%c2, %c0_103, %c0_104, %c0_105] : memref<6x3x3x48xf32, #tpu.memory_space<vmem>>, vector<1x3x3x48xf32>
    %348 = vector.shape_cast %347 : vector<1x3x3x48xf32> to vector<3x3x48xf32>
    %cst_106 = arith.constant 0.000000e+00 : f32
    %349 = vector.broadcast %cst_106 : f32 to vector<1x48xf32>
    %350 = vector.extract_strided_slice %68 {offsets = [0, 0], sizes = [63, 48], strides = [1, 1]} : vector<64x48xf32> to vector<63x48xf32>
    %351 = tpu.concatenate %349, %350 in 0 : vector<1x48xf32>, vector<63x48xf32> -> vector<64x48xf32>
    %cst_107 = arith.constant 0.000000e+00 : f32
    %352 = vector.broadcast %cst_107 : f32 to vector<64x48xf32>
    %353 = arith.select %84, %351, %352 : vector<64x48xi1>, vector<64x48xf32>
    %cst_108 = arith.constant 0.000000e+00 : f32
    %354 = vector.broadcast %cst_108 : f32 to vector<1x48xf32>
    %355 = vector.extract_strided_slice %68 {offsets = [1, 0], sizes = [63, 48], strides = [1, 1]} : vector<64x48xf32> to vector<63x48xf32>
    %356 = tpu.concatenate %355, %354 in 0 : vector<63x48xf32>, vector<1x48xf32> -> vector<64x48xf32>
    %cst_109 = arith.constant 0.000000e+00 : f32
    %357 = vector.broadcast %cst_109 : f32 to vector<64x48xf32>
    %358 = arith.select %86, %356, %357 : vector<64x48xi1>, vector<64x48xf32>
    %359 = vector.extract_strided_slice %348 {offsets = [0, 0, 0], sizes = [1, 1, 48], strides = [1, 1, 1]} : vector<3x3x48xf32> to vector<1x1x48xf32>
    %360 = vector.shape_cast %359 : vector<1x1x48xf32> to vector<48xf32>
    %361 = vector.shape_cast %360 : vector<48xf32> to vector<1x48xf32>
    %362 = vector.broadcast %361 : vector<1x48xf32> to vector<64x48xf32>
    %363 = arith.mulf %353, %362 : vector<64x48xf32>
    %364 = vector.extract_strided_slice %348 {offsets = [0, 1, 0], sizes = [1, 1, 48], strides = [1, 1, 1]} : vector<3x3x48xf32> to vector<1x1x48xf32>
    %365 = vector.shape_cast %364 : vector<1x1x48xf32> to vector<48xf32>
    %366 = vector.shape_cast %365 : vector<48xf32> to vector<1x48xf32>
    %367 = vector.broadcast %366 : vector<1x48xf32> to vector<64x48xf32>
    %368 = arith.mulf %68, %367 : vector<64x48xf32>
    %369 = arith.addf %363, %368 : vector<64x48xf32>
    %370 = vector.extract_strided_slice %348 {offsets = [0, 2, 0], sizes = [1, 1, 48], strides = [1, 1, 1]} : vector<3x3x48xf32> to vector<1x1x48xf32>
    %371 = vector.shape_cast %370 : vector<1x1x48xf32> to vector<48xf32>
    %372 = vector.shape_cast %371 : vector<48xf32> to vector<1x48xf32>
    %373 = vector.broadcast %372 : vector<1x48xf32> to vector<64x48xf32>
    %374 = arith.mulf %358, %373 : vector<64x48xf32>
    %375 = arith.addf %369, %374 : vector<64x48xf32>
    %376 = vector.extract_strided_slice %348 {offsets = [1, 0, 0], sizes = [1, 1, 48], strides = [1, 1, 1]} : vector<3x3x48xf32> to vector<1x1x48xf32>
    %377 = vector.shape_cast %376 : vector<1x1x48xf32> to vector<48xf32>
    %378 = vector.shape_cast %377 : vector<48xf32> to vector<1x48xf32>
    %379 = vector.broadcast %378 : vector<1x48xf32> to vector<64x48xf32>
    %380 = arith.mulf %353, %379 : vector<64x48xf32>
    %381 = vector.extract_strided_slice %348 {offsets = [1, 1, 0], sizes = [1, 1, 48], strides = [1, 1, 1]} : vector<3x3x48xf32> to vector<1x1x48xf32>
    %382 = vector.shape_cast %381 : vector<1x1x48xf32> to vector<48xf32>
    %383 = vector.shape_cast %382 : vector<48xf32> to vector<1x48xf32>
    %384 = vector.broadcast %383 : vector<1x48xf32> to vector<64x48xf32>
    %385 = arith.mulf %68, %384 : vector<64x48xf32>
    %386 = arith.addf %380, %385 : vector<64x48xf32>
    %387 = vector.extract_strided_slice %348 {offsets = [1, 2, 0], sizes = [1, 1, 48], strides = [1, 1, 1]} : vector<3x3x48xf32> to vector<1x1x48xf32>
    %388 = vector.shape_cast %387 : vector<1x1x48xf32> to vector<48xf32>
    %389 = vector.shape_cast %388 : vector<48xf32> to vector<1x48xf32>
    %390 = vector.broadcast %389 : vector<1x48xf32> to vector<64x48xf32>
    %391 = arith.mulf %358, %390 : vector<64x48xf32>
    %392 = arith.addf %386, %391 : vector<64x48xf32>
    %393 = vector.extract_strided_slice %348 {offsets = [2, 0, 0], sizes = [1, 1, 48], strides = [1, 1, 1]} : vector<3x3x48xf32> to vector<1x1x48xf32>
    %394 = vector.shape_cast %393 : vector<1x1x48xf32> to vector<48xf32>
    %395 = vector.shape_cast %394 : vector<48xf32> to vector<1x48xf32>
    %396 = vector.broadcast %395 : vector<1x48xf32> to vector<64x48xf32>
    %397 = arith.mulf %353, %396 : vector<64x48xf32>
    %398 = vector.extract_strided_slice %348 {offsets = [2, 1, 0], sizes = [1, 1, 48], strides = [1, 1, 1]} : vector<3x3x48xf32> to vector<1x1x48xf32>
    %399 = vector.shape_cast %398 : vector<1x1x48xf32> to vector<48xf32>
    %400 = vector.shape_cast %399 : vector<48xf32> to vector<1x48xf32>
    %401 = vector.broadcast %400 : vector<1x48xf32> to vector<64x48xf32>
    %402 = arith.mulf %68, %401 : vector<64x48xf32>
    %403 = arith.addf %397, %402 : vector<64x48xf32>
    %404 = vector.extract_strided_slice %348 {offsets = [2, 2, 0], sizes = [1, 1, 48], strides = [1, 1, 1]} : vector<3x3x48xf32> to vector<1x1x48xf32>
    %405 = vector.shape_cast %404 : vector<1x1x48xf32> to vector<48xf32>
    %406 = vector.shape_cast %405 : vector<48xf32> to vector<1x48xf32>
    %407 = vector.broadcast %406 : vector<1x48xf32> to vector<64x48xf32>
    %408 = arith.mulf %358, %407 : vector<64x48xf32>
    %409 = arith.addf %403, %408 : vector<64x48xf32>
    %cst_110 = arith.constant 0.000000e+00 : f32
    %410 = vector.broadcast %cst_110 : f32 to vector<8x48xf32>
    %411 = vector.extract_strided_slice %375 {offsets = [0, 0], sizes = [56, 48], strides = [1, 1]} : vector<64x48xf32> to vector<56x48xf32>
    %412 = tpu.concatenate %410, %411 in 0 : vector<8x48xf32>, vector<56x48xf32> -> vector<64x48xf32>
    %413 = arith.addf %412, %392 : vector<64x48xf32>
    %cst_111 = arith.constant 0.000000e+00 : f32
    %414 = vector.broadcast %cst_111 : f32 to vector<8x48xf32>
    %415 = vector.extract_strided_slice %409 {offsets = [8, 0], sizes = [56, 48], strides = [1, 1]} : vector<64x48xf32> to vector<56x48xf32>
    %416 = tpu.concatenate %415, %414 in 0 : vector<56x48xf32>, vector<8x48xf32> -> vector<64x48xf32>
    %417 = arith.addf %413, %416 : vector<64x48xf32>
    %c3 = arith.constant 3 : index
    %c0_112 = arith.constant 0 : index
    %c0_113 = arith.constant 0 : index
    %c0_114 = arith.constant 0 : index
    %418 = vector.load %arg8[%c3, %c0_112, %c0_113, %c0_114] : memref<6x3x3x48xf32, #tpu.memory_space<vmem>>, vector<1x3x3x48xf32>
    %419 = vector.shape_cast %418 : vector<1x3x3x48xf32> to vector<3x3x48xf32>
    %cst_115 = arith.constant 0.000000e+00 : f32
    %420 = vector.broadcast %cst_115 : f32 to vector<1x48xf32>
    %421 = vector.extract_strided_slice %346 {offsets = [0, 0], sizes = [15, 48], strides = [1, 1]} : vector<16x48xf32> to vector<15x48xf32>
    %422 = tpu.concatenate %420, %421 in 0 : vector<1x48xf32>, vector<15x48xf32> -> vector<16x48xf32>
    %cst_116 = arith.constant 0.000000e+00 : f32
    %423 = vector.broadcast %cst_116 : f32 to vector<16x48xf32>
    %424 = arith.select %91, %422, %423 : vector<16x48xi1>, vector<16x48xf32>
    %cst_117 = arith.constant 0.000000e+00 : f32
    %425 = vector.broadcast %cst_117 : f32 to vector<1x48xf32>
    %426 = vector.extract_strided_slice %346 {offsets = [1, 0], sizes = [15, 48], strides = [1, 1]} : vector<16x48xf32> to vector<15x48xf32>
    %427 = tpu.concatenate %426, %425 in 0 : vector<15x48xf32>, vector<1x48xf32> -> vector<16x48xf32>
    %cst_118 = arith.constant 0.000000e+00 : f32
    %428 = vector.broadcast %cst_118 : f32 to vector<16x48xf32>
    %429 = arith.select %93, %427, %428 : vector<16x48xi1>, vector<16x48xf32>
    %430 = vector.extract_strided_slice %419 {offsets = [0, 0, 0], sizes = [1, 1, 48], strides = [1, 1, 1]} : vector<3x3x48xf32> to vector<1x1x48xf32>
    %431 = vector.shape_cast %430 : vector<1x1x48xf32> to vector<48xf32>
    %432 = vector.shape_cast %431 : vector<48xf32> to vector<1x48xf32>
    %433 = vector.broadcast %432 : vector<1x48xf32> to vector<16x48xf32>
    %434 = arith.mulf %424, %433 : vector<16x48xf32>
    %435 = vector.extract_strided_slice %419 {offsets = [0, 1, 0], sizes = [1, 1, 48], strides = [1, 1, 1]} : vector<3x3x48xf32> to vector<1x1x48xf32>
    %436 = vector.shape_cast %435 : vector<1x1x48xf32> to vector<48xf32>
    %437 = vector.shape_cast %436 : vector<48xf32> to vector<1x48xf32>
    %438 = vector.broadcast %437 : vector<1x48xf32> to vector<16x48xf32>
    %439 = arith.mulf %346, %438 : vector<16x48xf32>
    %440 = arith.addf %434, %439 : vector<16x48xf32>
    %441 = vector.extract_strided_slice %419 {offsets = [0, 2, 0], sizes = [1, 1, 48], strides = [1, 1, 1]} : vector<3x3x48xf32> to vector<1x1x48xf32>
    %442 = vector.shape_cast %441 : vector<1x1x48xf32> to vector<48xf32>
    %443 = vector.shape_cast %442 : vector<48xf32> to vector<1x48xf32>
    %444 = vector.broadcast %443 : vector<1x48xf32> to vector<16x48xf32>
    %445 = arith.mulf %429, %444 : vector<16x48xf32>
    %446 = arith.addf %440, %445 : vector<16x48xf32>
    %447 = vector.extract_strided_slice %419 {offsets = [1, 0, 0], sizes = [1, 1, 48], strides = [1, 1, 1]} : vector<3x3x48xf32> to vector<1x1x48xf32>
    %448 = vector.shape_cast %447 : vector<1x1x48xf32> to vector<48xf32>
    %449 = vector.shape_cast %448 : vector<48xf32> to vector<1x48xf32>
    %450 = vector.broadcast %449 : vector<1x48xf32> to vector<16x48xf32>
    %451 = arith.mulf %424, %450 : vector<16x48xf32>
    %452 = vector.extract_strided_slice %419 {offsets = [1, 1, 0], sizes = [1, 1, 48], strides = [1, 1, 1]} : vector<3x3x48xf32> to vector<1x1x48xf32>
    %453 = vector.shape_cast %452 : vector<1x1x48xf32> to vector<48xf32>
    %454 = vector.shape_cast %453 : vector<48xf32> to vector<1x48xf32>
    %455 = vector.broadcast %454 : vector<1x48xf32> to vector<16x48xf32>
    %456 = arith.mulf %346, %455 : vector<16x48xf32>
    %457 = arith.addf %451, %456 : vector<16x48xf32>
    %458 = vector.extract_strided_slice %419 {offsets = [1, 2, 0], sizes = [1, 1, 48], strides = [1, 1, 1]} : vector<3x3x48xf32> to vector<1x1x48xf32>
    %459 = vector.shape_cast %458 : vector<1x1x48xf32> to vector<48xf32>
    %460 = vector.shape_cast %459 : vector<48xf32> to vector<1x48xf32>
    %461 = vector.broadcast %460 : vector<1x48xf32> to vector<16x48xf32>
    %462 = arith.mulf %429, %461 : vector<16x48xf32>
    %463 = arith.addf %457, %462 : vector<16x48xf32>
    %464 = vector.extract_strided_slice %419 {offsets = [2, 0, 0], sizes = [1, 1, 48], strides = [1, 1, 1]} : vector<3x3x48xf32> to vector<1x1x48xf32>
    %465 = vector.shape_cast %464 : vector<1x1x48xf32> to vector<48xf32>
    %466 = vector.shape_cast %465 : vector<48xf32> to vector<1x48xf32>
    %467 = vector.broadcast %466 : vector<1x48xf32> to vector<16x48xf32>
    %468 = arith.mulf %424, %467 : vector<16x48xf32>
    %469 = vector.extract_strided_slice %419 {offsets = [2, 1, 0], sizes = [1, 1, 48], strides = [1, 1, 1]} : vector<3x3x48xf32> to vector<1x1x48xf32>
    %470 = vector.shape_cast %469 : vector<1x1x48xf32> to vector<48xf32>
    %471 = vector.shape_cast %470 : vector<48xf32> to vector<1x48xf32>
    %472 = vector.broadcast %471 : vector<1x48xf32> to vector<16x48xf32>
    %473 = arith.mulf %346, %472 : vector<16x48xf32>
    %474 = arith.addf %468, %473 : vector<16x48xf32>
    %475 = vector.extract_strided_slice %419 {offsets = [2, 2, 0], sizes = [1, 1, 48], strides = [1, 1, 1]} : vector<3x3x48xf32> to vector<1x1x48xf32>
    %476 = vector.shape_cast %475 : vector<1x1x48xf32> to vector<48xf32>
    %477 = vector.shape_cast %476 : vector<48xf32> to vector<1x48xf32>
    %478 = vector.broadcast %477 : vector<1x48xf32> to vector<16x48xf32>
    %479 = arith.mulf %429, %478 : vector<16x48xf32>
    %480 = arith.addf %474, %479 : vector<16x48xf32>
    %cst_119 = arith.constant 0.000000e+00 : f32
    %481 = vector.broadcast %cst_119 : f32 to vector<4x48xf32>
    %482 = vector.extract_strided_slice %446 {offsets = [0, 0], sizes = [12, 48], strides = [1, 1]} : vector<16x48xf32> to vector<12x48xf32>
    %483 = tpu.concatenate %481, %482 in 0 : vector<4x48xf32>, vector<12x48xf32> -> vector<16x48xf32>
    %484 = arith.addf %483, %463 : vector<16x48xf32>
    %cst_120 = arith.constant 0.000000e+00 : f32
    %485 = vector.broadcast %cst_120 : f32 to vector<4x48xf32>
    %486 = vector.extract_strided_slice %480 {offsets = [4, 0], sizes = [12, 48], strides = [1, 1]} : vector<16x48xf32> to vector<12x48xf32>
    %487 = tpu.concatenate %486, %485 in 0 : vector<12x48xf32>, vector<4x48xf32> -> vector<16x48xf32>
    %488 = arith.addf %484, %487 : vector<16x48xf32>
    %c0_121 = arith.constant 0 : index
    %c0_122 = arith.constant 0 : index
    %489 = vector.load %arg16[%c0_121, %c0_122] : memref<64x16xf32, #tpu.memory_space<vmem>>, vector<64x16xf32>
    %cst_123 = arith.constant dense<0.000000e+00> : vector<64x48xf32>
    %490 = tpu.matmul %489, %488, %cst_123 {dimension_numbers = #tpu.dot_dimension_numbers<[1], [0], [0], [1], [0, 0, 1, 1], [], []>} : vector<64x16xf32>, vector<16x48xf32>, vector<64x48xf32> -> vector<64x48xf32>
    %c1_124 = arith.constant 1 : index
    %c0_125 = arith.constant 0 : index
    %c0_126 = arith.constant 0 : index
    %491 = vector.load %arg9[%c1_124, %c0_125, %c0_126] : memref<3x48x3xf32, #tpu.memory_space<vmem>>, vector<1x48x3xf32>
    %492 = vector.shape_cast %491 : vector<1x48x3xf32> to vector<48x3xf32>
    %c1_127 = arith.constant 1 : index
    %c0_128 = arith.constant 0 : index
    %c0_129 = arith.constant 0 : index
    %493 = vector.load %arg10[%c1_127, %c0_128, %c0_129] : memref<3x48x3xf32, #tpu.memory_space<vmem>>, vector<1x48x3xf32>
    %494 = vector.shape_cast %493 : vector<1x48x3xf32> to vector<48x3xf32>
    %c1_130 = arith.constant 1 : index
    %c0_131 = arith.constant 0 : index
    %c0_132 = arith.constant 0 : index
    %495 = vector.load %arg11[%c1_130, %c0_131, %c0_132] : memref<3x48x3xf32, #tpu.memory_space<vmem>>, vector<1x48x3xf32>
    %496 = vector.shape_cast %495 : vector<1x48x3xf32> to vector<48x3xf32>
    %497 = arith.addf %417, %490 : vector<64x48xf32>
    %cst_133 = arith.constant dense<0.000000e+00> : vector<48xf32>
    %498 = vector.multi_reduction <add>, %417, %cst_133 [0] : vector<64x48xf32> to vector<48xf32>
    %499 = vector.shape_cast %498 : vector<48xf32> to vector<1x48xf32>
    %cst_134 = arith.constant 6.400000e+01 : f32
    %500 = vector.broadcast %cst_134 : f32 to vector<1x48xf32>
    %501 = arith.divf %499, %500 : vector<1x48xf32>
    %cst_135 = arith.constant dense<0.000000e+00> : vector<48xf32>
    %502 = vector.multi_reduction <add>, %490, %cst_135 [0] : vector<64x48xf32> to vector<48xf32>
    %503 = vector.shape_cast %502 : vector<48xf32> to vector<1x48xf32>
    %cst_136 = arith.constant 6.400000e+01 : f32
    %504 = vector.broadcast %cst_136 : f32 to vector<1x48xf32>
    %505 = arith.divf %503, %504 : vector<1x48xf32>
    %506 = arith.addf %501, %505 : vector<1x48xf32>
    %cst_137 = arith.constant dense<0.000000e+00> : vector<1x3xf32>
    %507 = tpu.matmul %506, %492, %cst_137 {dimension_numbers = #tpu.dot_dimension_numbers<[1], [0], [0], [1], [0, 0, 1, 1], [], []>} : vector<1x48xf32>, vector<48x3xf32>, vector<1x3xf32> -> vector<1x3xf32>
    %cst_138 = arith.constant dense<0.000000e+00> : vector<1x3xf32>
    %508 = tpu.matmul %501, %494, %cst_138 {dimension_numbers = #tpu.dot_dimension_numbers<[1], [0], [0], [1], [0, 0, 1, 1], [], []>} : vector<1x48xf32>, vector<48x3xf32>, vector<1x3xf32> -> vector<1x3xf32>
    %cst_139 = arith.constant dense<0.000000e+00> : vector<1x3xf32>
    %509 = tpu.matmul %505, %496, %cst_139 {dimension_numbers = #tpu.dot_dimension_numbers<[1], [0], [0], [1], [0, 0, 1, 1], [], []>} : vector<1x48xf32>, vector<48x3xf32>, vector<1x3xf32> -> vector<1x3xf32>
    %510 = tpu.iota {dimensions = array<i32: 0>} : vector<3x3xi32>
    %511 = tpu.iota {dimensions = array<i32: 1>} : vector<3x3xi32>
    %512 = arith.cmpi eq, %510, %511 : vector<3x3xi32>
    %513 = vector.shape_cast %507 : vector<1x3xf32> to vector<1x3xf32>
    %514 = vector.broadcast %513 : vector<1x3xf32> to vector<3x3xf32>
    %cst_140 = arith.constant 0.000000e+00 : f32
    %515 = vector.broadcast %cst_140 : f32 to vector<3x3xf32>
    %516 = arith.select %512, %514, %515 : vector<3x3xi1>, vector<3x3xf32>
    %cst_141 = arith.constant dense<0.000000e+00> : vector<3xf32>
    %517 = vector.multi_reduction <add>, %516, %cst_141 [1] : vector<3x3xf32> to vector<3xf32>
    %518 = vector.shape_cast %517 : vector<3xf32> to vector<3x1xf32>
    %519 = vector.broadcast %518 : vector<3x1xf32> to vector<3x48xf32>
    %520 = vector.broadcast %501 : vector<1x48xf32> to vector<3x48xf32>
    %521 = arith.mulf %519, %520 : vector<3x48xf32>
    %cst_142 = arith.constant 0.144337565 : f32
    %522 = vector.broadcast %cst_142 : f32 to vector<3x48xf32>
    %523 = arith.mulf %521, %522 : vector<3x48xf32>
    %cst_143 = arith.constant dense<0xFF800000> : vector<48xf32>
    %524 = vector.multi_reduction <maximumf>, %523, %cst_143 [0] : vector<3x48xf32> to vector<48xf32>
    %525 = vector.shape_cast %524 : vector<48xf32> to vector<1x48xf32>
    %526 = vector.broadcast %525 : vector<1x48xf32> to vector<3x48xf32>
    %527 = arith.subf %523, %526 : vector<3x48xf32>
    %528 = math.exp %527 : vector<3x48xf32>
    %cst_144 = arith.constant dense<0.000000e+00> : vector<48xf32>
    %529 = vector.multi_reduction <add>, %528, %cst_144 [0] : vector<3x48xf32> to vector<48xf32>
    %530 = vector.shape_cast %529 : vector<48xf32> to vector<1x48xf32>
    %531 = vector.broadcast %530 : vector<1x48xf32> to vector<3x48xf32>
    %532 = arith.divf %528, %531 : vector<3x48xf32>
    %533 = vector.broadcast %518 : vector<3x1xf32> to vector<3x48xf32>
    %534 = vector.broadcast %505 : vector<1x48xf32> to vector<3x48xf32>
    %535 = arith.mulf %533, %534 : vector<3x48xf32>
    %cst_145 = arith.constant 0.144337565 : f32
    %536 = vector.broadcast %cst_145 : f32 to vector<3x48xf32>
    %537 = arith.mulf %535, %536 : vector<3x48xf32>
    %cst_146 = arith.constant dense<0xFF800000> : vector<48xf32>
    %538 = vector.multi_reduction <maximumf>, %537, %cst_146 [0] : vector<3x48xf32> to vector<48xf32>
    %539 = vector.shape_cast %538 : vector<48xf32> to vector<1x48xf32>
    %540 = vector.broadcast %539 : vector<1x48xf32> to vector<3x48xf32>
    %541 = arith.subf %537, %540 : vector<3x48xf32>
    %542 = math.exp %541 : vector<3x48xf32>
    %cst_147 = arith.constant dense<0.000000e+00> : vector<48xf32>
    %543 = vector.multi_reduction <add>, %542, %cst_147 [0] : vector<3x48xf32> to vector<48xf32>
    %544 = vector.shape_cast %543 : vector<48xf32> to vector<1x48xf32>
    %545 = vector.broadcast %544 : vector<1x48xf32> to vector<3x48xf32>
    %546 = arith.divf %542, %545 : vector<3x48xf32>
    %547 = tpu.iota {dimensions = array<i32: 0>} : vector<3x3xi32>
    %548 = tpu.iota {dimensions = array<i32: 1>} : vector<3x3xi32>
    %549 = arith.cmpi eq, %547, %548 : vector<3x3xi32>
    %550 = vector.shape_cast %508 : vector<1x3xf32> to vector<1x3xf32>
    %551 = vector.broadcast %550 : vector<1x3xf32> to vector<3x3xf32>
    %cst_148 = arith.constant 0.000000e+00 : f32
    %552 = vector.broadcast %cst_148 : f32 to vector<3x3xf32>
    %553 = arith.select %549, %551, %552 : vector<3x3xi1>, vector<3x3xf32>
    %cst_149 = arith.constant dense<0.000000e+00> : vector<3xf32>
    %554 = vector.multi_reduction <add>, %553, %cst_149 [1] : vector<3x3xf32> to vector<3xf32>
    %555 = vector.shape_cast %554 : vector<3xf32> to vector<3x1xf32>
    %556 = vector.broadcast %555 : vector<3x1xf32> to vector<3x48xf32>
    %557 = arith.mulf %532, %556 : vector<3x48xf32>
    %cst_150 = arith.constant dense<0.000000e+00> : vector<48xf32>
    %558 = vector.multi_reduction <add>, %557, %cst_150 [0] : vector<3x48xf32> to vector<48xf32>
    %559 = vector.shape_cast %558 : vector<48xf32> to vector<1x48xf32>
    %cst_151 = arith.constant 5.000000e-01 : f32
    %560 = vector.broadcast %cst_151 : f32 to vector<1x48xf32>
    %561 = arith.mulf %560, %559 : vector<1x48xf32>
    %562 = math.tanh %561 : vector<1x48xf32>
    %cst_152 = arith.constant 5.000000e-01 : f32
    %563 = vector.broadcast %cst_152 : f32 to vector<1x48xf32>
    %564 = arith.mulf %563, %562 : vector<1x48xf32>
    %cst_153 = arith.constant 5.000000e-01 : f32
    %565 = vector.broadcast %cst_153 : f32 to vector<1x48xf32>
    %566 = arith.addf %564, %565 : vector<1x48xf32>
    %567 = tpu.iota {dimensions = array<i32: 0>} : vector<3x3xi32>
    %568 = tpu.iota {dimensions = array<i32: 1>} : vector<3x3xi32>
    %569 = arith.cmpi eq, %567, %568 : vector<3x3xi32>
    %570 = vector.shape_cast %509 : vector<1x3xf32> to vector<1x3xf32>
    %571 = vector.broadcast %570 : vector<1x3xf32> to vector<3x3xf32>
    %cst_154 = arith.constant 0.000000e+00 : f32
    %572 = vector.broadcast %cst_154 : f32 to vector<3x3xf32>
    %573 = arith.select %569, %571, %572 : vector<3x3xi1>, vector<3x3xf32>
    %cst_155 = arith.constant dense<0.000000e+00> : vector<3xf32>
    %574 = vector.multi_reduction <add>, %573, %cst_155 [1] : vector<3x3xf32> to vector<3xf32>
    %575 = vector.shape_cast %574 : vector<3xf32> to vector<3x1xf32>
    %576 = vector.broadcast %575 : vector<3x1xf32> to vector<3x48xf32>
    %577 = arith.mulf %546, %576 : vector<3x48xf32>
    %cst_156 = arith.constant dense<0.000000e+00> : vector<48xf32>
    %578 = vector.multi_reduction <add>, %577, %cst_156 [0] : vector<3x48xf32> to vector<48xf32>
    %579 = vector.shape_cast %578 : vector<48xf32> to vector<1x48xf32>
    %cst_157 = arith.constant 5.000000e-01 : f32
    %580 = vector.broadcast %cst_157 : f32 to vector<1x48xf32>
    %581 = arith.mulf %580, %579 : vector<1x48xf32>
    %582 = math.tanh %581 : vector<1x48xf32>
    %cst_158 = arith.constant 5.000000e-01 : f32
    %583 = vector.broadcast %cst_158 : f32 to vector<1x48xf32>
    %584 = arith.mulf %583, %582 : vector<1x48xf32>
    %cst_159 = arith.constant 5.000000e-01 : f32
    %585 = vector.broadcast %cst_159 : f32 to vector<1x48xf32>
    %586 = arith.addf %584, %585 : vector<1x48xf32>
    %587 = vector.broadcast %566 : vector<1x48xf32> to vector<64x48xf32>
    %588 = arith.mulf %417, %587 : vector<64x48xf32>
    %589 = arith.addf %497, %588 : vector<64x48xf32>
    %590 = vector.broadcast %586 : vector<1x48xf32> to vector<64x48xf32>
    %591 = arith.mulf %490, %590 : vector<64x48xf32>
    %592 = arith.addf %589, %591 : vector<64x48xf32>
    %c4 = arith.constant 4 : index
    %c0_160 = arith.constant 0 : index
    %c0_161 = arith.constant 0 : index
    %c0_162 = arith.constant 0 : index
    %593 = vector.load %arg8[%c4, %c0_160, %c0_161, %c0_162] : memref<6x3x3x48xf32, #tpu.memory_space<vmem>>, vector<1x3x3x48xf32>
    %594 = vector.shape_cast %593 : vector<1x3x3x48xf32> to vector<3x3x48xf32>
    %cst_163 = arith.constant 0.000000e+00 : f32
    %595 = vector.broadcast %cst_163 : f32 to vector<1x48xf32>
    %596 = vector.extract_strided_slice %66 {offsets = [0, 0], sizes = [255, 48], strides = [1, 1]} : vector<256x48xf32> to vector<255x48xf32>
    %597 = tpu.concatenate %595, %596 in 0 : vector<1x48xf32>, vector<255x48xf32> -> vector<256x48xf32>
    %cst_164 = arith.constant 0.000000e+00 : f32
    %598 = vector.broadcast %cst_164 : f32 to vector<256x48xf32>
    %599 = arith.select %77, %597, %598 : vector<256x48xi1>, vector<256x48xf32>
    %cst_165 = arith.constant 0.000000e+00 : f32
    %600 = vector.broadcast %cst_165 : f32 to vector<1x48xf32>
    %601 = vector.extract_strided_slice %66 {offsets = [1, 0], sizes = [255, 48], strides = [1, 1]} : vector<256x48xf32> to vector<255x48xf32>
    %602 = tpu.concatenate %601, %600 in 0 : vector<255x48xf32>, vector<1x48xf32> -> vector<256x48xf32>
    %cst_166 = arith.constant 0.000000e+00 : f32
    %603 = vector.broadcast %cst_166 : f32 to vector<256x48xf32>
    %604 = arith.select %79, %602, %603 : vector<256x48xi1>, vector<256x48xf32>
    %605 = vector.extract_strided_slice %594 {offsets = [0, 0, 0], sizes = [1, 1, 48], strides = [1, 1, 1]} : vector<3x3x48xf32> to vector<1x1x48xf32>
    %606 = vector.shape_cast %605 : vector<1x1x48xf32> to vector<48xf32>
    %607 = vector.shape_cast %606 : vector<48xf32> to vector<1x48xf32>
    %608 = vector.broadcast %607 : vector<1x48xf32> to vector<256x48xf32>
    %609 = arith.mulf %599, %608 : vector<256x48xf32>
    %610 = vector.extract_strided_slice %594 {offsets = [0, 1, 0], sizes = [1, 1, 48], strides = [1, 1, 1]} : vector<3x3x48xf32> to vector<1x1x48xf32>
    %611 = vector.shape_cast %610 : vector<1x1x48xf32> to vector<48xf32>
    %612 = vector.shape_cast %611 : vector<48xf32> to vector<1x48xf32>
    %613 = vector.broadcast %612 : vector<1x48xf32> to vector<256x48xf32>
    %614 = arith.mulf %66, %613 : vector<256x48xf32>
    %615 = arith.addf %609, %614 : vector<256x48xf32>
    %616 = vector.extract_strided_slice %594 {offsets = [0, 2, 0], sizes = [1, 1, 48], strides = [1, 1, 1]} : vector<3x3x48xf32> to vector<1x1x48xf32>
    %617 = vector.shape_cast %616 : vector<1x1x48xf32> to vector<48xf32>
    %618 = vector.shape_cast %617 : vector<48xf32> to vector<1x48xf32>
    %619 = vector.broadcast %618 : vector<1x48xf32> to vector<256x48xf32>
    %620 = arith.mulf %604, %619 : vector<256x48xf32>
    %621 = arith.addf %615, %620 : vector<256x48xf32>
    %622 = vector.extract_strided_slice %594 {offsets = [1, 0, 0], sizes = [1, 1, 48], strides = [1, 1, 1]} : vector<3x3x48xf32> to vector<1x1x48xf32>
    %623 = vector.shape_cast %622 : vector<1x1x48xf32> to vector<48xf32>
    %624 = vector.shape_cast %623 : vector<48xf32> to vector<1x48xf32>
    %625 = vector.broadcast %624 : vector<1x48xf32> to vector<256x48xf32>
    %626 = arith.mulf %599, %625 : vector<256x48xf32>
    %627 = vector.extract_strided_slice %594 {offsets = [1, 1, 0], sizes = [1, 1, 48], strides = [1, 1, 1]} : vector<3x3x48xf32> to vector<1x1x48xf32>
    %628 = vector.shape_cast %627 : vector<1x1x48xf32> to vector<48xf32>
    %629 = vector.shape_cast %628 : vector<48xf32> to vector<1x48xf32>
    %630 = vector.broadcast %629 : vector<1x48xf32> to vector<256x48xf32>
    %631 = arith.mulf %66, %630 : vector<256x48xf32>
    %632 = arith.addf %626, %631 : vector<256x48xf32>
    %633 = vector.extract_strided_slice %594 {offsets = [1, 2, 0], sizes = [1, 1, 48], strides = [1, 1, 1]} : vector<3x3x48xf32> to vector<1x1x48xf32>
    %634 = vector.shape_cast %633 : vector<1x1x48xf32> to vector<48xf32>
    %635 = vector.shape_cast %634 : vector<48xf32> to vector<1x48xf32>
    %636 = vector.broadcast %635 : vector<1x48xf32> to vector<256x48xf32>
    %637 = arith.mulf %604, %636 : vector<256x48xf32>
    %638 = arith.addf %632, %637 : vector<256x48xf32>
    %639 = vector.extract_strided_slice %594 {offsets = [2, 0, 0], sizes = [1, 1, 48], strides = [1, 1, 1]} : vector<3x3x48xf32> to vector<1x1x48xf32>
    %640 = vector.shape_cast %639 : vector<1x1x48xf32> to vector<48xf32>
    %641 = vector.shape_cast %640 : vector<48xf32> to vector<1x48xf32>
    %642 = vector.broadcast %641 : vector<1x48xf32> to vector<256x48xf32>
    %643 = arith.mulf %599, %642 : vector<256x48xf32>
    %644 = vector.extract_strided_slice %594 {offsets = [2, 1, 0], sizes = [1, 1, 48], strides = [1, 1, 1]} : vector<3x3x48xf32> to vector<1x1x48xf32>
    %645 = vector.shape_cast %644 : vector<1x1x48xf32> to vector<48xf32>
    %646 = vector.shape_cast %645 : vector<48xf32> to vector<1x48xf32>
    %647 = vector.broadcast %646 : vector<1x48xf32> to vector<256x48xf32>
    %648 = arith.mulf %66, %647 : vector<256x48xf32>
    %649 = arith.addf %643, %648 : vector<256x48xf32>
    %650 = vector.extract_strided_slice %594 {offsets = [2, 2, 0], sizes = [1, 1, 48], strides = [1, 1, 1]} : vector<3x3x48xf32> to vector<1x1x48xf32>
    %651 = vector.shape_cast %650 : vector<1x1x48xf32> to vector<48xf32>
    %652 = vector.shape_cast %651 : vector<48xf32> to vector<1x48xf32>
    %653 = vector.broadcast %652 : vector<1x48xf32> to vector<256x48xf32>
    %654 = arith.mulf %604, %653 : vector<256x48xf32>
    %655 = arith.addf %649, %654 : vector<256x48xf32>
    %cst_167 = arith.constant 0.000000e+00 : f32
    %656 = vector.broadcast %cst_167 : f32 to vector<16x48xf32>
    %657 = vector.extract_strided_slice %621 {offsets = [0, 0], sizes = [240, 48], strides = [1, 1]} : vector<256x48xf32> to vector<240x48xf32>
    %658 = tpu.concatenate %656, %657 in 0 : vector<16x48xf32>, vector<240x48xf32> -> vector<256x48xf32>
    %659 = arith.addf %658, %638 : vector<256x48xf32>
    %cst_168 = arith.constant 0.000000e+00 : f32
    %660 = vector.broadcast %cst_168 : f32 to vector<16x48xf32>
    %661 = vector.extract_strided_slice %655 {offsets = [16, 0], sizes = [240, 48], strides = [1, 1]} : vector<256x48xf32> to vector<240x48xf32>
    %662 = tpu.concatenate %661, %660 in 0 : vector<240x48xf32>, vector<16x48xf32> -> vector<256x48xf32>
    %663 = arith.addf %659, %662 : vector<256x48xf32>
    %c5 = arith.constant 5 : index
    %c0_169 = arith.constant 0 : index
    %c0_170 = arith.constant 0 : index
    %c0_171 = arith.constant 0 : index
    %664 = vector.load %arg8[%c5, %c0_169, %c0_170, %c0_171] : memref<6x3x3x48xf32, #tpu.memory_space<vmem>>, vector<1x3x3x48xf32>
    %665 = vector.shape_cast %664 : vector<1x3x3x48xf32> to vector<3x3x48xf32>
    %cst_172 = arith.constant 0.000000e+00 : f32
    %666 = vector.broadcast %cst_172 : f32 to vector<1x48xf32>
    %667 = vector.extract_strided_slice %592 {offsets = [0, 0], sizes = [63, 48], strides = [1, 1]} : vector<64x48xf32> to vector<63x48xf32>
    %668 = tpu.concatenate %666, %667 in 0 : vector<1x48xf32>, vector<63x48xf32> -> vector<64x48xf32>
    %cst_173 = arith.constant 0.000000e+00 : f32
    %669 = vector.broadcast %cst_173 : f32 to vector<64x48xf32>
    %670 = arith.select %84, %668, %669 : vector<64x48xi1>, vector<64x48xf32>
    %cst_174 = arith.constant 0.000000e+00 : f32
    %671 = vector.broadcast %cst_174 : f32 to vector<1x48xf32>
    %672 = vector.extract_strided_slice %592 {offsets = [1, 0], sizes = [63, 48], strides = [1, 1]} : vector<64x48xf32> to vector<63x48xf32>
    %673 = tpu.concatenate %672, %671 in 0 : vector<63x48xf32>, vector<1x48xf32> -> vector<64x48xf32>
    %cst_175 = arith.constant 0.000000e+00 : f32
    %674 = vector.broadcast %cst_175 : f32 to vector<64x48xf32>
    %675 = arith.select %86, %673, %674 : vector<64x48xi1>, vector<64x48xf32>
    %676 = vector.extract_strided_slice %665 {offsets = [0, 0, 0], sizes = [1, 1, 48], strides = [1, 1, 1]} : vector<3x3x48xf32> to vector<1x1x48xf32>
    %677 = vector.shape_cast %676 : vector<1x1x48xf32> to vector<48xf32>
    %678 = vector.shape_cast %677 : vector<48xf32> to vector<1x48xf32>
    %679 = vector.broadcast %678 : vector<1x48xf32> to vector<64x48xf32>
    %680 = arith.mulf %670, %679 : vector<64x48xf32>
    %681 = vector.extract_strided_slice %665 {offsets = [0, 1, 0], sizes = [1, 1, 48], strides = [1, 1, 1]} : vector<3x3x48xf32> to vector<1x1x48xf32>
    %682 = vector.shape_cast %681 : vector<1x1x48xf32> to vector<48xf32>
    %683 = vector.shape_cast %682 : vector<48xf32> to vector<1x48xf32>
    %684 = vector.broadcast %683 : vector<1x48xf32> to vector<64x48xf32>
    %685 = arith.mulf %592, %684 : vector<64x48xf32>
    %686 = arith.addf %680, %685 : vector<64x48xf32>
    %687 = vector.extract_strided_slice %665 {offsets = [0, 2, 0], sizes = [1, 1, 48], strides = [1, 1, 1]} : vector<3x3x48xf32> to vector<1x1x48xf32>
    %688 = vector.shape_cast %687 : vector<1x1x48xf32> to vector<48xf32>
    %689 = vector.shape_cast %688 : vector<48xf32> to vector<1x48xf32>
    %690 = vector.broadcast %689 : vector<1x48xf32> to vector<64x48xf32>
    %691 = arith.mulf %675, %690 : vector<64x48xf32>
    %692 = arith.addf %686, %691 : vector<64x48xf32>
    %693 = vector.extract_strided_slice %665 {offsets = [1, 0, 0], sizes = [1, 1, 48], strides = [1, 1, 1]} : vector<3x3x48xf32> to vector<1x1x48xf32>
    %694 = vector.shape_cast %693 : vector<1x1x48xf32> to vector<48xf32>
    %695 = vector.shape_cast %694 : vector<48xf32> to vector<1x48xf32>
    %696 = vector.broadcast %695 : vector<1x48xf32> to vector<64x48xf32>
    %697 = arith.mulf %670, %696 : vector<64x48xf32>
    %698 = vector.extract_strided_slice %665 {offsets = [1, 1, 0], sizes = [1, 1, 48], strides = [1, 1, 1]} : vector<3x3x48xf32> to vector<1x1x48xf32>
    %699 = vector.shape_cast %698 : vector<1x1x48xf32> to vector<48xf32>
    %700 = vector.shape_cast %699 : vector<48xf32> to vector<1x48xf32>
    %701 = vector.broadcast %700 : vector<1x48xf32> to vector<64x48xf32>
    %702 = arith.mulf %592, %701 : vector<64x48xf32>
    %703 = arith.addf %697, %702 : vector<64x48xf32>
    %704 = vector.extract_strided_slice %665 {offsets = [1, 2, 0], sizes = [1, 1, 48], strides = [1, 1, 1]} : vector<3x3x48xf32> to vector<1x1x48xf32>
    %705 = vector.shape_cast %704 : vector<1x1x48xf32> to vector<48xf32>
    %706 = vector.shape_cast %705 : vector<48xf32> to vector<1x48xf32>
    %707 = vector.broadcast %706 : vector<1x48xf32> to vector<64x48xf32>
    %708 = arith.mulf %675, %707 : vector<64x48xf32>
    %709 = arith.addf %703, %708 : vector<64x48xf32>
    %710 = vector.extract_strided_slice %665 {offsets = [2, 0, 0], sizes = [1, 1, 48], strides = [1, 1, 1]} : vector<3x3x48xf32> to vector<1x1x48xf32>
    %711 = vector.shape_cast %710 : vector<1x1x48xf32> to vector<48xf32>
    %712 = vector.shape_cast %711 : vector<48xf32> to vector<1x48xf32>
    %713 = vector.broadcast %712 : vector<1x48xf32> to vector<64x48xf32>
    %714 = arith.mulf %670, %713 : vector<64x48xf32>
    %715 = vector.extract_strided_slice %665 {offsets = [2, 1, 0], sizes = [1, 1, 48], strides = [1, 1, 1]} : vector<3x3x48xf32> to vector<1x1x48xf32>
    %716 = vector.shape_cast %715 : vector<1x1x48xf32> to vector<48xf32>
    %717 = vector.shape_cast %716 : vector<48xf32> to vector<1x48xf32>
    %718 = vector.broadcast %717 : vector<1x48xf32> to vector<64x48xf32>
    %719 = arith.mulf %592, %718 : vector<64x48xf32>
    %720 = arith.addf %714, %719 : vector<64x48xf32>
    %721 = vector.extract_strided_slice %665 {offsets = [2, 2, 0], sizes = [1, 1, 48], strides = [1, 1, 1]} : vector<3x3x48xf32> to vector<1x1x48xf32>
    %722 = vector.shape_cast %721 : vector<1x1x48xf32> to vector<48xf32>
    %723 = vector.shape_cast %722 : vector<48xf32> to vector<1x48xf32>
    %724 = vector.broadcast %723 : vector<1x48xf32> to vector<64x48xf32>
    %725 = arith.mulf %675, %724 : vector<64x48xf32>
    %726 = arith.addf %720, %725 : vector<64x48xf32>
    %cst_176 = arith.constant 0.000000e+00 : f32
    %727 = vector.broadcast %cst_176 : f32 to vector<8x48xf32>
    %728 = vector.extract_strided_slice %692 {offsets = [0, 0], sizes = [56, 48], strides = [1, 1]} : vector<64x48xf32> to vector<56x48xf32>
    %729 = tpu.concatenate %727, %728 in 0 : vector<8x48xf32>, vector<56x48xf32> -> vector<64x48xf32>
    %730 = arith.addf %729, %709 : vector<64x48xf32>
    %cst_177 = arith.constant 0.000000e+00 : f32
    %731 = vector.broadcast %cst_177 : f32 to vector<8x48xf32>
    %732 = vector.extract_strided_slice %726 {offsets = [8, 0], sizes = [56, 48], strides = [1, 1]} : vector<64x48xf32> to vector<56x48xf32>
    %733 = tpu.concatenate %732, %731 in 0 : vector<56x48xf32>, vector<8x48xf32> -> vector<64x48xf32>
    %734 = arith.addf %730, %733 : vector<64x48xf32>
    %c0_178 = arith.constant 0 : index
    %c0_179 = arith.constant 0 : index
    %735 = vector.load %arg17[%c0_178, %c0_179] : memref<256x64xf32, #tpu.memory_space<vmem>>, vector<256x64xf32>
    %cst_180 = arith.constant dense<0.000000e+00> : vector<256x48xf32>
    %736 = tpu.matmul %735, %734, %cst_180 {dimension_numbers = #tpu.dot_dimension_numbers<[1], [0], [0], [1], [0, 0, 1, 1], [], []>} : vector<256x64xf32>, vector<64x48xf32>, vector<256x48xf32> -> vector<256x48xf32>
    %c2_181 = arith.constant 2 : index
    %c0_182 = arith.constant 0 : index
    %c0_183 = arith.constant 0 : index
    %737 = vector.load %arg9[%c2_181, %c0_182, %c0_183] : memref<3x48x3xf32, #tpu.memory_space<vmem>>, vector<1x48x3xf32>
    %738 = vector.shape_cast %737 : vector<1x48x3xf32> to vector<48x3xf32>
    %c2_184 = arith.constant 2 : index
    %c0_185 = arith.constant 0 : index
    %c0_186 = arith.constant 0 : index
    %739 = vector.load %arg10[%c2_184, %c0_185, %c0_186] : memref<3x48x3xf32, #tpu.memory_space<vmem>>, vector<1x48x3xf32>
    %740 = vector.shape_cast %739 : vector<1x48x3xf32> to vector<48x3xf32>
    %c2_187 = arith.constant 2 : index
    %c0_188 = arith.constant 0 : index
    %c0_189 = arith.constant 0 : index
    %741 = vector.load %arg11[%c2_187, %c0_188, %c0_189] : memref<3x48x3xf32, #tpu.memory_space<vmem>>, vector<1x48x3xf32>
    %742 = vector.shape_cast %741 : vector<1x48x3xf32> to vector<48x3xf32>
    %743 = arith.addf %663, %736 : vector<256x48xf32>
    %cst_190 = arith.constant dense<0.000000e+00> : vector<48xf32>
    %744 = vector.multi_reduction <add>, %663, %cst_190 [0] : vector<256x48xf32> to vector<48xf32>
    %745 = vector.shape_cast %744 : vector<48xf32> to vector<1x48xf32>
    %cst_191 = arith.constant 2.560000e+02 : f32
    %746 = vector.broadcast %cst_191 : f32 to vector<1x48xf32>
    %747 = arith.divf %745, %746 : vector<1x48xf32>
    %cst_192 = arith.constant dense<0.000000e+00> : vector<48xf32>
    %748 = vector.multi_reduction <add>, %736, %cst_192 [0] : vector<256x48xf32> to vector<48xf32>
    %749 = vector.shape_cast %748 : vector<48xf32> to vector<1x48xf32>
    %cst_193 = arith.constant 2.560000e+02 : f32
    %750 = vector.broadcast %cst_193 : f32 to vector<1x48xf32>
    %751 = arith.divf %749, %750 : vector<1x48xf32>
    %752 = arith.addf %747, %751 : vector<1x48xf32>
    %cst_194 = arith.constant dense<0.000000e+00> : vector<1x3xf32>
    %753 = tpu.matmul %752, %738, %cst_194 {dimension_numbers = #tpu.dot_dimension_numbers<[1], [0], [0], [1], [0, 0, 1, 1], [], []>} : vector<1x48xf32>, vector<48x3xf32>, vector<1x3xf32> -> vector<1x3xf32>
    %cst_195 = arith.constant dense<0.000000e+00> : vector<1x3xf32>
    %754 = tpu.matmul %747, %740, %cst_195 {dimension_numbers = #tpu.dot_dimension_numbers<[1], [0], [0], [1], [0, 0, 1, 1], [], []>} : vector<1x48xf32>, vector<48x3xf32>, vector<1x3xf32> -> vector<1x3xf32>
    %cst_196 = arith.constant dense<0.000000e+00> : vector<1x3xf32>
    %755 = tpu.matmul %751, %742, %cst_196 {dimension_numbers = #tpu.dot_dimension_numbers<[1], [0], [0], [1], [0, 0, 1, 1], [], []>} : vector<1x48xf32>, vector<48x3xf32>, vector<1x3xf32> -> vector<1x3xf32>
    %756 = tpu.iota {dimensions = array<i32: 0>} : vector<3x3xi32>
    %757 = tpu.iota {dimensions = array<i32: 1>} : vector<3x3xi32>
    %758 = arith.cmpi eq, %756, %757 : vector<3x3xi32>
    %759 = vector.shape_cast %753 : vector<1x3xf32> to vector<1x3xf32>
    %760 = vector.broadcast %759 : vector<1x3xf32> to vector<3x3xf32>
    %cst_197 = arith.constant 0.000000e+00 : f32
    %761 = vector.broadcast %cst_197 : f32 to vector<3x3xf32>
    %762 = arith.select %758, %760, %761 : vector<3x3xi1>, vector<3x3xf32>
    %cst_198 = arith.constant dense<0.000000e+00> : vector<3xf32>
    %763 = vector.multi_reduction <add>, %762, %cst_198 [1] : vector<3x3xf32> to vector<3xf32>
    %764 = vector.shape_cast %763 : vector<3xf32> to vector<3x1xf32>
    %765 = vector.broadcast %764 : vector<3x1xf32> to vector<3x48xf32>
    %766 = vector.broadcast %747 : vector<1x48xf32> to vector<3x48xf32>
    %767 = arith.mulf %765, %766 : vector<3x48xf32>
    %cst_199 = arith.constant 0.144337565 : f32
    %768 = vector.broadcast %cst_199 : f32 to vector<3x48xf32>
    %769 = arith.mulf %767, %768 : vector<3x48xf32>
    %cst_200 = arith.constant dense<0xFF800000> : vector<48xf32>
    %770 = vector.multi_reduction <maximumf>, %769, %cst_200 [0] : vector<3x48xf32> to vector<48xf32>
    %771 = vector.shape_cast %770 : vector<48xf32> to vector<1x48xf32>
    %772 = vector.broadcast %771 : vector<1x48xf32> to vector<3x48xf32>
    %773 = arith.subf %769, %772 : vector<3x48xf32>
    %774 = math.exp %773 : vector<3x48xf32>
    %cst_201 = arith.constant dense<0.000000e+00> : vector<48xf32>
    %775 = vector.multi_reduction <add>, %774, %cst_201 [0] : vector<3x48xf32> to vector<48xf32>
    %776 = vector.shape_cast %775 : vector<48xf32> to vector<1x48xf32>
    %777 = vector.broadcast %776 : vector<1x48xf32> to vector<3x48xf32>
    %778 = arith.divf %774, %777 : vector<3x48xf32>
    %779 = vector.broadcast %764 : vector<3x1xf32> to vector<3x48xf32>
    %780 = vector.broadcast %751 : vector<1x48xf32> to vector<3x48xf32>
    %781 = arith.mulf %779, %780 : vector<3x48xf32>
    %cst_202 = arith.constant 0.144337565 : f32
    %782 = vector.broadcast %cst_202 : f32 to vector<3x48xf32>
    %783 = arith.mulf %781, %782 : vector<3x48xf32>
    %cst_203 = arith.constant dense<0xFF800000> : vector<48xf32>
    %784 = vector.multi_reduction <maximumf>, %783, %cst_203 [0] : vector<3x48xf32> to vector<48xf32>
    %785 = vector.shape_cast %784 : vector<48xf32> to vector<1x48xf32>
    %786 = vector.broadcast %785 : vector<1x48xf32> to vector<3x48xf32>
    %787 = arith.subf %783, %786 : vector<3x48xf32>
    %788 = math.exp %787 : vector<3x48xf32>
    %cst_204 = arith.constant dense<0.000000e+00> : vector<48xf32>
    %789 = vector.multi_reduction <add>, %788, %cst_204 [0] : vector<3x48xf32> to vector<48xf32>
    %790 = vector.shape_cast %789 : vector<48xf32> to vector<1x48xf32>
    %791 = vector.broadcast %790 : vector<1x48xf32> to vector<3x48xf32>
    %792 = arith.divf %788, %791 : vector<3x48xf32>
    %793 = tpu.iota {dimensions = array<i32: 0>} : vector<3x3xi32>
    %794 = tpu.iota {dimensions = array<i32: 1>} : vector<3x3xi32>
    %795 = arith.cmpi eq, %793, %794 : vector<3x3xi32>
    %796 = vector.shape_cast %754 : vector<1x3xf32> to vector<1x3xf32>
    %797 = vector.broadcast %796 : vector<1x3xf32> to vector<3x3xf32>
    %cst_205 = arith.constant 0.000000e+00 : f32
    %798 = vector.broadcast %cst_205 : f32 to vector<3x3xf32>
    %799 = arith.select %795, %797, %798 : vector<3x3xi1>, vector<3x3xf32>
    %cst_206 = arith.constant dense<0.000000e+00> : vector<3xf32>
    %800 = vector.multi_reduction <add>, %799, %cst_206 [1] : vector<3x3xf32> to vector<3xf32>
    %801 = vector.shape_cast %800 : vector<3xf32> to vector<3x1xf32>
    %802 = vector.broadcast %801 : vector<3x1xf32> to vector<3x48xf32>
    %803 = arith.mulf %778, %802 : vector<3x48xf32>
    %cst_207 = arith.constant dense<0.000000e+00> : vector<48xf32>
    %804 = vector.multi_reduction <add>, %803, %cst_207 [0] : vector<3x48xf32> to vector<48xf32>
    %805 = vector.shape_cast %804 : vector<48xf32> to vector<1x48xf32>
    %cst_208 = arith.constant 5.000000e-01 : f32
    %806 = vector.broadcast %cst_208 : f32 to vector<1x48xf32>
    %807 = arith.mulf %806, %805 : vector<1x48xf32>
    %808 = math.tanh %807 : vector<1x48xf32>
    %cst_209 = arith.constant 5.000000e-01 : f32
    %809 = vector.broadcast %cst_209 : f32 to vector<1x48xf32>
    %810 = arith.mulf %809, %808 : vector<1x48xf32>
    %cst_210 = arith.constant 5.000000e-01 : f32
    %811 = vector.broadcast %cst_210 : f32 to vector<1x48xf32>
    %812 = arith.addf %810, %811 : vector<1x48xf32>
    %813 = tpu.iota {dimensions = array<i32: 0>} : vector<3x3xi32>
    %814 = tpu.iota {dimensions = array<i32: 1>} : vector<3x3xi32>
    %815 = arith.cmpi eq, %813, %814 : vector<3x3xi32>
    %816 = vector.shape_cast %755 : vector<1x3xf32> to vector<1x3xf32>
    %817 = vector.broadcast %816 : vector<1x3xf32> to vector<3x3xf32>
    %cst_211 = arith.constant 0.000000e+00 : f32
    %818 = vector.broadcast %cst_211 : f32 to vector<3x3xf32>
    %819 = arith.select %815, %817, %818 : vector<3x3xi1>, vector<3x3xf32>
    %cst_212 = arith.constant dense<0.000000e+00> : vector<3xf32>
    %820 = vector.multi_reduction <add>, %819, %cst_212 [1] : vector<3x3xf32> to vector<3xf32>
    %821 = vector.shape_cast %820 : vector<3xf32> to vector<3x1xf32>
    %822 = vector.broadcast %821 : vector<3x1xf32> to vector<3x48xf32>
    %823 = arith.mulf %792, %822 : vector<3x48xf32>
    %cst_213 = arith.constant dense<0.000000e+00> : vector<48xf32>
    %824 = vector.multi_reduction <add>, %823, %cst_213 [0] : vector<3x48xf32> to vector<48xf32>
    %825 = vector.shape_cast %824 : vector<48xf32> to vector<1x48xf32>
    %cst_214 = arith.constant 5.000000e-01 : f32
    %826 = vector.broadcast %cst_214 : f32 to vector<1x48xf32>
    %827 = arith.mulf %826, %825 : vector<1x48xf32>
    %828 = math.tanh %827 : vector<1x48xf32>
    %cst_215 = arith.constant 5.000000e-01 : f32
    %829 = vector.broadcast %cst_215 : f32 to vector<1x48xf32>
    %830 = arith.mulf %829, %828 : vector<1x48xf32>
    %cst_216 = arith.constant 5.000000e-01 : f32
    %831 = vector.broadcast %cst_216 : f32 to vector<1x48xf32>
    %832 = arith.addf %830, %831 : vector<1x48xf32>
    %833 = vector.broadcast %812 : vector<1x48xf32> to vector<256x48xf32>
    %834 = arith.mulf %663, %833 : vector<256x48xf32>
    %835 = arith.addf %743, %834 : vector<256x48xf32>
    %836 = vector.broadcast %832 : vector<1x48xf32> to vector<256x48xf32>
    %837 = arith.mulf %736, %836 : vector<256x48xf32>
    %838 = arith.addf %835, %837 : vector<256x48xf32>
    %c0_217 = arith.constant 0 : index
    %c0_218 = arith.constant 0 : index
    %c0_219 = arith.constant 0 : index
    %839 = vector.load %arg18[%c0_217, %c0_218, %c0_219] : memref<1x256x48xf32, #tpu.memory_space<vmem>>, vector<1x256x48xf32>
    %840 = vector.shape_cast %839 : vector<1x256x48xf32> to vector<256x48xf32>
    %841 = vector.shape_cast %838 : vector<256x48xf32> to vector<1x256x48xf32>
    tpu.vector_store %arg18[%c0_217, %c0_218, %c0_219], %841 {strides = array<i32>} : memref<1x256x48xf32, #tpu.memory_space<vmem>>, vector<1x256x48xf32>,
    %cst_220 = arith.constant 5.000000e-01 : f32
    %842 = vector.broadcast %cst_220 : f32 to vector<256x48xf32>
    %843 = arith.mulf %842, %838 : vector<256x48xf32>
    %844 = math.tanh %843 : vector<256x48xf32>
    %cst_221 = arith.constant 5.000000e-01 : f32
    %845 = vector.broadcast %cst_221 : f32 to vector<256x48xf32>
    %846 = arith.mulf %845, %844 : vector<256x48xf32>
    %cst_222 = arith.constant 5.000000e-01 : f32
    %847 = vector.broadcast %cst_222 : f32 to vector<256x48xf32>
    %848 = arith.addf %846, %847 : vector<256x48xf32>
    %849 = arith.mulf %1, %848 : vector<256x48xf32>
    %c0_223 = arith.constant 0 : index
    %c0_224 = arith.constant 0 : index
    %c0_225 = arith.constant 0 : index
    %850 = vector.load %arg19[%c0_223, %c0_224, %c0_225] : memref<1x256x48xf32, #tpu.memory_space<vmem>>, vector<1x256x48xf32>
    %851 = vector.shape_cast %850 : vector<1x256x48xf32> to vector<256x48xf32>
    %852 = vector.shape_cast %849 : vector<256x48xf32> to vector<1x256x48xf32>
    tpu.vector_store %arg19[%c0_223, %c0_224, %c0_225], %852 {strides = array<i32>} : memref<1x256x48xf32, #tpu.memory_space<vmem>>, vector<1x256x48xf32>,
    return
  }
  func.func @transform_0(%arg0: i32) -> (i32, i32, i32) {
    %c0_i32 = arith.constant 0 : i32
    %c0_i32_0 = arith.constant 0 : i32
    %c0_i32_1 = arith.constant 0 : i32
    return %arg0, %c0_i32, %c0_i32_0 : i32, i32, i32
  }
  func.func @transform_1(%arg0: i32) -> (i32, i32) {
    %c0_i32 = arith.constant 0 : i32
    %c0_i32_0 = arith.constant 0 : i32
    %c0_i32_1 = arith.constant 0 : i32
    return %c0_i32, %c0_i32_0 : i32, i32
  }
  func.func @transform_2(%arg0: i32) -> (i32, i32) {
    %c0_i32 = arith.constant 0 : i32
    %c0_i32_0 = arith.constant 0 : i32
    %c0_i32_1 = arith.constant 0 : i32
    return %c0_i32, %c0_i32_0 : i32, i32
  }
  func.func @transform_3(%arg0: i32) -> (i32, i32) {
    %c0_i32 = arith.constant 0 : i32
    %c0_i32_0 = arith.constant 0 : i32
    %c0_i32_1 = arith.constant 0 : i32
    return %c0_i32, %c0_i32_0 : i32, i32
  }
  func.func @transform_4(%arg0: i32) -> (i32, i32) {
    %c0_i32 = arith.constant 0 : i32
    %c0_i32_0 = arith.constant 0 : i32
    %c0_i32_1 = arith.constant 0 : i32
    return %c0_i32, %c0_i32_0 : i32, i32
  }
  func.func @transform_5(%arg0: i32) -> (i32, i32) {
    %c0_i32 = arith.constant 0 : i32
    %c0_i32_0 = arith.constant 0 : i32
    %c0_i32_1 = arith.constant 0 : i32
    return %c0_i32, %c0_i32_0 : i32, i32
  }
  func.func @transform_6(%arg0: i32) -> (i32, i32) {
    %c0_i32 = arith.constant 0 : i32
    %c0_i32_0 = arith.constant 0 : i32
    %c0_i32_1 = arith.constant 0 : i32
    return %c0_i32, %c0_i32_0 : i32, i32
  }
  func.func @transform_7(%arg0: i32) -> (i32, i32, i32, i32) {
    %c0_i32 = arith.constant 0 : i32
    %c0_i32_0 = arith.constant 0 : i32
    %c0_i32_1 = arith.constant 0 : i32
    %c0_i32_2 = arith.constant 0 : i32
    %c0_i32_3 = arith.constant 0 : i32
    return %c0_i32, %c0_i32_0, %c0_i32_1, %c0_i32_2 : i32, i32, i32, i32
  }
  func.func @transform_8(%arg0: i32) -> (i32, i32, i32) {
    %c0_i32 = arith.constant 0 : i32
    %c0_i32_0 = arith.constant 0 : i32
    %c0_i32_1 = arith.constant 0 : i32
    %c0_i32_2 = arith.constant 0 : i32
    return %c0_i32, %c0_i32_0, %c0_i32_1 : i32, i32, i32
  }
  func.func @transform_9(%arg0: i32) -> (i32, i32, i32) {
    %c0_i32 = arith.constant 0 : i32
    %c0_i32_0 = arith.constant 0 : i32
    %c0_i32_1 = arith.constant 0 : i32
    %c0_i32_2 = arith.constant 0 : i32
    return %c0_i32, %c0_i32_0, %c0_i32_1 : i32, i32, i32
  }
  func.func @transform_10(%arg0: i32) -> (i32, i32, i32) {
    %c0_i32 = arith.constant 0 : i32
    %c0_i32_0 = arith.constant 0 : i32
    %c0_i32_1 = arith.constant 0 : i32
    %c0_i32_2 = arith.constant 0 : i32
    return %c0_i32, %c0_i32_0, %c0_i32_1 : i32, i32, i32
  }
  func.func @transform_11(%arg0: i32) -> (i32, i32) {
    %c0_i32 = arith.constant 0 : i32
    %c0_i32_0 = arith.constant 0 : i32
    %c0_i32_1 = arith.constant 0 : i32
    return %c0_i32, %c0_i32_0 : i32, i32
  }
  func.func @transform_12(%arg0: i32) -> (i32, i32) {
    %c0_i32 = arith.constant 0 : i32
    %c0_i32_0 = arith.constant 0 : i32
    %c0_i32_1 = arith.constant 0 : i32
    return %c0_i32, %c0_i32_0 : i32, i32
  }
  func.func @transform_13(%arg0: i32) -> (i32, i32) {
    %c0_i32 = arith.constant 0 : i32
    %c0_i32_0 = arith.constant 0 : i32
    %c0_i32_1 = arith.constant 0 : i32
    return %c0_i32, %c0_i32_0 : i32, i32
  }
  func.func @transform_14(%arg0: i32) -> (i32, i32) {
    %c0_i32 = arith.constant 0 : i32
    %c0_i32_0 = arith.constant 0 : i32
    %c0_i32_1 = arith.constant 0 : i32
    return %c0_i32, %c0_i32_0 : i32, i32
  }
  func.func @transform_15(%arg0: i32) -> (i32, i32) {
    %c0_i32 = arith.constant 0 : i32
    %c0_i32_0 = arith.constant 0 : i32
    %c0_i32_1 = arith.constant 0 : i32
    return %c0_i32, %c0_i32_0 : i32, i32
  }
  func.func @transform_16(%arg0: i32) -> (i32, i32) {
    %c0_i32 = arith.constant 0 : i32
    %c0_i32_0 = arith.constant 0 : i32
    %c0_i32_1 = arith.constant 0 : i32
    return %c0_i32, %c0_i32_0 : i32, i32
  }
  func.func @transform_17(%arg0: i32) -> (i32, i32, i32) {
    %c0_i32 = arith.constant 0 : i32
    %c0_i32_0 = arith.constant 0 : i32
    %c0_i32_1 = arith.constant 0 : i32
    return %arg0, %c0_i32, %c0_i32_0 : i32, i32, i32
  }
  func.func @transform_18(%arg0: i32) -> (i32, i32, i32) {
    %c0_i32 = arith.constant 0 : i32
    %c0_i32_0 = arith.constant 0 : i32
    %c0_i32_1 = arith.constant 0 : i32
    return %arg0, %c0_i32, %c0_i32_0 : i32, i32, i32
  }
}

</mosaic_0001>

<llo_original>
// kernel: lpam_head_forward.1
$region0: #{lpam_head_forward.1}
  #allocation0 [shape = 'u32[]', space=smem, size = 0x4, offset = 0x4, fixed_abs, tag = 'smem constant byte address 0x4 - core index']
  #allocation1 [shape = 'u32[72,128]{1,0:T(1,128)}', space=vmem, size = 0x9000, scoped, tag = 'internal scratch']
  %s0 = inlined_call_operand.hbm [shape: f32[2,256,48], index: 0, kind: input, shape index: {}]
  %s1 = inlined_call_operand.vmem [shape: f32[48,12], index: 1, kind: input, shape index: {}]
  %s2 = inlined_call_operand.vmem [shape: f32[12,12], index: 2, kind: input, shape index: {}]
  %s3 = inlined_call_operand.vmem [shape: f32[1,12], index: 3, kind: input, shape index: {}]
  %s4 = inlined_call_operand.vmem [shape: f32[12,12], index: 4, kind: input, shape index: {}]
  %s5 = inlined_call_operand.vmem [shape: f32[1,12], index: 5, kind: input, shape index: {}]
  %s6 = inlined_call_operand.vmem [shape: f32[12,48], index: 6, kind: input, shape index: {}]
  %s7 = inlined_call_operand.vmem [shape: f32[6,3,3,48], index: 7, kind: input, shape index: {}]
  %s8 = inlined_call_operand.vmem [shape: f32[3,48,3], index: 8, kind: input, shape index: {}]
  %s9 = inlined_call_operand.vmem [shape: f32[3,48,3], index: 9, kind: input, shape index: {}]
  %s10 = inlined_call_operand.vmem [shape: f32[3,48,3], index: 10, kind: input, shape index: {}]
  %s11 = inlined_call_operand.vmem [shape: f32[64,256], index: 11, kind: input, shape index: {}]
  %s12 = inlined_call_operand.vmem [shape: f32[16,256], index: 12, kind: input, shape index: {}]
  %s13 = inlined_call_operand.vmem [shape: f32[8,256], index: 13, kind: input, shape index: {}]
  %s14 = inlined_call_operand.vmem [shape: f32[16,8], index: 14, kind: input, shape index: {}]
  %s15 = inlined_call_operand.vmem [shape: f32[64,16], index: 15, kind: input, shape index: {}]
  %s16 = inlined_call_operand.vmem [shape: f32[256,64], index: 16, kind: input, shape index: {}]
  %s17 = inlined_call_operand.hbm [shape: f32[2,256,48], index: 17, kind: output, shape index: {0}]
  %s18 = inlined_call_operand.hbm [shape: f32[2,256,48], index: 18, kind: output, shape index: {1}]
  %19 = xla_tuple %s17, %s18
  %s20 = sld [smem:[#allocation0]]
  $region113: #{lpam_head_forward.1} parent=0
    _
  %s22 = ssub.s32 1, %s20
  %s23 = scalar_select 0, %s22, %s20
  $region1: #{lpam_head_forward.1} parent=0
    #allocation2 [shape = 'u8[262144]{0}', space=vmem, size = 0x40000, scoped, tag = 'input window, operand 0']
    #allocation3 [shape = 's32[2]{0}', space=sflag, size = 0x8, scoped, tag = 'scoped memory for lpam_head_forward.1']
    #allocation4 [shape = 's32[2]{0}', space=sflag, size = 0x8, scoped, tag = 'scoped memory for lpam_head_forward.1']
    #allocation5 [shape = 'u8[262144]{0}', space=vmem, size = 0x40000, scoped, tag = 'output window, operand 0']
    #allocation6 [shape = 'u8[262144]{0}', space=vmem, size = 0x40000, scoped, tag = 'output window, operand 1']
    #allocation7 [shape = 's32[2]{0}', space=sflag, size = 0x8, scoped, tag = 'scoped memory for lpam_head_forward.1']
    %24 = vsyncpa [#allocation3], 0
    %s25 = scalar_lea.sflag [#allocation3], 1
    %26 = vsyncpa %s25, 0
    %27 = vsyncpa [#allocation4], 0
    %s28 = scalar_lea.sflag [#allocation4], 1
    %29 = vsyncpa %s28, 0
    %30 = vsyncpa [#allocation7], 0
    %s31 = scalar_lea.sflag [#allocation7], 1
    %32 = vsyncpa %s31, 0
    loop: start=0, step=1, limit=4
    $region2: #{lpam_head_forward.1} parent=1 // loop_pre_header
      _
    $region3: #{lpam_head_forward.1} parent=1 // loop_header
      %s34 = sphi 0, %s38
      %p35 = scmp.ge.s32.totalorder %s34, 4
      %s44 = sphi 0, %s46
      %s47 = sphi 0, %s44
      %s48 = sphi 0, %s47
      %s64 = sphi 0, %s48
      %s68 = sphi 0, %s68
      %s70 = sphi 0, %s68
      %s71 = sphi 0, %s70
      %s85 = sphi 0, %s71
      %s89 = sphi 0, %s89
      %s91 = sphi 0, %s89
      %s92 = sphi 0, %s91
      %s106 = sphi 0, %s92
      %s110 = sphi 0, %s110
      %s112 = sphi 0, %s110
      %s113 = sphi 0, %s112
      %s127 = sphi 0, %s113
      %s131 = sphi 0, %s131
      %s133 = sphi 0, %s131
      %s134 = sphi 0, %s133
      %s148 = sphi 0, %s134
      %s152 = sphi 0, %s152
      %s154 = sphi 0, %s152
      %s155 = sphi 0, %s154
      %s169 = sphi 0, %s155
      %s173 = sphi 0, %s173
      %s175 = sphi 0, %s173
      %s176 = sphi 0, %s175
      %s190 = sphi 0, %s176
      %s194 = sphi 0, %s194
      %s196 = sphi 0, %s194
      %s197 = sphi 0, %s196
      %s211 = sphi 0, %s197
      %s215 = sphi 0, %s215
      %s217 = sphi 0, %s215
      %s218 = sphi 0, %s217
      %s232 = sphi 0, %s218
      %s236 = sphi 0, %s236
      %s238 = sphi 0, %s236
      %s239 = sphi 0, %s238
      %s253 = sphi 0, %s239
      %s257 = sphi 0, %s257
      %s259 = sphi 0, %s257
      %s260 = sphi 0, %s259
      %s274 = sphi 0, %s260
      %s278 = sphi 0, %s278
      %s280 = sphi 0, %s278
      %s281 = sphi 0, %s280
      %s295 = sphi 0, %s281
      %s299 = sphi 0, %s299
      %s301 = sphi 0, %s299
      %s302 = sphi 0, %s301
      %s316 = sphi 0, %s302
      %s320 = sphi 0, %s320
      %s322 = sphi 0, %s320
      %s323 = sphi 0, %s322
      %s337 = sphi 0, %s323
      %s341 = sphi 0, %s341
      %s343 = sphi 0, %s341
      %s344 = sphi 0, %s343
      %s358 = sphi 0, %s344
      %s362 = sphi 0, %s362
      %s364 = sphi 0, %s362
      %s365 = sphi 0, %s364
      %s379 = sphi 0, %s365
      %s383 = sphi 0, %s383
      %s385 = sphi 0, %s383
      %s386 = sphi 0, %s385
      %s400 = sphi 0, %s386
      %s406 = sphi 0, %s408
      %s409 = sphi 0, %s406
      %s410 = sphi 0, %s409
      %s426 = sphi 0, %s410
      %s432 = sphi 0, %s434
      %s435 = sphi 0, %s432
      %s436 = sphi 0, %s435
      %s452 = sphi 0, %s436
    $region4: #{lpam_head_forward.1} parent=1 // loop_header_branch
      %37 = sbr.rel (%p35) target = $region8
    $region5: #{lpam_head_forward.1} parent=1 // loop_body
      %s39 = ssub.s32 %s34, 1
      %s40 = ssub.s32 %s34, 2
      %s41 = sadd.s32 %s34, 1
      %s42 = ssub.s32 %s34, %s41
      %p43 = scmp.eq.s32.totalorder %s42, 0
      %s45 = sadd.s32 %s44, 1
      %s46 = scalar_select %p43, %s44, %s45
      %p49 = pneg %p43
      %p50 = scmp.eq.s32.totalorder %s34, 1
      %p51 = por %p49, %p50
      %p52 = scmp.ne.s32.totalorder %s44, %s47
      %p53 = scmp.eq.s32.totalorder %s34, 0
      %p54 = por %p52, %p53
      %p55 = scmp.ne.s32.totalorder %s44, %s47
      %p56 = scmp.eq.s32.totalorder %s39, 1
      %p57 = por %p55, %p56
      %p58 = scmp.ne.s32.totalorder %s47, %s48
      %p59 = scmp.eq.s32.totalorder %s39, 0
      %p60 = por %p58, %p59
      %p61 = scmp.ne.s32.totalorder %s47, %s48
      %p62 = scmp.eq.s32.totalorder %s40, 1
      %p63 = por %p61, %p62
      %p65 = scmp.ne.s32.totalorder %s48, %s64
      %p66 = scmp.eq.s32.totalorder %s40, 0
      %p67 = por %p65, %p66
      %s69 = sadd.s32 %s68, 1
      %p72 = scmp.eq.s32.totalorder %s34, 1
      %p73 = scmp.ne.s32.totalorder %s68, %s70
      %p74 = scmp.eq.s32.totalorder %s34, 0
      %p75 = por %p73, %p74
      %p76 = scmp.ne.s32.totalorder %s68, %s70
      %p77 = scmp.eq.s32.totalorder %s39, 1
      %p78 = por %p76, %p77
      %p79 = scmp.ne.s32.totalorder %s70, %s71
      %p80 = scmp.eq.s32.totalorder %s39, 0
      %p81 = por %p79, %p80
      %p82 = scmp.ne.s32.totalorder %s70, %s71
      %p83 = scmp.eq.s32.totalorder %s40, 1
      %p84 = por %p82, %p83
      %p86 = scmp.ne.s32.totalorder %s71, %s85
      %p87 = scmp.eq.s32.totalorder %s40, 0
      %p88 = por %p86, %p87
      %s90 = sadd.s32 %s89, 1
      %p93 = scmp.eq.s32.totalorder %s34, 1
      %p94 = scmp.ne.s32.totalorder %s89, %s91
      %p95 = scmp.eq.s32.totalorder %s34, 0
      %p96 = por %p94, %p95
      %p97 = scmp.ne.s32.totalorder %s89, %s91
      %p98 = scmp.eq.s32.totalorder %s39, 1
      %p99 = por %p97, %p98
      %p100 = scmp.ne.s32.totalorder %s91, %s92
      %p101 = scmp.eq.s32.totalorder %s39, 0
      %p102 = por %p100, %p101
      %p103 = scmp.ne.s32.totalorder %s91, %s92
      %p104 = scmp.eq.s32.totalorder %s40, 1
      %p105 = por %p103, %p104
      %p107 = scmp.ne.s32.totalorder %s92, %s106
      %p108 = scmp.eq.s32.totalorder %s40, 0
      %p109 = por %p107, %p108
      %s111 = sadd.s32 %s110, 1
      %p114 = scmp.eq.s32.totalorder %s34, 1
      %p115 = scmp.ne.s32.totalorder %s110, %s112
      %p116 = scmp.eq.s32.totalorder %s34, 0
      %p117 = por %p115, %p116
      %p118 = scmp.ne.s32.totalorder %s110, %s112
      %p119 = scmp.eq.s32.totalorder %s39, 1
      %p120 = por %p118, %p119
      %p121 = scmp.ne.s32.totalorder %s112, %s113
      %p122 = scmp.eq.s32.totalorder %s39, 0
      %p123 = por %p121, %p122
      %p124 = scmp.ne.s32.totalorder %s112, %s113
      %p125 = scmp.eq.s32.totalorder %s40, 1
      %p126 = por %p124, %p125
      %p128 = scmp.ne.s32.totalorder %s113, %s127
      %p129 = scmp.eq.s32.totalorder %s40, 0
      %p130 = por %p128, %p129
      %s132 = sadd.s32 %s131, 1
      %p135 = scmp.eq.s32.totalorder %s34, 1
      %p136 = scmp.ne.s32.totalorder %s131, %s133
      %p137 = scmp.eq.s32.totalorder %s34, 0
      %p138 = por %p136, %p137
      %p139 = scmp.ne.s32.totalorder %s131, %s133
      %p140 = scmp.eq.s32.totalorder %s39, 1
      %p141 = por %p139, %p140
      %p142 = scmp.ne.s32.totalorder %s133, %s134
      %p143 = scmp.eq.s32.totalorder %s39, 0
      %p144 = por %p142, %p143
      %p145 = scmp.ne.s32.totalorder %s133, %s134
      %p146 = scmp.eq.s32.totalorder %s40, 1
      %p147 = por %p145, %p146
      %p149 = scmp.ne.s32.totalorder %s134, %s148
      %p150 = scmp.eq.s32.totalorder %s40, 0
      %p151 = por %p149, %p150
      %s153 = sadd.s32 %s152, 1
      %p156 = scmp.eq.s32.totalorder %s34, 1
      %p157 = scmp.ne.s32.totalorder %s152, %s154
      %p158 = scmp.eq.s32.totalorder %s34, 0
      %p159 = por %p157, %p158
      %p160 = scmp.ne.s32.totalorder %s152, %s154
      %p161 = scmp.eq.s32.totalorder %s39, 1
      %p162 = por %p160, %p161
      %p163 = scmp.ne.s32.totalorder %s154, %s155
      %p164 = scmp.eq.s32.totalorder %s39, 0
      %p165 = por %p163, %p164
      %p166 = scmp.ne.s32.totalorder %s154, %s155
      %p167 = scmp.eq.s32.totalorder %s40, 1
      %p168 = por %p166, %p167
      %p170 = scmp.ne.s32.totalorder %s155, %s169
      %p171 = scmp.eq.s32.totalorder %s40, 0
      %p172 = por %p170, %p171
      %s174 = sadd.s32 %s173, 1
      %p177 = scmp.eq.s32.totalorder %s34, 1
      %p178 = scmp.ne.s32.totalorder %s173, %s175
      %p179 = scmp.eq.s32.totalorder %s34, 0
      %p180 = por %p178, %p179
      %p181 = scmp.ne.s32.totalorder %s173, %s175
      %p182 = scmp.eq.s32.totalorder %s39, 1
      %p183 = por %p181, %p182
      %p184 = scmp.ne.s32.totalorder %s175, %s176
      %p185 = scmp.eq.s32.totalorder %s39, 0
      %p186 = por %p184, %p185
      %p187 = scmp.ne.s32.totalorder %s175, %s176
      %p188 = scmp.eq.s32.totalorder %s40, 1
      %p189 = por %p187, %p188
      %p191 = scmp.ne.s32.totalorder %s176, %s190
      %p192 = scmp.eq.s32.totalorder %s40, 0
      %p193 = por %p191, %p192
      %s195 = sadd.s32 %s194, 1
      %p198 = scmp.eq.s32.totalorder %s34, 1
      %p199 = scmp.ne.s32.totalorder %s194, %s196
      %p200 = scmp.eq.s32.totalorder %s34, 0
      %p201 = por %p199, %p200
      %p202 = scmp.ne.s32.totalorder %s194, %s196
      %p203 = scmp.eq.s32.totalorder %s39, 1
      %p204 = por %p202, %p203
      %p205 = scmp.ne.s32.totalorder %s196, %s197
      %p206 = scmp.eq.s32.totalorder %s39, 0
      %p207 = por %p205, %p206
      %p208 = scmp.ne.s32.totalorder %s196, %s197
      %p209 = scmp.eq.s32.totalorder %s40, 1
      %p210 = por %p208, %p209
      %p212 = scmp.ne.s32.totalorder %s197, %s211
      %p213 = scmp.eq.s32.totalorder %s40, 0
      %p214 = por %p212, %p213
      %s216 = sadd.s32 %s215, 1
      %p219 = scmp.eq.s32.totalorder %s34, 1
      %p220 = scmp.ne.s32.totalorder %s215, %s217
      %p221 = scmp.eq.s32.totalorder %s34, 0
      %p222 = por %p220, %p221
      %p223 = scmp.ne.s32.totalorder %s215, %s217
      %p224 = scmp.eq.s32.totalorder %s39, 1
      %p225 = por %p223, %p224
      %p226 = scmp.ne.s32.totalorder %s217, %s218
      %p227 = scmp.eq.s32.totalorder %s39, 0
      %p228 = por %p226, %p227
      %p229 = scmp.ne.s32.totalorder %s217, %s218
      %p230 = scmp.eq.s32.totalorder %s40, 1
      %p231 = por %p229, %p230
      %p233 = scmp.ne.s32.totalorder %s218, %s232
      %p234 = scmp.eq.s32.totalorder %s40, 0
      %p235 = por %p233, %p234
      %s237 = sadd.s32 %s236, 1
      %p240 = scmp.eq.s32.totalorder %s34, 1
      %p241 = scmp.ne.s32.totalorder %s236, %s238
      %p242 = scmp.eq.s32.totalorder %s34, 0
      %p243 = por %p241, %p242
      %p244 = scmp.ne.s32.totalorder %s236, %s238
      %p245 = scmp.eq.s32.totalorder %s39, 1
      %p246 = por %p244, %p245
      %p247 = scmp.ne.s32.totalorder %s238, %s239
      %p248 = scmp.eq.s32.totalorder %s39, 0
      %p249 = por %p247, %p248
      %p250 = scmp.ne.s32.totalorder %s238, %s239
      %p251 = scmp.eq.s32.totalorder %s40, 1
      %p252 = por %p250, %p251
      %p254 = scmp.ne.s32.totalorder %s239, %s253
      %p255 = scmp.eq.s32.totalorder %s40, 0
      %p256 = por %p254, %p255
      %s258 = sadd.s32 %s257, 1
      %p261 = scmp.eq.s32.totalorder %s34, 1
      %p262 = scmp.ne.s32.totalorder %s257, %s259
      %p263 = scmp.eq.s32.totalorder %s34, 0
      %p264 = por %p262, %p263
      %p265 = scmp.ne.s32.totalorder %s257, %s259
      %p266 = scmp.eq.s32.totalorder %s39, 1
      %p267 = por %p265, %p266
      %p268 = scmp.ne.s32.totalorder %s259, %s260
      %p269 = scmp.eq.s32.totalorder %s39, 0
      %p270 = por %p268, %p269
      %p271 = scmp.ne.s32.totalorder %s259, %s260
      %p272 = scmp.eq.s32.totalorder %s40, 1
      %p273 = por %p271, %p272
      %p275 = scmp.ne.s32.totalorder %s260, %s274
      %p276 = scmp.eq.s32.totalorder %s40, 0
      %p277 = por %p275, %p276
      %s279 = sadd.s32 %s278, 1
      %p282 = scmp.eq.s32.totalorder %s34, 1
      %p283 = scmp.ne.s32.totalorder %s278, %s280
      %p284 = scmp.eq.s32.totalorder %s34, 0
      %p285 = por %p283, %p284
      %p286 = scmp.ne.s32.totalorder %s278, %s280
      %p287 = scmp.eq.s32.totalorder %s39, 1
      %p288 = por %p286, %p287
      %p289 = scmp.ne.s32.totalorder %s280, %s281
      %p290 = scmp.eq.s32.totalorder %s39, 0
      %p291 = por %p289, %p290
      %p292 = scmp.ne.s32.totalorder %s280, %s281
      %p293 = scmp.eq.s32.totalorder %s40, 1
      %p294 = por %p292, %p293
      %p296 = scmp.ne.s32.totalorder %s281, %s295
      %p297 = scmp.eq.s32.totalorder %s40, 0
      %p298 = por %p296, %p297
      %s300 = sadd.s32 %s299, 1
      %p303 = scmp.eq.s32.totalorder %s34, 1
      %p304 = scmp.ne.s32.totalorder %s299, %s301
      %p305 = scmp.eq.s32.totalorder %s34, 0
      %p306 = por %p304, %p305
      %p307 = scmp.ne.s32.totalorder %s299, %s301
      %p308 = scmp.eq.s32.totalorder %s39, 1
      %p309 = por %p307, %p308
      %p310 = scmp.ne.s32.totalorder %s301, %s302
      %p311 = scmp.eq.s32.totalorder %s39, 0
      %p312 = por %p310, %p311
      %p313 = scmp.ne.s32.totalorder %s301, %s302
      %p314 = scmp.eq.s32.totalorder %s40, 1
      %p315 = por %p313, %p314
      %p317 = scmp.ne.s32.totalorder %s302, %s316
      %p318 = scmp.eq.s32.totalorder %s40, 0
      %p319 = por %p317, %p318
      %s321 = sadd.s32 %s320, 1
      %p324 = scmp.eq.s32.totalorder %s34, 1
      %p325 = scmp.ne.s32.totalorder %s320, %s322
      %p326 = scmp.eq.s32.totalorder %s34, 0
      %p327 = por %p325, %p326
      %p328 = scmp.ne.s32.totalorder %s320, %s322
      %p329 = scmp.eq.s32.totalorder %s39, 1
      %p330 = por %p328, %p329
      %p331 = scmp.ne.s32.totalorder %s322, %s323
      %p332 = scmp.eq.s32.totalorder %s39, 0
      %p333 = por %p331, %p332
      %p334 = scmp.ne.s32.totalorder %s322, %s323
      %p335 = scmp.eq.s32.totalorder %s40, 1
      %p336 = por %p334, %p335
      %p338 = scmp.ne.s32.totalorder %s323, %s337
      %p339 = scmp.eq.s32.totalorder %s40, 0
      %p340 = por %p338, %p339
      %s342 = sadd.s32 %s341, 1
      %p345 = scmp.eq.s32.totalorder %s34, 1
      %p346 = scmp.ne.s32.totalorder %s341, %s343
      %p347 = scmp.eq.s32.totalorder %s34, 0
      %p348 = por %p346, %p347
      %p349 = scmp.ne.s32.totalorder %s341, %s343
      %p350 = scmp.eq.s32.totalorder %s39, 1
      %p351 = por %p349, %p350
      %p352 = scmp.ne.s32.totalorder %s343, %s344
      %p353 = scmp.eq.s32.totalorder %s39, 0
      %p354 = por %p352, %p353
      %p355 = scmp.ne.s32.totalorder %s343, %s344
      %p356 = scmp.eq.s32.totalorder %s40, 1
      %p357 = por %p355, %p356
      %p359 = scmp.ne.s32.totalorder %s344, %s358
      %p360 = scmp.eq.s32.totalorder %s40, 0
      %p361 = por %p359, %p360
      %s363 = sadd.s32 %s362, 1
      %p366 = scmp.eq.s32.totalorder %s34, 1
      %p367 = scmp.ne.s32.totalorder %s362, %s364
      %p368 = scmp.eq.s32.totalorder %s34, 0
      %p369 = por %p367, %p368
      %p370 = scmp.ne.s32.totalorder %s362, %s364
      %p371 = scmp.eq.s32.totalorder %s39, 1
      %p372 = por %p370, %p371
      %p373 = scmp.ne.s32.totalorder %s364, %s365
      %p374 = scmp.eq.s32.totalorder %s39, 0
      %p375 = por %p373, %p374
      %p376 = scmp.ne.s32.totalorder %s364, %s365
      %p377 = scmp.eq.s32.totalorder %s40, 1
      %p378 = por %p376, %p377
      %p380 = scmp.ne.s32.totalorder %s365, %s379
      %p381 = scmp.eq.s32.totalorder %s40, 0
      %p382 = por %p380, %p381
      %s384 = sadd.s32 %s383, 1
      %p387 = scmp.eq.s32.totalorder %s34, 1
      %p388 = scmp.ne.s32.totalorder %s383, %s385
      %p389 = scmp.eq.s32.totalorder %s34, 0
      %p390 = por %p388, %p389
      %p391 = scmp.ne.s32.totalorder %s383, %s385
      %p392 = scmp.eq.s32.totalorder %s39, 1
      %p393 = por %p391, %p392
      %p394 = scmp.ne.s32.totalorder %s385, %s386
      %p395 = scmp.eq.s32.totalorder %s39, 0
      %p396 = por %p394, %p395
      %p397 = scmp.ne.s32.totalorder %s385, %s386
      %p398 = scmp.eq.s32.totalorder %s40, 1
      %p399 = por %p397, %p398
      %p401 = scmp.ne.s32.totalorder %s386, %s400
      %p402 = scmp.eq.s32.totalorder %s40, 0
      %p403 = por %p401, %p402
      %s404 = ssub.s32 %s34, %s41
      %p405 = scmp.eq.s32.totalorder %s404, 0
      %s407 = sadd.s32 %s406, 1
      %s408 = scalar_select %p405, %s406, %s407
      %p411 = pneg %p405
      %p412 = scmp.eq.s32.totalorder %s34, 1
      %p413 = por %p411, %p412
      %p414 = scmp.ne.s32.totalorder %s406, %s409
      %p415 = scmp.eq.s32.totalorder %s34, 0
      %p416 = por %p414, %p415
      %p417 = scmp.ne.s32.totalorder %s406, %s409
      %p418 = scmp.eq.s32.totalorder %s39, 1
      %p419 = por %p417, %p418
      %p420 = scmp.ne.s32.totalorder %s409, %s410
      %p421 = scmp.eq.s32.totalorder %s39, 0
      %p422 = por %p420, %p421
      %p423 = scmp.ne.s32.totalorder %s409, %s410
      %p424 = scmp.eq.s32.totalorder %s40, 1
      %p425 = por %p423, %p424
      %p427 = scmp.ne.s32.totalorder %s410, %s426
      %p428 = scmp.eq.s32.totalorder %s40, 0
      %p429 = por %p427, %p428
      %s430 = ssub.s32 %s34, %s41
      %p431 = scmp.eq.s32.totalorder %s430, 0
      %s433 = sadd.s32 %s432, 1
      %s434 = scalar_select %p431, %s432, %s433
      %p437 = pneg %p431
      %p438 = scmp.eq.s32.totalorder %s34, 1
      %p439 = por %p437, %p438
      %p440 = scmp.ne.s32.totalorder %s432, %s435
      %p441 = scmp.eq.s32.totalorder %s34, 0
      %p442 = por %p440, %p441
      %p443 = scmp.ne.s32.totalorder %s432, %s435
      %p444 = scmp.eq.s32.totalorder %s39, 1
      %p445 = por %p443, %p444
      %p446 = scmp.ne.s32.totalorder %s435, %s436
      %p447 = scmp.eq.s32.totalorder %s39, 0
      %p448 = por %p446, %p447
      %p449 = scmp.ne.s32.totalorder %s435, %s436
      %p450 = scmp.eq.s32.totalorder %s40, 1
      %p451 = por %p449, %p450
      %p453 = scmp.ne.s32.totalorder %s436, %s452
      %p454 = scmp.eq.s32.totalorder %s40, 0
      %p455 = por %p453, %p454
      %p456 = scmp.le.s32.totalorder 1, %s34
      %p457 = scmp.lt.s32.totalorder %s34, 3
      %p458 = pnand %p456, %p457
      %p459 = pneg %p458
      // Predicated region
      $region9: #{lpam_head_forward.1} parent=5 // pred_check
        _
      $region10: #{lpam_head_forward.1} parent=5 // pred_check_branch
        %461 = sbr.rel (%p458) target = $region12
      $region11: #{lpam_head_forward.1} parent=5 // pred_region
        %s462 = ssub.s32 %s34, 1
        // Predicated region
        $region13: #{lpam_head_forward.1} parent=11 // pred_check
          %p463 = pneg %p81
        $region14: #{lpam_head_forward.1} parent=11 // pred_check_branch
          %465 = sbr.rel (%p463) target = $region16
        $region15: #{lpam_head_forward.1} parent=11 // pred_region
          _
        $region16: #{lpam_head_forward.1} parent=11 // pred_fallthru
          _
        // Predicated region
        $region17: #{lpam_head_forward.1} parent=11 // pred_check
          %p466 = pneg %p102
        $region18: #{lpam_head_forward.1} parent=11 // pred_check_branch
          %468 = sbr.rel (%p466) target = $region20
        $region19: #{lpam_head_forward.1} parent=11 // pred_region
          _
        $region20: #{lpam_head_forward.1} parent=11 // pred_fallthru
          _
        // Predicated region
        $region21: #{lpam_head_forward.1} parent=11 // pred_check
          %p469 = pneg %p123
        $region22: #{lpam_head_forward.1} parent=11 // pred_check_branch
          %471 = sbr.rel (%p469) target = $region24
        $region23: #{lpam_head_forward.1} parent=11 // pred_region
          _
        $region24: #{lpam_head_forward.1} parent=11 // pred_fallthru
          _
        // Predicated region
        $region25: #{lpam_head_forward.1} parent=11 // pred_check
          %p472 = pneg %p144
        $region26: #{lpam_head_forward.1} parent=11 // pred_check_branch
          %474 = sbr.rel (%p472) target = $region28
        $region27: #{lpam_head_forward.1} parent=11 // pred_region
          _
        $region28: #{lpam_head_forward.1} parent=11 // pred_fallthru
          _
        // Predicated region
        $region29: #{lpam_head_forward.1} parent=11 // pred_check
          %p475 = pneg %p165
        $region30: #{lpam_head_forward.1} parent=11 // pred_check_branch
          %477 = sbr.rel (%p475) target = $region32
        $region31: #{lpam_head_forward.1} parent=11 // pred_region
          _
        $region32: #{lpam_head_forward.1} parent=11 // pred_fallthru
          _
        // Predicated region
        $region33: #{lpam_head_forward.1} parent=11 // pred_check
          %p478 = pneg %p186
        $region34: #{lpam_head_forward.1} parent=11 // pred_check_branch
          %480 = sbr.rel (%p478) target = $region36
        $region35: #{lpam_head_forward.1} parent=11 // pred_region
          _
        $region36: #{lpam_head_forward.1} parent=11 // pred_fallthru
          _
        // Predicated region
        $region37: #{lpam_head_forward.1} parent=11 // pred_check
          %p481 = pneg %p207
        $region38: #{lpam_head_forward.1} parent=11 // pred_check_branch
          %483 = sbr.rel (%p481) target = $region40
        $region39: #{lpam_head_forward.1} parent=11 // pred_region
          _
        $region40: #{lpam_head_forward.1} parent=11 // pred_fallthru
          _
        // Predicated region
        $region41: #{lpam_head_forward.1} parent=11 // pred_check
          %p484 = pneg %p228
        $region42: #{lpam_head_forward.1} parent=11 // pred_check_branch
          %486 = sbr.rel (%p484) target = $region44
        $region43: #{lpam_head_forward.1} parent=11 // pred_region
          _
        $region44: #{lpam_head_forward.1} parent=11 // pred_fallthru
          _
        // Predicated region
        $region45: #{lpam_head_forward.1} parent=11 // pred_check
          %p487 = pneg %p249
        $region46: #{lpam_head_forward.1} parent=11 // pred_check_branch
          %489 = sbr.rel (%p487) target = $region48
        $region47: #{lpam_head_forward.1} parent=11 // pred_region
          _
        $region48: #{lpam_head_forward.1} parent=11 // pred_fallthru
          _
        // Predicated region
        $region49: #{lpam_head_forward.1} parent=11 // pred_check
          %p490 = pneg %p270
        $region50: #{lpam_head_forward.1} parent=11 // pred_check_branch
          %492 = sbr.rel (%p490) target = $region52
        $region51: #{lpam_head_forward.1} parent=11 // pred_region
          _
        $region52: #{lpam_head_forward.1} parent=11 // pred_fallthru
          _
        // Predicated region
        $region53: #{lpam_head_forward.1} parent=11 // pred_check
          %p493 = pneg %p291
        $region54: #{lpam_head_forward.1} parent=11 // pred_check_branch
          %495 = sbr.rel (%p493) target = $region56
        $region55: #{lpam_head_forward.1} parent=11 // pred_region
          _
        $region56: #{lpam_head_forward.1} parent=11 // pred_fallthru
          _
        // Predicated region
        $region57: #{lpam_head_forward.1} parent=11 // pred_check
          %p496 = pneg %p312
        $region58: #{lpam_head_forward.1} parent=11 // pred_check_branch
          %498 = sbr.rel (%p496) target = $region60
        $region59: #{lpam_head_forward.1} parent=11 // pred_region
          _
        $region60: #{lpam_head_forward.1} parent=11 // pred_fallthru
          _
        // Predicated region
        $region61: #{lpam_head_forward.1} parent=11 // pred_check
          %p499 = pneg %p333
        $region62: #{lpam_head_forward.1} parent=11 // pred_check_branch
          %501 = sbr.rel (%p499) target = $region64
        $region63: #{lpam_head_forward.1} parent=11 // pred_region
          _
        $region64: #{lpam_head_forward.1} parent=11 // pred_fallthru
          _
        // Predicated region
        $region65: #{lpam_head_forward.1} parent=11 // pred_check
          %p502 = pneg %p354
        $region66: #{lpam_head_forward.1} parent=11 // pred_check_branch
          %504 = sbr.rel (%p502) target = $region68
        $region67: #{lpam_head_forward.1} parent=11 // pred_region
          _
        $region68: #{lpam_head_forward.1} parent=11 // pred_fallthru
          _
        // Predicated region
        $region69: #{lpam_head_forward.1} parent=11 // pred_check
          %p505 = pneg %p375
        $region70: #{lpam_head_forward.1} parent=11 // pred_check_branch
          %507 = sbr.rel (%p505) target = $region72
        $region71: #{lpam_head_forward.1} parent=11 // pred_region
          _
        $region72: #{lpam_head_forward.1} parent=11 // pred_fallthru
          _
        // Predicated region
        $region73: #{lpam_head_forward.1} parent=11 // pred_check
          %p508 = pneg %p396
        $region74: #{lpam_head_forward.1} parent=11 // pred_check_branch
          %510 = sbr.rel (%p508) target = $region76
        $region75: #{lpam_head_forward.1} parent=11 // pred_region
          _
        $region76: #{lpam_head_forward.1} parent=11 // pred_fallthru
          _
      $region12: #{lpam_head_forward.1} parent=5 // pred_fallthru
        _
      %p511 = scmp.lt.s32.totalorder %s34, 2
      // Predicated region
      $region77: #{lpam_head_forward.1} parent=5 // pred_check
        %p512 = pneg %p511
      $region78: #{lpam_head_forward.1} parent=5 // pred_check_branch
        %514 = sbr.rel (%p512) target = $region80
      $region79: #{lpam_head_forward.1} parent=5 // pred_region
        // Predicated region
        $region81: #{lpam_head_forward.1} parent=79 // pred_check
          %p515 = pneg %p54
        $region82: #{lpam_head_forward.1} parent=79 // pred_check_branch
          %517 = sbr.rel (%p515) target = $region84
        $region83: #{lpam_head_forward.1} parent=79 // pred_region
          %s518 = sand.u32 %s44, 1
          %s519 = scalar_lea.sflag [#allocation3], %s518
          %s520 = sand.u32 %s44, 1
          %s521 = smul.addr %s520, 256
          %s522 = scalar_lea.vmem [#allocation2], %s521
          %524 = vsyncadd %s519, 0
          %s525 = smul.addr %s34, 32
          %s526 = smul.addr %s525, 8
          %s527 = scalar_lea.hbm %s0, %s526
          %s528 = sshll.u32 %s527, 4
          %s529 = int_to_ptr.hbm [resolvable:$true] %s528
          %s530 = sshll.u32 %s522, 4
          %s531 = int_to_ptr.vmem [resolvable:$true] %s530
          %536 = dma.hbm_to_vmem [thread:$0]  %s529, 4096, %s531, %s519, 128, 128, 8
        $region84: #{lpam_head_forward.1} parent=79 // pred_fallthru
          _
      $region80: #{lpam_head_forward.1} parent=5 // pred_fallthru
        _
      %p537 = scmp.le.s32.totalorder 1, %s34
      %p538 = scmp.lt.s32.totalorder %s34, 3
      %p539 = pnand %p537, %p538
      %p540 = pneg %p539
      // Predicated region
      $region85: #{lpam_head_forward.1} parent=5 // pred_check
        _
      $region86: #{lpam_head_forward.1} parent=5 // pred_check_branch
        %542 = sbr.rel (%p539) target = $region88
      $region87: #{lpam_head_forward.1} parent=5 // pred_region
        %s543 = ssub.s32 %s34, 1
        %s544 = sand.u32 %s47, 1
        %s545 = scalar_lea.sflag [#allocation3], %s544
        %s546 = sand.u32 %s47, 1
        %s547 = smul.addr %s546, 256
        %s548 = scalar_lea.vmem [#allocation2], %s547
        // Predicated region
        $region89: #{lpam_head_forward.1} parent=87 // pred_check
          %p549 = pneg %p60
        $region90: #{lpam_head_forward.1} parent=87 // pred_check_branch
          %551 = sbr.rel (%p549) target = $region92
        $region91: #{lpam_head_forward.1} parent=87 // pred_region
          %553 = dma.done %s545, 4096
        $region92: #{lpam_head_forward.1} parent=87 // pred_fallthru
          _
        %s554 = sand.u32 %s47, 1
        %s555 = scalar_lea.sflag [#allocation3], %s554
        %s556 = sand.u32 %s47, 1
        %s557 = smul.addr %s556, 256
        %s558 = scalar_lea.vmem [#allocation2], %s557
        %p559 = pneg %p60
        %p560 = pneg %p57
        %p561 = pneg %p81
        %p562 = pneg %p78
        %p563 = pneg %p102
        %p564 = pneg %p99
        %p565 = pneg %p123
        %p566 = pneg %p120
        %p567 = pneg %p144
        %p568 = pneg %p141
        %p569 = pneg %p165
        %p570 = pneg %p162
        %p571 = pneg %p186
        %p572 = pneg %p183
        %p573 = pneg %p207
        %p574 = pneg %p204
        %p575 = pneg %p228
        %p576 = pneg %p225
        %p577 = pneg %p249
        %p578 = pneg %p246
        %p579 = pneg %p270
        %p580 = pneg %p267
        %p581 = pneg %p291
        %p582 = pneg %p288
        %p583 = pneg %p312
        %p584 = pneg %p309
        %p585 = pneg %p333
        %p586 = pneg %p330
        %p587 = pneg %p354
        %p588 = pneg %p351
        %p589 = pneg %p375
        %p590 = pneg %p372
        %p591 = pneg %p396
        %p592 = pneg %p393
        %p593 = pneg %p422
        %p594 = pneg %p419
        %s595 = sand.u32 %s409, 1
        %s596 = scalar_lea.sflag [#allocation4], %s595
        %s597 = sand.u32 %s409, 1
        %s598 = smul.addr %s597, 256
        %s599 = scalar_lea.vmem [#allocation5], %s598
        %p600 = pneg %p448
        %p601 = pneg %p445
        %s602 = sand.u32 %s435, 1
        %s603 = scalar_lea.sflag [#allocation7], %s602
        %s604 = sand.u32 %s435, 1
        %s605 = smul.addr %s604, 256
        %s606 = scalar_lea.vmem [#allocation6], %s605
        %v607 = vld [vmem:[%s548] sm:$0xff]
        %v608 = vld [vmem:[%s548 + $0x8] sm:$0xff]
        %v609 = vld [vmem:[%s548 + $0x10] sm:$0xff]
        %v610 = vld [vmem:[%s548 + $0x18] sm:$0xff]
        %v611 = vld [vmem:[%s548 + $0x20] sm:$0xff]
        %v612 = vld [vmem:[%s548 + $0x28] sm:$0xff]
        %v613 = vld [vmem:[%s548 + $0x30] sm:$0xff]
        %v614 = vld [vmem:[%s548 + $0x38] sm:$0xff]
        %v615 = vld [vmem:[%s548 + $0x40] sm:$0xff]
        %v616 = vld [vmem:[%s548 + $0x48] sm:$0xff]
        %v617 = vld [vmem:[%s548 + $0x50] sm:$0xff]
        %v618 = vld [vmem:[%s548 + $0x58] sm:$0xff]
        %v619 = vld [vmem:[%s548 + $0x60] sm:$0xff]
        %v620 = vld [vmem:[%s548 + $0x68] sm:$0xff]
        %v621 = vld [vmem:[%s548 + $0x70] sm:$0xff]
        %v622 = vld [vmem:[%s548 + $0x78] sm:$0xff]
        %v623 = vld [vmem:[%s548 + $0x80] sm:$0xff]
        %v624 = vld [vmem:[%s548 + $0x88] sm:$0xff]
        %v625 = vld [vmem:[%s548 + $0x90] sm:$0xff]
        %v626 = vld [vmem:[%s548 + $0x98] sm:$0xff]
        %v627 = vld [vmem:[%s548 + $0xa0] sm:$0xff]
        %v628 = vld [vmem:[%s548 + $0xa8] sm:$0xff]
        %v629 = vld [vmem:[%s548 + $0xb0] sm:$0xff]
        %v630 = vld [vmem:[%s548 + $0xb8] sm:$0xff]
        %v631 = vld [vmem:[%s548 + $0xc0] sm:$0xff]
        %v632 = vld [vmem:[%s548 + $0xc8] sm:$0xff]
        %v633 = vld [vmem:[%s548 + $0xd0] sm:$0xff]
        %v634 = vld [vmem:[%s548 + $0xd8] sm:$0xff]
        %v635 = vld [vmem:[%s548 + $0xe0] sm:$0xff]
        %v636 = vld [vmem:[%s548 + $0xe8] sm:$0xff]
        %v637 = vld [vmem:[%s548 + $0xf0] sm:$0xff]
        %v638 = vld [vmem:[%s548 + $0xf8] sm:$0xff]
        %v639 = vld [vmem:[%s1] sm:$0xff]
        %v640 = vld [vmem:[%s1 + $0x8] sm:$0xff]
        %v641 = vld [vmem:[%s1 + $0x10] sm:$0xff]
        %v642 = vld [vmem:[%s1 + $0x18] sm:$0xff]
        %v643 = vld [vmem:[%s1 + $0x20] sm:$0xff]
        %v644 = vld [vmem:[%s1 + $0x28] sm:$0xff]
        %vm645 = vcmask 392192
        %v647 = vsel %vm645, %v607, 0
        %v650 = vsel %vm645, %v608, 0
        %v653 = vsel %vm645, %v609, 0
        %v656 = vsel %vm645, %v610, 0
        %v659 = vsel %vm645, %v611, 0
        %v662 = vsel %vm645, %v612, 0
        %v665 = vsel %vm645, %v613, 0
        %v668 = vsel %vm645, %v614, 0
        %v671 = vsel %vm645, %v615, 0
        %v674 = vsel %vm645, %v616, 0
        %v677 = vsel %vm645, %v617, 0
        %v680 = vsel %vm645, %v618, 0
        %v683 = vsel %vm645, %v619, 0
        %v686 = vsel %vm645, %v620, 0
        %v689 = vsel %vm645, %v621, 0
        %v692 = vsel %vm645, %v622, 0
        %v695 = vsel %vm645, %v623, 0
        %v698 = vsel %vm645, %v624, 0
        %v701 = vsel %vm645, %v625, 0
        %v704 = vsel %vm645, %v626, 0
        %v707 = vsel %vm645, %v627, 0
        %v710 = vsel %vm645, %v628, 0
        %v713 = vsel %vm645, %v629, 0
        %v716 = vsel %vm645, %v630, 0
        %v719 = vsel %vm645, %v631, 0
        %v722 = vsel %vm645, %v632, 0
        %v725 = vsel %vm645, %v633, 0
        %v728 = vsel %vm645, %v634, 0
        %v731 = vsel %vm645, %v635, 0
        %v734 = vsel %vm645, %v636, 0
        %v737 = vsel %vm645, %v637, 0
        %v740 = vsel %vm645, %v638, 0
        %742 = vmatpush.msra.mxu0 0.0
        %743 = vmatpush.msra.mxu0 0.0
        %744 = vmatpush.msra.mxu0 0.0
        %745 = vmatpush.msra.mxu0 0.0
        %746 = vmatpush.msra.mxu0 0.0
        %747 = vmatpush.msra.mxu0 0.0
        %748 = vmatpush.msra.mxu0 0.0
        %749 = vmatpush.msra.mxu0 0.0
        %750 = vmatpush.msra.mxu0 0.0
        %751 = vmatpush.msra.mxu0 0.0
        %752 = vmatpush.msra.mxu0 %v644
        %753 = vmatpush.msra.mxu0 %v643
        %754 = vmatpush.msra.mxu0 %v642
        %755 = vmatpush.msra.mxu0 %v641
        %756 = vmatpush.msra.mxu0 %v640
        %757 = vmatpush.msra.mxu0 %v639
        %758 = vmatmul.f32.gmra.mxu0 %v647
        %v759 = vpop.f32.mrf.mxu0
        %v760 = vadd.f32 0.0, %v759
        %761 = vmatmul.f32.gmra.mxu0 %v650
        %v762 = vpop.f32.mrf.mxu0
        %v763 = vadd.f32 0.0, %v762
        %764 = vmatmul.f32.gmra.mxu0 %v653
        %v765 = vpop.f32.mrf.mxu0
        %v766 = vadd.f32 0.0, %v765
        %767 = vmatmul.f32.gmra.mxu0 %v656
        %v768 = vpop.f32.mrf.mxu0
        %v769 = vadd.f32 0.0, %v768
        %770 = vmatmul.f32.gmra.mxu0 %v659
        %v771 = vpop.f32.mrf.mxu0
        %v772 = vadd.f32 0.0, %v771
        %773 = vmatmul.f32.gmra.mxu0 %v662
        %v774 = vpop.f32.mrf.mxu0
        %v775 = vadd.f32 0.0, %v774
        %776 = vmatmul.f32.gmra.mxu0 %v665
        %v777 = vpop.f32.mrf.mxu0
        %v778 = vadd.f32 0.0, %v777
        %779 = vmatmul.f32.gmra.mxu0 %v668
        %v780 = vpop.f32.mrf.mxu0
        %v781 = vadd.f32 0.0, %v780
        %782 = vmatmul.f32.gmra.mxu0 %v671
        %v783 = vpop.f32.mrf.mxu0
        %v784 = vadd.f32 0.0, %v783
        %785 = vmatmul.f32.gmra.mxu0 %v674
        %v786 = vpop.f32.mrf.mxu0
        %v787 = vadd.f32 0.0, %v786
        %788 = vmatmul.f32.gmra.mxu0 %v677
        %v789 = vpop.f32.mrf.mxu0
        %v790 = vadd.f32 0.0, %v789
        %791 = vmatmul.f32.gmra.mxu0 %v680
        %v792 = vpop.f32.mrf.mxu0
        %v793 = vadd.f32 0.0, %v792
        %794 = vmatmul.f32.gmra.mxu0 %v683
        %v795 = vpop.f32.mrf.mxu0
        %v796 = vadd.f32 0.0, %v795
        %797 = vmatmul.f32.gmra.mxu0 %v686
        %v798 = vpop.f32.mrf.mxu0
        %v799 = vadd.f32 0.0, %v798
        %800 = vmatmul.f32.gmra.mxu0 %v689
        %v801 = vpop.f32.mrf.mxu0
        %v802 = vadd.f32 0.0, %v801
        %803 = vmatmul.f32.gmra.mxu0 %v692
        %v804 = vpop.f32.mrf.mxu0
        %v805 = vadd.f32 0.0, %v804
        %806 = vmatmul.f32.gmra.mxu0 %v695
        %v807 = vpop.f32.mrf.mxu0
        %v808 = vadd.f32 0.0, %v807
        %809 = vmatmul.f32.gmra.mxu0 %v698
        %v810 = vpop.f32.mrf.mxu0
        %v811 = vadd.f32 0.0, %v810
        %812 = vmatmul.f32.gmra.mxu0 %v701
        %v813 = vpop.f32.mrf.mxu0
        %v814 = vadd.f32 0.0, %v813
        %815 = vmatmul.f32.gmra.mxu0 %v704
        %v816 = vpop.f32.mrf.mxu0
        %v817 = vadd.f32 0.0, %v816
        %818 = vmatmul.f32.gmra.mxu0 %v707
        %v819 = vpop.f32.mrf.mxu0
        %v820 = vadd.f32 0.0, %v819
        %821 = vmatmul.f32.gmra.mxu0 %v710
        %v822 = vpop.f32.mrf.mxu0
        %v823 = vadd.f32 0.0, %v822
        %824 = vmatmul.f32.gmra.mxu0 %v713
        %v825 = vpop.f32.mrf.mxu0
        %v826 = vadd.f32 0.0, %v825
        %827 = vmatmul.f32.gmra.mxu0 %v716
        %v828 = vpop.f32.mrf.mxu0
        %v829 = vadd.f32 0.0, %v828
        %830 = vmatmul.f32.gmra.mxu0 %v719
        %v831 = vpop.f32.mrf.mxu0
        %v832 = vadd.f32 0.0, %v831
        %833 = vmatmul.f32.gmra.mxu0 %v722
        %v834 = vpop.f32.mrf.mxu0
        %v835 = vadd.f32 0.0, %v834
        %836 = vmatmul.f32.gmra.mxu0 %v725
        %v837 = vpop.f32.mrf.mxu0
        %v838 = vadd.f32 0.0, %v837
        %839 = vmatmul.f32.gmra.mxu0 %v728
        %v840 = vpop.f32.mrf.mxu0
        %v841 = vadd.f32 0.0, %v840
        %842 = vmatmul.f32.gmra.mxu0 %v731
        %v843 = vpop.f32.mrf.mxu0
        %v844 = vadd.f32 0.0, %v843
        %845 = vmatmul.f32.gmra.mxu0 %v734
        %v846 = vpop.f32.mrf.mxu0
        %v847 = vadd.f32 0.0, %v846
        %848 = vmatmul.f32.gmra.mxu0 %v737
        %v849 = vpop.f32.mrf.mxu0
        %v850 = vadd.f32 0.0, %v849
        %851 = vmatmul.f32.gmra.mxu0 %v740
        %v852 = vpop.f32.mrf.mxu0
        %v853 = vadd.f32 0.0, %v852
        %854 = vdwg.mxu0
        %v855 = vmax.f32 %v760, 0.0
        %v856 = vmax.f32 %v763, 0.0
        %v857 = vmax.f32 %v766, 0.0
        %v858 = vmax.f32 %v769, 0.0
        %v859 = vmax.f32 %v772, 0.0
        %v860 = vmax.f32 %v775, 0.0
        %v861 = vmax.f32 %v778, 0.0
        %v862 = vmax.f32 %v781, 0.0
        %v863 = vmax.f32 %v784, 0.0
        %v864 = vmax.f32 %v787, 0.0
        %v865 = vmax.f32 %v790, 0.0
        %v866 = vmax.f32 %v793, 0.0
        %v867 = vmax.f32 %v796, 0.0
        %v868 = vmax.f32 %v799, 0.0
        %v869 = vmax.f32 %v802, 0.0
        %v870 = vmax.f32 %v805, 0.0
        %v871 = vmax.f32 %v808, 0.0
        %v872 = vmax.f32 %v811, 0.0
        %v873 = vmax.f32 %v814, 0.0
        %v874 = vmax.f32 %v817, 0.0
        %v875 = vmax.f32 %v820, 0.0
        %v876 = vmax.f32 %v823, 0.0
        %v877 = vmax.f32 %v826, 0.0
        %v878 = vmax.f32 %v829, 0.0
        %v879 = vmax.f32 %v832, 0.0
        %v880 = vmax.f32 %v835, 0.0
        %v881 = vmax.f32 %v838, 0.0
        %v882 = vmax.f32 %v841, 0.0
        %v883 = vmax.f32 %v844, 0.0
        %v884 = vmax.f32 %v847, 0.0
        %v885 = vmax.f32 %v850, 0.0
        %v886 = vmax.f32 %v853, 0.0
        %vm887 = vcmask 97280
        %v888 = vsel %vm887, %v855, 0.0
        %v889 = vsel %vm887, %v856, 0.0
        %v890 = vadd.f32 %v888, %v889
        %v891 = vsel %vm887, %v857, 0.0
        %v892 = vadd.f32 %v890, %v891
        %v893 = vsel %vm887, %v858, 0.0
        %v894 = vadd.f32 %v892, %v893
        %v895 = vsel %vm887, %v859, 0.0
        %v896 = vadd.f32 %v894, %v895
        %v897 = vsel %vm887, %v860, 0.0
        %v898 = vadd.f32 %v896, %v897
        %v899 = vsel %vm887, %v861, 0.0
        %v900 = vadd.f32 %v898, %v899
        %v901 = vsel %vm887, %v862, 0.0
        %v902 = vadd.f32 %v900, %v901
        %v903 = vsel %vm887, %v863, 0.0
        %v904 = vadd.f32 %v902, %v903
        %v905 = vsel %vm887, %v864, 0.0
        %v906 = vadd.f32 %v904, %v905
        %v907 = vsel %vm887, %v865, 0.0
        %v908 = vadd.f32 %v906, %v907
        %v909 = vsel %vm887, %v866, 0.0
        %v910 = vadd.f32 %v908, %v909
        %v911 = vsel %vm887, %v867, 0.0
        %v912 = vadd.f32 %v910, %v911
        %v913 = vsel %vm887, %v868, 0.0
        %v914 = vadd.f32 %v912, %v913
        %v915 = vsel %vm887, %v869, 0.0
        %v916 = vadd.f32 %v914, %v915
        %v917 = vsel %vm887, %v870, 0.0
        %v918 = vadd.f32 %v916, %v917
        %v919 = vsel %vm887, %v871, 0.0
        %v920 = vadd.f32 %v918, %v919
        %v921 = vsel %vm887, %v872, 0.0
        %v922 = vadd.f32 %v920, %v921
        %v923 = vsel %vm887, %v873, 0.0
        %v924 = vadd.f32 %v922, %v923
        %v925 = vsel %vm887, %v874, 0.0
        %v926 = vadd.f32 %v924, %v925
        %v927 = vsel %vm887, %v875, 0.0
        %v928 = vadd.f32 %v926, %v927
        %v929 = vsel %vm887, %v876, 0.0
        %v930 = vadd.f32 %v928, %v929
        %v931 = vsel %vm887, %v877, 0.0
        %v932 = vadd.f32 %v930, %v931
        %v933 = vsel %vm887, %v878, 0.0
        %v934 = vadd.f32 %v932, %v933
        %v935 = vsel %vm887, %v879, 0.0
        %v936 = vadd.f32 %v934, %v935
        %v937 = vsel %vm887, %v880, 0.0
        %v938 = vadd.f32 %v936, %v937
        %v939 = vsel %vm887, %v881, 0.0
        %v940 = vadd.f32 %v938, %v939
        %v941 = vsel %vm887, %v882, 0.0
        %v942 = vadd.f32 %v940, %v941
        %v943 = vsel %vm887, %v883, 0.0
        %v944 = vadd.f32 %v942, %v943
        %v945 = vsel %vm887, %v884, 0.0
        %v946 = vadd.f32 %v944, %v945
        %v947 = vsel %vm887, %v885, 0.0
        %v948 = vadd.f32 %v946, %v947
        %v949 = vsel %vm887, %v886, 0.0
        %v950 = vadd.f32 %v948, %v949
        %v951 = vrot.slane %v950, 4
        %v952 = vadd.f32 %v950, %v951
        %v953 = vrot.slane %v952, 2
        %v954 = vadd.f32 %v952, %v953
        %v955 = vrot.slane %v954, 1
        %v956 = vadd.f32 %v954, %v955
        %v957 = vrcp.pop 256.0
        %v958 = vmul.f32 256.0, %v957
        %v959 = vsub.f32 1.0, %v958
        %v960 = vmul.f32 %v957, %v959
        %v961 = vadd.f32 %v957, %v960
        %vm962 = vweird.f32 %v957
        %v963 = vsel %vm962, %v957, %v961
        %v964 = vmul.f32 %v956, %v963
        %v965 = vld [vmem:[%s2] sm:$0xff]
        %v966 = vld [vmem:[%s2 + $0x8] sm:$0xf]
        %v967 = vld [vmem:[%s3] sm:$0x1]
        %v969 = vsel %vm887, %v964, 0
        %vm971 = vcmask 1043456
        %v973 = vsel %vm971, %v966, 0
        %975 = vmatpush.msra.mxu0 0.0
        %976 = vmatpush.msra.mxu0 0.0
        %977 = vmatpush.msra.mxu0 0.0
        %978 = vmatpush.msra.mxu0 0.0
        %979 = vmatpush.msra.mxu0 0.0
        %980 = vmatpush.msra.mxu0 0.0
        %981 = vmatpush.msra.mxu0 0.0
        %982 = vmatpush.msra.mxu0 0.0
        %983 = vmatpush.msra.mxu0 0.0
        %984 = vmatpush.msra.mxu0 0.0
        %985 = vmatpush.msra.mxu0 0.0
        %986 = vmatpush.msra.mxu0 0.0
        %987 = vmatpush.msra.mxu0 0.0
        %988 = vmatpush.msra.mxu0 0.0
        %989 = vmatpush.msra.mxu0 %v973
        %990 = vmatpush.msra.mxu0 %v965
        %991 = vmatmul.f32.gmra.mxu0 %v969
        %v992 = vpop.f32.mrf.mxu0
        %v993 = vadd.f32 %v967, %v992
        %994 = vdwg.mxu0
        %v995 = vld [vmem:[%s4] sm:$0xff]
        %v996 = vld [vmem:[%s4 + $0x8] sm:$0xf]
        %v997 = vld [vmem:[%s5] sm:$0x1]
        %v999 = vsel %vm971, %v996, 0
        %1001 = vmatpush.msra.mxu0 0.0
        %1002 = vmatpush.msra.mxu0 0.0
        %1003 = vmatpush.msra.mxu0 0.0
        %1004 = vmatpush.msra.mxu0 0.0
        %1005 = vmatpush.msra.mxu0 0.0
        %1006 = vmatpush.msra.mxu0 0.0
        %1007 = vmatpush.msra.mxu0 0.0
        %1008 = vmatpush.msra.mxu0 0.0
        %1009 = vmatpush.msra.mxu0 0.0
        %1010 = vmatpush.msra.mxu0 0.0
        %1011 = vmatpush.msra.mxu0 0.0
        %1012 = vmatpush.msra.mxu0 0.0
        %1013 = vmatpush.msra.mxu0 0.0
        %1014 = vmatpush.msra.mxu0 0.0
        %1015 = vmatpush.msra.mxu0 %v999
        %1016 = vmatpush.msra.mxu0 %v995
        %1017 = vmatmul.f32.gmra.mxu0 %v969
        %v1018 = vpop.f32.mrf.mxu0
        %v1019 = vadd.f32 %v997, %v1018
        %1020 = vdwg.mxu0
        %v1021 = vlaneseq
        %v1022 = vshrl.u32 %v1021, 7
        %v1023 = vadd.s32 %v1022, 8
        %v1024 = vlaneseq
        %v1025 = vand.u32 %v1024, 127
        %vm1026 = vcmp.eq.s32.totalorder %v1022, %v1025
        %vm1027 = vcmp.eq.s32.totalorder %v1023, %v1025
        %v1028 = vperm.slane %v993, 0
        %v1029 = vsel %vm1026, %v1028, 0.0
        %v1030 = vsel %vm1027, %v1028, 0.0
        %v1031 = vsel %vm887, %v1029, 0.0
        %1032 = vadd.xlane.f32.xlu0 %v1031
        %v1033 = vpop.xlane.xlu0 %1032
        %vm1034 = vcmask 93184
        %v1035 = vsel %vm1034, %v1030, 0.0
        %1036 = vadd.xlane.f32.xlu0 %v1035
        %v1037 = vpop.xlane.xlu0 %1036
        %v1038 = vmul.f32 %v1033, %v964
        %v1039 = vmul.f32 %v1037, %v964
        %v1040 = vmul.f32 %v1038, 0.28867513
        %v1041 = vmul.f32 %v1039, 0.28867513
        %v1042 = vsel %vm887, %v1040, -inf
        %v1043 = vsel %vm1034, %v1041, -inf
        %v1044 = vmax.f32 %v1042, %v1043
        %v1045 = vrot.slane %v1044, 4
        %v1046 = vmax.f32 %v1044, %v1045
        %v1047 = vrot.slane %v1046, 2
        %v1048 = vmax.f32 %v1046, %v1047
        %v1049 = vrot.slane %v1048, 1
        %v1050 = vmax.f32 %v1048, %v1049
        %v1051 = vsub.f32 %v1040, %v1050
        %v1052 = vsub.f32 %v1041, %v1050
        %v1053 = vmul.f32 %v1051, 1.442695
        %v1054 = vpow.pop %v1053
        %v1055 = vmul.f32 %v1052, 1.442695
        %v1056 = vpow.pop %v1055
        %v1057 = vsel %vm887, %v1054, 0.0
        %v1058 = vsel %vm1034, %v1056, 0.0
        %v1059 = vadd.f32 %v1057, %v1058
        %v1060 = vrot.slane %v1059, 4
        %v1061 = vadd.f32 %v1059, %v1060
        %v1062 = vrot.slane %v1061, 2
        %v1063 = vadd.f32 %v1061, %v1062
        %v1064 = vrot.slane %v1063, 1
        %v1065 = vadd.f32 %v1063, %v1064
        %v1066 = vrcp.pop %v1065
        %v1067 = vmul.f32 %v1065, %v1066
        %v1068 = vsub.f32 1.0, %v1067
        %v1069 = vmul.f32 %v1066, %v1068
        %v1070 = vadd.f32 %v1066, %v1069
        %vm1071 = vweird.f32 %v1065
        %vm1072 = vweird.f32 %v1066
        %vm1073 = vmor %vm1071, %vm1072
        %v1074 = vsel %vm1073, %v1066, %v1070
        %v1075 = vand.u32 2147483647, %v1065
        %vm1076 = vcmp.eq.f32.partialorder %v1075, 8.507059e+37
        %v1077 = vand.u32 %v1065, 2147483648
        %v1078 = vor.u32 1.1754944e-38, %v1077
        %v1079 = vsel %vm1076, %v1078, %v1074
        %v1080 = vmul.f32 %v1054, %v1079
        %v1081 = vmul.f32 %v1056, %v1079
        %v1082 = vperm.slane %v1019, 0
        %v1083 = vsel %vm1026, %v1082, 0.0
        %v1084 = vsel %vm1027, %v1082, 0.0
        %v1085 = vsel %vm887, %v1083, 0.0
        %1086 = vadd.xlane.f32.xlu0 %v1085
        %v1087 = vpop.xlane.xlu0 %1086
        %v1088 = vsel %vm1034, %v1084, 0.0
        %1089 = vadd.xlane.f32.xlu0 %v1088
        %v1090 = vpop.xlane.xlu0 %1089
        %v1091 = vmul.f32 %v1080, %v1087
        %v1092 = vmul.f32 %v1081, %v1090
        %v1093 = vsel %vm887, %v1091, 0.0
        %v1094 = vsel %vm1034, %v1092, 0.0
        %v1095 = vadd.f32 %v1093, %v1094
        %v1096 = vrot.slane %v1095, 4
        %v1097 = vadd.f32 %v1095, %v1096
        %v1098 = vrot.slane %v1097, 2
        %v1099 = vadd.f32 %v1097, %v1098
        %v1100 = vrot.slane %v1099, 1
        %v1101 = vadd.f32 %v1099, %v1100
        %v1102 = vmul.f32 %v1101, 0.5
        %v1103 = vtanh.pop %v1102
        %v1104 = vmul.f32 %v1103, 0.5
        %v1105 = vadd.f32 %v1104, 0.5
        %v1106 = vadd.f32 %v1105, 1.0
        %v1107 = vmul.f32 %v855, %v1106
        %v1108 = vmul.f32 %v856, %v1106
        %v1109 = vmul.f32 %v857, %v1106
        %v1110 = vmul.f32 %v858, %v1106
        %v1111 = vmul.f32 %v859, %v1106
        %v1112 = vmul.f32 %v860, %v1106
        %v1113 = vmul.f32 %v861, %v1106
        %v1114 = vmul.f32 %v862, %v1106
        %v1115 = vmul.f32 %v863, %v1106
        %v1116 = vmul.f32 %v864, %v1106
        %v1117 = vmul.f32 %v865, %v1106
        %v1118 = vmul.f32 %v866, %v1106
        %v1119 = vmul.f32 %v867, %v1106
        %v1120 = vmul.f32 %v868, %v1106
        %v1121 = vmul.f32 %v869, %v1106
        %v1122 = vmul.f32 %v870, %v1106
        %v1123 = vmul.f32 %v871, %v1106
        %v1124 = vmul.f32 %v872, %v1106
        %v1125 = vmul.f32 %v873, %v1106
        %v1126 = vmul.f32 %v874, %v1106
        %v1127 = vmul.f32 %v875, %v1106
        %v1128 = vmul.f32 %v876, %v1106
        %v1129 = vmul.f32 %v877, %v1106
        %v1130 = vmul.f32 %v878, %v1106
        %v1131 = vmul.f32 %v879, %v1106
        %v1132 = vmul.f32 %v880, %v1106
        %v1133 = vmul.f32 %v881, %v1106
        %v1134 = vmul.f32 %v882, %v1106
        %v1135 = vmul.f32 %v883, %v1106
        %v1136 = vmul.f32 %v884, %v1106
        %v1137 = vmul.f32 %v885, %v1106
        %v1138 = vmul.f32 %v886, %v1106
        %v1139 = vld [vmem:[%s6] sm:$0xff]
        %v1140 = vld [vmem:[%s6 + $0x8] sm:$0xf]
        %v1142 = vsel %vm887, %v1107, 0
        %v1145 = vsel %vm887, %v1108, 0
        %v1148 = vsel %vm887, %v1109, 0
        %v1151 = vsel %vm887, %v1110, 0
        %v1154 = vsel %vm887, %v1111, 0
        %v1157 = vsel %vm887, %v1112, 0
        %v1160 = vsel %vm887, %v1113, 0
        %v1163 = vsel %vm887, %v1114, 0
        %v1166 = vsel %vm887, %v1115, 0
        %v1169 = vsel %vm887, %v1116, 0
        %v1172 = vsel %vm887, %v1117, 0
        %v1175 = vsel %vm887, %v1118, 0
        %v1178 = vsel %vm887, %v1119, 0
        %v1181 = vsel %vm887, %v1120, 0
        %v1184 = vsel %vm887, %v1121, 0
        %v1187 = vsel %vm887, %v1122, 0
        %v1190 = vsel %vm887, %v1123, 0
        %v1193 = vsel %vm887, %v1124, 0
        %v1196 = vsel %vm887, %v1125, 0
        %v1199 = vsel %vm887, %v1126, 0
        %v1202 = vsel %vm887, %v1127, 0
        %v1205 = vsel %vm887, %v1128, 0
        %v1208 = vsel %vm887, %v1129, 0
        %v1211 = vsel %vm887, %v1130, 0
        %v1214 = vsel %vm887, %v1131, 0
        %v1217 = vsel %vm887, %v1132, 0
        %v1220 = vsel %vm887, %v1133, 0
        %v1223 = vsel %vm887, %v1134, 0
        %v1226 = vsel %vm887, %v1135, 0
        %v1229 = vsel %vm887, %v1136, 0
        %v1232 = vsel %vm887, %v1137, 0
        %v1235 = vsel %vm887, %v1138, 0
        %v1238 = vsel %vm971, %v1140, 0
        %1240 = vmatpush.msra.mxu0 0.0
        %1241 = vmatpush.msra.mxu0 0.0
        %1242 = vmatpush.msra.mxu0 0.0
        %1243 = vmatpush.msra.mxu0 0.0
        %1244 = vmatpush.msra.mxu0 0.0
        %1245 = vmatpush.msra.mxu0 0.0
        %1246 = vmatpush.msra.mxu0 0.0
        %1247 = vmatpush.msra.mxu0 0.0
        %1248 = vmatpush.msra.mxu0 0.0
        %1249 = vmatpush.msra.mxu0 0.0
        %1250 = vmatpush.msra.mxu0 0.0
        %1251 = vmatpush.msra.mxu0 0.0
        %1252 = vmatpush.msra.mxu0 0.0
        %1253 = vmatpush.msra.mxu0 0.0
        %1254 = vmatpush.msra.mxu0 %v1238
        %1255 = vmatpush.msra.mxu0 %v1139
        %1256 = vmatmul.f32.gmra.mxu0 %v1142
        %v1257 = vpop.f32.mrf.mxu0
        %v1258 = vadd.f32 0.0, %v1257
        %1259 = vmatmul.f32.gmra.mxu0 %v1145
        %v1260 = vpop.f32.mrf.mxu0
        %v1261 = vadd.f32 0.0, %v1260
        %1262 = vmatmul.f32.gmra.mxu0 %v1148
        %v1263 = vpop.f32.mrf.mxu0
        %v1264 = vadd.f32 0.0, %v1263
        %1265 = vmatmul.f32.gmra.mxu0 %v1151
        %v1266 = vpop.f32.mrf.mxu0
        %v1267 = vadd.f32 0.0, %v1266
        %1268 = vmatmul.f32.gmra.mxu0 %v1154
        %v1269 = vpop.f32.mrf.mxu0
        %v1270 = vadd.f32 0.0, %v1269
        %1271 = vmatmul.f32.gmra.mxu0 %v1157
        %v1272 = vpop.f32.mrf.mxu0
        %v1273 = vadd.f32 0.0, %v1272
        %1274 = vmatmul.f32.gmra.mxu0 %v1160
        %v1275 = vpop.f32.mrf.mxu0
        %v1276 = vadd.f32 0.0, %v1275
        %1277 = vmatmul.f32.gmra.mxu0 %v1163
        %v1278 = vpop.f32.mrf.mxu0
        %v1279 = vadd.f32 0.0, %v1278
        %1280 = vmatmul.f32.gmra.mxu0 %v1166
        %v1281 = vpop.f32.mrf.mxu0
        %v1282 = vadd.f32 0.0, %v1281
        %1283 = vmatmul.f32.gmra.mxu0 %v1169
        %v1284 = vpop.f32.mrf.mxu0
        %v1285 = vadd.f32 0.0, %v1284
        %1286 = vmatmul.f32.gmra.mxu0 %v1172
        %v1287 = vpop.f32.mrf.mxu0
        %v1288 = vadd.f32 0.0, %v1287
        %1289 = vmatmul.f32.gmra.mxu0 %v1175
        %v1290 = vpop.f32.mrf.mxu0
        %v1291 = vadd.f32 0.0, %v1290
        %1292 = vmatmul.f32.gmra.mxu0 %v1178
        %v1293 = vpop.f32.mrf.mxu0
        %v1294 = vadd.f32 0.0, %v1293
        %1295 = vmatmul.f32.gmra.mxu0 %v1181
        %v1296 = vpop.f32.mrf.mxu0
        %v1297 = vadd.f32 0.0, %v1296
        %1298 = vmatmul.f32.gmra.mxu0 %v1184
        %v1299 = vpop.f32.mrf.mxu0
        %v1300 = vadd.f32 0.0, %v1299
        %1301 = vmatmul.f32.gmra.mxu0 %v1187
        %v1302 = vpop.f32.mrf.mxu0
        %v1303 = vadd.f32 0.0, %v1302
        %1304 = vmatmul.f32.gmra.mxu0 %v1190
        %v1305 = vpop.f32.mrf.mxu0
        %v1306 = vadd.f32 0.0, %v1305
        %1307 = vmatmul.f32.gmra.mxu0 %v1193
        %v1308 = vpop.f32.mrf.mxu0
        %v1309 = vadd.f32 0.0, %v1308
        %1310 = vmatmul.f32.gmra.mxu0 %v1196
        %v1311 = vpop.f32.mrf.mxu0
        %v1312 = vadd.f32 0.0, %v1311
        %1313 = vmatmul.f32.gmra.mxu0 %v1199
        %v1314 = vpop.f32.mrf.mxu0
        %v1315 = vadd.f32 0.0, %v1314
        %1316 = vmatmul.f32.gmra.mxu0 %v1202
        %v1317 = vpop.f32.mrf.mxu0
        %v1318 = vadd.f32 0.0, %v1317
        %1319 = vmatmul.f32.gmra.mxu0 %v1205
        %v1320 = vpop.f32.mrf.mxu0
        %v1321 = vadd.f32 0.0, %v1320
        %1322 = vmatmul.f32.gmra.mxu0 %v1208
        %v1323 = vpop.f32.mrf.mxu0
        %v1324 = vadd.f32 0.0, %v1323
        %1325 = vmatmul.f32.gmra.mxu0 %v1211
        %v1326 = vpop.f32.mrf.mxu0
        %v1327 = vadd.f32 0.0, %v1326
        %1328 = vmatmul.f32.gmra.mxu0 %v1214
        %v1329 = vpop.f32.mrf.mxu0
        %v1330 = vadd.f32 0.0, %v1329
        %1331 = vmatmul.f32.gmra.mxu0 %v1217
        %v1332 = vpop.f32.mrf.mxu0
        %v1333 = vadd.f32 0.0, %v1332
        %1334 = vmatmul.f32.gmra.mxu0 %v1220
        %v1335 = vpop.f32.mrf.mxu0
        %v1336 = vadd.f32 0.0, %v1335
        %1337 = vmatmul.f32.gmra.mxu0 %v1223
        %v1338 = vpop.f32.mrf.mxu0
        %v1339 = vadd.f32 0.0, %v1338
        %1340 = vmatmul.f32.gmra.mxu0 %v1226
        %v1341 = vpop.f32.mrf.mxu0
        %v1342 = vadd.f32 0.0, %v1341
        %1343 = vmatmul.f32.gmra.mxu0 %v1229
        %v1344 = vpop.f32.mrf.mxu0
        %v1345 = vadd.f32 0.0, %v1344
        %1346 = vmatmul.f32.gmra.mxu0 %v1232
        %v1347 = vpop.f32.mrf.mxu0
        %v1348 = vadd.f32 0.0, %v1347
        %1349 = vmatmul.f32.gmra.mxu0 %v1235
        %v1350 = vpop.f32.mrf.mxu0
        %v1351 = vadd.f32 0.0, %v1350
        %1352 = vdwg.mxu0
        %v1353 = vld [vmem:[%s11] sm:$0xff]
        %v1354 = vld [vmem:[%s11 + $0x8] sm:$0xff]
        %v1355 = vld [vmem:[%s11 + $0x10] sm:$0xff]
        %v1356 = vld [vmem:[%s11 + $0x18] sm:$0xff]
        %v1357 = vld [vmem:[%s11 + $0x20] sm:$0xff]
        %v1358 = vld [vmem:[%s11 + $0x28] sm:$0xff]
        %v1359 = vld [vmem:[%s11 + $0x30] sm:$0xff]
        %v1360 = vld [vmem:[%s11 + $0x38] sm:$0xff]
        %v1361 = vld [vmem:[%s11 + $0x40] sm:$0xff]
        %v1362 = vld [vmem:[%s11 + $0x48] sm:$0xff]
        %v1363 = vld [vmem:[%s11 + $0x50] sm:$0xff]
        %v1364 = vld [vmem:[%s11 + $0x58] sm:$0xff]
        %v1365 = vld [vmem:[%s11 + $0x60] sm:$0xff]
        %v1366 = vld [vmem:[%s11 + $0x68] sm:$0xff]
        %v1367 = vld [vmem:[%s11 + $0x70] sm:$0xff]
        %v1368 = vld [vmem:[%s11 + $0x78] sm:$0xff]
        %1369 = vmatpush.msra.mxu0 %v1303
        %1370 = vmatpush.msra.mxu0 %v1300
        %1371 = vmatpush.msra.mxu0 %v1297
        %1372 = vmatpush.msra.mxu0 %v1294
        %1373 = vmatpush.msra.mxu0 %v1291
        %1374 = vmatpush.msra.mxu0 %v1288
        %1375 = vmatpush.msra.mxu0 %v1285
        %1376 = vmatpush.msra.mxu0 %v1282
        %1377 = vmatpush.msra.mxu0 %v1279
        %1378 = vmatpush.msra.mxu0 %v1276
        %1379 = vmatpush.msra.mxu0 %v1273
        %1380 = vmatpush.msra.mxu0 %v1270
        %1381 = vmatpush.msra.mxu0 %v1267
        %1382 = vmatpush.msra.mxu0 %v1264
        %1383 = vmatpush.msra.mxu0 %v1261
        %1384 = vmatpush.msra.mxu0 %v1258
        %1385 = vmatmul.f32.gmra.mxu0 %v1353
        %v1386 = vpop.f32.mrf.mxu0
        %v1387 = vadd.f32 0.0, %v1386
        %1388 = vmatmul.f32.gmra.mxu0 %v1355
        %v1389 = vpop.f32.mrf.mxu0
        %v1390 = vadd.f32 0.0, %v1389
        %1391 = vmatmul.f32.gmra.mxu0 %v1357
        %v1392 = vpop.f32.mrf.mxu0
        %v1393 = vadd.f32 0.0, %v1392
        %1394 = vmatmul.f32.gmra.mxu0 %v1359
        %v1395 = vpop.f32.mrf.mxu0
        %v1396 = vadd.f32 0.0, %v1395
        %1397 = vmatmul.f32.gmra.mxu0 %v1361
        %v1398 = vpop.f32.mrf.mxu0
        %v1399 = vadd.f32 0.0, %v1398
        %1400 = vmatmul.f32.gmra.mxu0 %v1363
        %v1401 = vpop.f32.mrf.mxu0
        %v1402 = vadd.f32 0.0, %v1401
        %1403 = vmatmul.f32.gmra.mxu0 %v1365
        %v1404 = vpop.f32.mrf.mxu0
        %v1405 = vadd.f32 0.0, %v1404
        %1406 = vmatmul.f32.gmra.mxu0 %v1367
        %v1407 = vpop.f32.mrf.mxu0
        %v1408 = vadd.f32 0.0, %v1407
        %1409 = vdwg.mxu0
        %1410 = vmatpush.msra.mxu0 %v1351
        %1411 = vmatpush.msra.mxu0 %v1348
        %1412 = vmatpush.msra.mxu0 %v1345
        %1413 = vmatpush.msra.mxu0 %v1342
        %1414 = vmatpush.msra.mxu0 %v1339
        %1415 = vmatpush.msra.mxu0 %v1336
        %1416 = vmatpush.msra.mxu0 %v1333
        %1417 = vmatpush.msra.mxu0 %v1330
        %1418 = vmatpush.msra.mxu0 %v1327
        %1419 = vmatpush.msra.mxu0 %v1324
        %1420 = vmatpush.msra.mxu0 %v1321
        %1421 = vmatpush.msra.mxu0 %v1318
        %1422 = vmatpush.msra.mxu0 %v1315
        %1423 = vmatpush.msra.mxu0 %v1312
        %1424 = vmatpush.msra.mxu0 %v1309
        %1425 = vmatpush.msra.mxu0 %v1306
        %1426 = vmatmul.f32.gmra.mxu0 %v1354
        %v1427 = vpop.f32.mrf.mxu0
        %v1428 = vadd.f32 %v1387, %v1427
        %1429 = vmatmul.f32.gmra.mxu0 %v1356
        %v1430 = vpop.f32.mrf.mxu0
        %v1431 = vadd.f32 %v1390, %v1430
        %1432 = vmatmul.f32.gmra.mxu0 %v1358
        %v1433 = vpop.f32.mrf.mxu0
        %v1434 = vadd.f32 %v1393, %v1433
        %1435 = vmatmul.f32.gmra.mxu0 %v1360
        %v1436 = vpop.f32.mrf.mxu0
        %v1437 = vadd.f32 %v1396, %v1436
        %1438 = vmatmul.f32.gmra.mxu0 %v1362
        %v1439 = vpop.f32.mrf.mxu0
        %v1440 = vadd.f32 %v1399, %v1439
        %1441 = vmatmul.f32.gmra.mxu0 %v1364
        %v1442 = vpop.f32.mrf.mxu0
        %v1443 = vadd.f32 %v1402, %v1442
        %1444 = vmatmul.f32.gmra.mxu0 %v1366
        %v1445 = vpop.f32.mrf.mxu0
        %v1446 = vadd.f32 %v1405, %v1445
        %1447 = vmatmul.f32.gmra.mxu0 %v1368
        %v1448 = vpop.f32.mrf.mxu0
        %v1449 = vadd.f32 %v1408, %v1448
        %1450 = vdwg.mxu0
        %v1451 = vld [vmem:[%s12] sm:$0xff]
        %v1452 = vld [vmem:[%s12 + $0x8] sm:$0xff]
        %v1453 = vld [vmem:[%s12 + $0x10] sm:$0xff]
        %v1454 = vld [vmem:[%s12 + $0x18] sm:$0xff]
        %1455 = vmatpush.msra.mxu0 %v1303
        %1456 = vmatpush.msra.mxu0 %v1300
        %1457 = vmatpush.msra.mxu0 %v1297
        %1458 = vmatpush.msra.mxu0 %v1294
        %1459 = vmatpush.msra.mxu0 %v1291
        %1460 = vmatpush.msra.mxu0 %v1288
        %1461 = vmatpush.msra.mxu0 %v1285
        %1462 = vmatpush.msra.mxu0 %v1282
        %1463 = vmatpush.msra.mxu0 %v1279
        %1464 = vmatpush.msra.mxu0 %v1276
        %1465 = vmatpush.msra.mxu0 %v1273
        %1466 = vmatpush.msra.mxu0 %v1270
        %1467 = vmatpush.msra.mxu0 %v1267
        %1468 = vmatpush.msra.mxu0 %v1264
        %1469 = vmatpush.msra.mxu0 %v1261
        %1470 = vmatpush.msra.mxu0 %v1258
        %1471 = vmatmul.f32.gmra.mxu0 %v1451
        %v1472 = vpop.f32.mrf.mxu0
        %v1473 = vadd.f32 0.0, %v1472
        %1474 = vmatmul.f32.gmra.mxu0 %v1453
        %v1475 = vpop.f32.mrf.mxu0
        %v1476 = vadd.f32 0.0, %v1475
        %1477 = vdwg.mxu0
        %1478 = vmatpush.msra.mxu0 %v1351
        %1479 = vmatpush.msra.mxu0 %v1348
        %1480 = vmatpush.msra.mxu0 %v1345
        %1481 = vmatpush.msra.mxu0 %v1342
        %1482 = vmatpush.msra.mxu0 %v1339
        %1483 = vmatpush.msra.mxu0 %v1336
        %1484 = vmatpush.msra.mxu0 %v1333
        %1485 = vmatpush.msra.mxu0 %v1330
        %1486 = vmatpush.msra.mxu0 %v1327
        %1487 = vmatpush.msra.mxu0 %v1324
        %1488 = vmatpush.msra.mxu0 %v1321
        %1489 = vmatpush.msra.mxu0 %v1318
        %1490 = vmatpush.msra.mxu0 %v1315
        %1491 = vmatpush.msra.mxu0 %v1312
        %1492 = vmatpush.msra.mxu0 %v1309
        %1493 = vmatpush.msra.mxu0 %v1306
        %1494 = vmatmul.f32.gmra.mxu0 %v1452
        %v1495 = vpop.f32.mrf.mxu0
        %v1496 = vadd.f32 %v1473, %v1495
        %1497 = vmatmul.f32.gmra.mxu0 %v1454
        %v1498 = vpop.f32.mrf.mxu0
        %v1499 = vadd.f32 %v1476, %v1498
        %1500 = vdwg.mxu0
        %v1501 = vld [vmem:[%s13] sm:$0xff]
        %v1502 = vld [vmem:[%s13 + $0x8] sm:$0xff]
        %1503 = vmatpush.msra.mxu0 %v1303
        %1504 = vmatpush.msra.mxu0 %v1300
        %1505 = vmatpush.msra.mxu0 %v1297
        %1506 = vmatpush.msra.mxu0 %v1294
        %1507 = vmatpush.msra.mxu0 %v1291
        %1508 = vmatpush.msra.mxu0 %v1288
        %1509 = vmatpush.msra.mxu0 %v1285
        %1510 = vmatpush.msra.mxu0 %v1282
        %1511 = vmatpush.msra.mxu0 %v1279
        %1512 = vmatpush.msra.mxu0 %v1276
        %1513 = vmatpush.msra.mxu0 %v1273
        %1514 = vmatpush.msra.mxu0 %v1270
        %1515 = vmatpush.msra.mxu0 %v1267
        %1516 = vmatpush.msra.mxu0 %v1264
        %1517 = vmatpush.msra.mxu0 %v1261
        %1518 = vmatpush.msra.mxu0 %v1258
        %1519 = vmatmul.f32.gmra.mxu0 %v1501
        %v1520 = vpop.f32.mrf.mxu0
        %v1521 = vadd.f32 0.0, %v1520
        %1522 = vdwg.mxu0
        %1523 = vmatpush.msra.mxu0 %v1351
        %1524 = vmatpush.msra.mxu0 %v1348
        %1525 = vmatpush.msra.mxu0 %v1345
        %1526 = vmatpush.msra.mxu0 %v1342
        %1527 = vmatpush.msra.mxu0 %v1339
        %1528 = vmatpush.msra.mxu0 %v1336
        %1529 = vmatpush.msra.mxu0 %v1333
        %1530 = vmatpush.msra.mxu0 %v1330
        %1531 = vmatpush.msra.mxu0 %v1327
        %1532 = vmatpush.msra.mxu0 %v1324
        %1533 = vmatpush.msra.mxu0 %v1321
        %1534 = vmatpush.msra.mxu0 %v1318
        %1535 = vmatpush.msra.mxu0 %v1315
        %1536 = vmatpush.msra.mxu0 %v1312
        %1537 = vmatpush.msra.mxu0 %v1309
        %1538 = vmatpush.msra.mxu0 %v1306
        %1539 = vmatmul.f32.gmra.mxu0 %v1502
        %v1540 = vpop.f32.mrf.mxu0
        %v1541 = vadd.f32 %v1521, %v1540
        %1542 = vdwg.mxu0
        %v1543 = vadd.s32 %v1022, 16
        %v1544 = vadd.s32 %v1022, 24
        %v1545 = vadd.s32 %v1022, 32
        %v1546 = vadd.s32 %v1022, 40
        %v1547 = vadd.s32 %v1022, 48
        %v1548 = vadd.s32 %v1022, 56
        %v1549 = vadd.s32 %v1022, 64
        %v1550 = vadd.s32 %v1022, 72
        %v1551 = vadd.s32 %v1022, 80
        %v1552 = vadd.s32 %v1022, 88
        %v1553 = vadd.s32 %v1022, 96
        %v1554 = vadd.s32 %v1022, 104
        %v1555 = vadd.s32 %v1022, 112
        %v1556 = vadd.s32 %v1022, 120
        %v1557 = vadd.s32 %v1022, 128
        %v1558 = vadd.s32 %v1022, 136
        %v1559 = vadd.s32 %v1022, 144
        %v1560 = vadd.s32 %v1022, 152
        %v1561 = vadd.s32 %v1022, 160
        %v1562 = vadd.s32 %v1022, 168
        %v1563 = vadd.s32 %v1022, 176
        %v1564 = vadd.s32 %v1022, 184
        %v1565 = vadd.s32 %v1022, 192
        %v1566 = vadd.s32 %v1022, 200
        %v1567 = vadd.s32 %v1022, 208
        %v1568 = vadd.s32 %v1022, 216
        %v1569 = vadd.s32 %v1022, 224
        %v1570 = vadd.s32 %v1022, 232
        %v1571 = vadd.s32 %v1022, 240
        %v1572 = vadd.s32 %v1022, 248
        %v1573 = vand.u32 %v1022, 15
        %v1574 = vand.u32 %v1023, 15
        %v1575 = vand.u32 %v1543, 15
        %v1576 = vand.u32 %v1544, 15
        %v1577 = vand.u32 %v1545, 15
        %v1578 = vand.u32 %v1546, 15
        %v1579 = vand.u32 %v1547, 15
        %v1580 = vand.u32 %v1548, 15
        %v1581 = vand.u32 %v1549, 15
        %v1582 = vand.u32 %v1550, 15
        %v1583 = vand.u32 %v1551, 15
        %v1584 = vand.u32 %v1552, 15
        %v1585 = vand.u32 %v1553, 15
        %v1586 = vand.u32 %v1554, 15
        %v1587 = vand.u32 %v1555, 15
        %v1588 = vand.u32 %v1556, 15
        %v1589 = vand.u32 %v1557, 15
        %v1590 = vand.u32 %v1558, 15
        %v1591 = vand.u32 %v1559, 15
        %v1592 = vand.u32 %v1560, 15
        %v1593 = vand.u32 %v1561, 15
        %v1594 = vand.u32 %v1562, 15
        %v1595 = vand.u32 %v1563, 15
        %v1596 = vand.u32 %v1564, 15
        %v1597 = vand.u32 %v1565, 15
        %v1598 = vand.u32 %v1566, 15
        %v1599 = vand.u32 %v1567, 15
        %v1600 = vand.u32 %v1568, 15
        %v1601 = vand.u32 %v1569, 15
        %v1602 = vand.u32 %v1570, 15
        %v1603 = vand.u32 %v1571, 15
        %v1604 = vand.u32 %v1572, 15
        %vm1605 = vcmp.ge.s32.totalorder %v1573, 1
        %vm1606 = vcmp.ge.s32.totalorder %v1574, 1
        %vm1607 = vcmp.ge.s32.totalorder %v1575, 1
        %vm1608 = vcmp.ge.s32.totalorder %v1576, 1
        %vm1609 = vcmp.ge.s32.totalorder %v1577, 1
        %vm1610 = vcmp.ge.s32.totalorder %v1578, 1
        %vm1611 = vcmp.ge.s32.totalorder %v1579, 1
        %vm1612 = vcmp.ge.s32.totalorder %v1580, 1
        %vm1613 = vcmp.ge.s32.totalorder %v1581, 1
        %vm1614 = vcmp.ge.s32.totalorder %v1582, 1
        %vm1615 = vcmp.ge.s32.totalorder %v1583, 1
        %vm1616 = vcmp.ge.s32.totalorder %v1584, 1
        %vm1617 = vcmp.ge.s32.totalorder %v1585, 1
        %vm1618 = vcmp.ge.s32.totalorder %v1586, 1
        %vm1619 = vcmp.ge.s32.totalorder %v1587, 1
        %vm1620 = vcmp.ge.s32.totalorder %v1588, 1
        %vm1621 = vcmp.ge.s32.totalorder %v1589, 1
        %vm1622 = vcmp.ge.s32.totalorder %v1590, 1
        %vm1623 = vcmp.ge.s32.totalorder %v1591, 1
        %vm1624 = vcmp.ge.s32.totalorder %v1592, 1
        %vm1625 = vcmp.ge.s32.totalorder %v1593, 1
        %vm1626 = vcmp.ge.s32.totalorder %v1594, 1
        %vm1627 = vcmp.ge.s32.totalorder %v1595, 1
        %vm1628 = vcmp.ge.s32.totalorder %v1596, 1
        %vm1629 = vcmp.ge.s32.totalorder %v1597, 1
        %vm1630 = vcmp.ge.s32.totalorder %v1598, 1
        %vm1631 = vcmp.ge.s32.totalorder %v1599, 1
        %vm1632 = vcmp.ge.s32.totalorder %v1600, 1
        %vm1633 = vcmp.ge.s32.totalorder %v1601, 1
        %vm1634 = vcmp.ge.s32.totalorder %v1602, 1
        %vm1635 = vcmp.ge.s32.totalorder %v1603, 1
        %vm1636 = vcmp.ge.s32.totalorder %v1604, 1
        %vm1637 = vcmp.le.s32.totalorder %v1573, 14
        %vm1638 = vcmp.le.s32.totalorder %v1574, 14
        %vm1639 = vcmp.le.s32.totalorder %v1575, 14
        %vm1640 = vcmp.le.s32.totalorder %v1576, 14
        %vm1641 = vcmp.le.s32.totalorder %v1577, 14
        %vm1642 = vcmp.le.s32.totalorder %v1578, 14
        %vm1643 = vcmp.le.s32.totalorder %v1579, 14
        %vm1644 = vcmp.le.s32.totalorder %v1580, 14
        %vm1645 = vcmp.le.s32.totalorder %v1581, 14
        %vm1646 = vcmp.le.s32.totalorder %v1582, 14
        %vm1647 = vcmp.le.s32.totalorder %v1583, 14
        %vm1648 = vcmp.le.s32.totalorder %v1584, 14
        %vm1649 = vcmp.le.s32.totalorder %v1585, 14
        %vm1650 = vcmp.le.s32.totalorder %v1586, 14
        %vm1651 = vcmp.le.s32.totalorder %v1587, 14
        %vm1652 = vcmp.le.s32.totalorder %v1588, 14
        %vm1653 = vcmp.le.s32.totalorder %v1589, 14
        %vm1654 = vcmp.le.s32.totalorder %v1590, 14
        %vm1655 = vcmp.le.s32.totalorder %v1591, 14
        %vm1656 = vcmp.le.s32.totalorder %v1592, 14
        %vm1657 = vcmp.le.s32.totalorder %v1593, 14
        %vm1658 = vcmp.le.s32.totalorder %v1594, 14
        %vm1659 = vcmp.le.s32.totalorder %v1595, 14
        %vm1660 = vcmp.le.s32.totalorder %v1596, 14
        %vm1661 = vcmp.le.s32.totalorder %v1597, 14
        %vm1662 = vcmp.le.s32.totalorder %v1598, 14
        %vm1663 = vcmp.le.s32.totalorder %v1599, 14
        %vm1664 = vcmp.le.s32.totalorder %v1600, 14
        %vm1665 = vcmp.le.s32.totalorder %v1601, 14
        %vm1666 = vcmp.le.s32.totalorder %v1602, 14
        %vm1667 = vcmp.le.s32.totalorder %v1603, 14
        %vm1668 = vcmp.le.s32.totalorder %v1604, 14
        %v1669 = vand.u32 %v1022, 7
        %v1670 = vand.u32 %v1023, 7
        %v1671 = vand.u32 %v1543, 7
        %v1672 = vand.u32 %v1544, 7
        %v1673 = vand.u32 %v1545, 7
        %v1674 = vand.u32 %v1546, 7
        %v1675 = vand.u32 %v1547, 7
        %v1676 = vand.u32 %v1548, 7
        %vm1677 = vcmp.ge.s32.totalorder %v1669, 1
        %vm1678 = vcmp.ge.s32.totalorder %v1670, 1
        %vm1679 = vcmp.ge.s32.totalorder %v1671, 1
        %vm1680 = vcmp.ge.s32.totalorder %v1672, 1
        %vm1681 = vcmp.ge.s32.totalorder %v1673, 1
        %vm1682 = vcmp.ge.s32.totalorder %v1674, 1
        %vm1683 = vcmp.ge.s32.totalorder %v1675, 1
        %vm1684 = vcmp.ge.s32.totalorder %v1676, 1
        %vm1685 = vcmp.le.s32.totalorder %v1669, 6
        %vm1686 = vcmp.le.s32.totalorder %v1670, 6
        %vm1687 = vcmp.le.s32.totalorder %v1671, 6
        %vm1688 = vcmp.le.s32.totalorder %v1672, 6
        %vm1689 = vcmp.le.s32.totalorder %v1673, 6
        %vm1690 = vcmp.le.s32.totalorder %v1674, 6
        %vm1691 = vcmp.le.s32.totalorder %v1675, 6
        %vm1692 = vcmp.le.s32.totalorder %v1676, 6
        %v1693 = vand.u32 %v1022, 3
        %v1694 = vand.u32 %v1023, 3
        %vm1695 = vcmp.ge.s32.totalorder %v1693, 1
        %vm1696 = vcmp.ge.s32.totalorder %v1694, 1
        %vm1697 = vcmp.le.s32.totalorder %v1693, 2
        %vm1698 = vcmp.le.s32.totalorder %v1694, 2
        %v1699 = vand.u32 %v1022, 1
        %vm1700 = vcmp.ge.s32.totalorder %v1699, 1
        %vm1701 = vcmp.le.s32.totalorder %v1699, 0
        %s1702 = scalar_lea.vmem %s7, 12
        %v1703 = vld [vmem:[%s1702] sm:$0x7]
        %v1704 = vld [vmem:[%s1702 + $0x4] sm:$0x7]
        %v1705 = vld [vmem:[%s1702 + $0x8] sm:$0x7]
        %v1707 = vrot.slane %v1541, 7
        %vm1709 = vcmask 1040384
        %v1710 = vsel %vm1709, 0.0, %v1707
        %v1711 = vsel %vm1700, %v1710, 0.0
        %v1712 = vrot.slane %v1541, 1
        %vm1714 = vcmask 1046528
        %v1715 = vsel %vm1714, %v1712, 0.0
        %v1716 = vsel %vm1701, %v1715, 0.0
        %v1717 = vperm.slane %v1703, 0
        %v1718 = vmul.f32 %v1711, %v1717
        %v1719 = vperm.slane %v1703, 1
        %v1720 = vmul.f32 %v1541, %v1719
        %v1721 = vadd.f32 %v1718, %v1720
        %v1722 = vperm.slane %v1703, 2
        %v1723 = vmul.f32 %v1716, %v1722
        %v1724 = vadd.f32 %v1721, %v1723
        %v1725 = vperm.slane %v1704, 0
        %v1726 = vmul.f32 %v1711, %v1725
        %v1727 = vperm.slane %v1704, 1
        %v1728 = vmul.f32 %v1541, %v1727
        %v1729 = vadd.f32 %v1726, %v1728
        %v1730 = vperm.slane %v1704, 2
        %v1731 = vmul.f32 %v1716, %v1730
        %v1732 = vadd.f32 %v1729, %v1731
        %v1733 = vperm.slane %v1705, 0
        %v1734 = vmul.f32 %v1711, %v1733
        %v1735 = vperm.slane %v1705, 1
        %v1736 = vmul.f32 %v1541, %v1735
        %v1737 = vadd.f32 %v1734, %v1736
        %v1738 = vperm.slane %v1705, 2
        %v1739 = vmul.f32 %v1716, %v1738
        %v1740 = vadd.f32 %v1737, %v1739
        %v1742 = vrot.slane %v1724, 6
        %vm1744 = vcmask 1041408
        %v1745 = vsel %vm1744, 0.0, %v1742
        %v1746 = vadd.f32 %v1745, %v1732
        %v1748 = vrot.slane %v1740, 2
        %vm1750 = vcmask 1045504
        %v1751 = vsel %vm1750, %v1748, 0.0
        %v1752 = vadd.f32 %v1746, %v1751
        %v1753 = vld [vmem:[%s14] sm:$0xff]
        %v1754 = vld [vmem:[%s14 + $0x8] sm:$0xff]
        %vm1755 = vcmask 64512
        %v1757 = vsel %vm1755, %v1753, 0
        %v1760 = vsel %vm1755, %v1754, 0
        %1762 = vmatpush.msra.mxu0 0.0
        %1763 = vmatpush.msra.mxu0 0.0
        %1764 = vmatpush.msra.mxu0 0.0
        %1765 = vmatpush.msra.mxu0 0.0
        %1766 = vmatpush.msra.mxu0 0.0
        %1767 = vmatpush.msra.mxu0 0.0
        %1768 = vmatpush.msra.mxu0 0.0
        %1769 = vmatpush.msra.mxu0 0.0
        %1770 = vmatpush.msra.mxu0 0.0
        %1771 = vmatpush.msra.mxu0 0.0
        %1772 = vmatpush.msra.mxu0 0.0
        %1773 = vmatpush.msra.mxu0 0.0
        %1774 = vmatpush.msra.mxu0 0.0
        %1775 = vmatpush.msra.mxu0 0.0
        %1776 = vmatpush.msra.mxu0 0.0
        %1777 = vmatpush.msra.mxu0 %v1752
        %1778 = vmatmul.f32.gmra.mxu0 %v1757
        %v1779 = vpop.f32.mrf.mxu0
        %v1780 = vadd.f32 0.0, %v1779
        %1781 = vmatmul.f32.gmra.mxu0 %v1760
        %v1782 = vpop.f32.mrf.mxu0
        %v1783 = vadd.f32 0.0, %v1782
        %1784 = vdwg.mxu0
        %v1785 = vld [vmem:[%s7] sm:$0x7]
        %v1786 = vld [vmem:[%s7 + $0x4] sm:$0x7]
        %v1787 = vld [vmem:[%s7 + $0x8] sm:$0x7]
        %v1790 = vrot.slane %v1496, 7
        %v1791 = vrot.slane %v1499, 7
        %v1792 = vsel %vm1709, %v1790, %v1791
        %v1795 = vsel %vm1709, 0.0, %v1790
        %v1796 = vsel %vm1695, %v1795, 0.0
        %v1797 = vsel %vm1696, %v1792, 0.0
        %v1798 = vrot.slane %v1496, 1
        %v1799 = vrot.slane %v1499, 1
        %v1800 = vsel %vm1714, %v1798, %v1799
        %v1803 = vsel %vm1714, %v1799, 0.0
        %v1804 = vsel %vm1697, %v1800, 0.0
        %v1805 = vsel %vm1698, %v1803, 0.0
        %v1806 = vperm.slane %v1785, 0
        %v1807 = vmul.f32 %v1796, %v1806
        %v1808 = vmul.f32 %v1797, %v1806
        %v1809 = vperm.slane %v1785, 1
        %v1810 = vmul.f32 %v1496, %v1809
        %v1811 = vmul.f32 %v1499, %v1809
        %v1812 = vadd.f32 %v1807, %v1810
        %v1813 = vadd.f32 %v1808, %v1811
        %v1814 = vperm.slane %v1785, 2
        %v1815 = vmul.f32 %v1804, %v1814
        %v1816 = vmul.f32 %v1805, %v1814
        %v1817 = vadd.f32 %v1812, %v1815
        %v1818 = vadd.f32 %v1813, %v1816
        %v1819 = vperm.slane %v1786, 0
        %v1820 = vmul.f32 %v1796, %v1819
        %v1821 = vmul.f32 %v1797, %v1819
        %v1822 = vperm.slane %v1786, 1
        %v1823 = vmul.f32 %v1496, %v1822
        %v1824 = vmul.f32 %v1499, %v1822
        %v1825 = vadd.f32 %v1820, %v1823
        %v1826 = vadd.f32 %v1821, %v1824
        %v1827 = vperm.slane %v1786, 2
        %v1828 = vmul.f32 %v1804, %v1827
        %v1829 = vmul.f32 %v1805, %v1827
        %v1830 = vadd.f32 %v1825, %v1828
        %v1831 = vadd.f32 %v1826, %v1829
        %v1832 = vperm.slane %v1787, 0
        %v1833 = vmul.f32 %v1796, %v1832
        %v1834 = vmul.f32 %v1797, %v1832
        %v1835 = vperm.slane %v1787, 1
        %v1836 = vmul.f32 %v1496, %v1835
        %v1837 = vmul.f32 %v1499, %v1835
        %v1838 = vadd.f32 %v1833, %v1836
        %v1839 = vadd.f32 %v1834, %v1837
        %v1840 = vperm.slane %v1787, 2
        %v1841 = vmul.f32 %v1804, %v1840
        %v1842 = vmul.f32 %v1805, %v1840
        %v1843 = vadd.f32 %v1838, %v1841
        %v1844 = vadd.f32 %v1839, %v1842
        %v1847 = vrot.slane %v1817, 4
        %v1848 = vrot.slane %v1818, 4
        %v1849 = vsel %vm971, %v1847, %v1848
        %v1852 = vsel %vm971, 0.0, %v1847
        %v1853 = vadd.f32 %v1852, %v1830
        %v1854 = vadd.f32 %v1849, %v1831
        %v1857 = vrot.slane %v1843, 4
        %v1858 = vrot.slane %v1844, 4
        %v1859 = vsel %vm971, %v1857, %v1858
        %v1862 = vsel %vm971, %v1858, 0.0
        %v1863 = vadd.f32 %v1853, %v1859
        %v1864 = vadd.f32 %v1854, %v1862
        %v1865 = vld [vmem:[%s8] sm:$0xff]
        %v1866 = vld [vmem:[%s8 + $0x8] sm:$0xff]
        %v1867 = vld [vmem:[%s8 + $0x10] sm:$0xff]
        %v1868 = vld [vmem:[%s8 + $0x18] sm:$0xff]
        %v1869 = vld [vmem:[%s8 + $0x20] sm:$0xff]
        %v1870 = vld [vmem:[%s8 + $0x28] sm:$0xff]
        %v1871 = vld [vmem:[%s9] sm:$0xff]
        %v1872 = vld [vmem:[%s9 + $0x8] sm:$0xff]
        %v1873 = vld [vmem:[%s9 + $0x10] sm:$0xff]
        %v1874 = vld [vmem:[%s9 + $0x18] sm:$0xff]
        %v1875 = vld [vmem:[%s9 + $0x20] sm:$0xff]
        %v1876 = vld [vmem:[%s9 + $0x28] sm:$0xff]
        %v1877 = vld [vmem:[%s10] sm:$0xff]
        %v1878 = vld [vmem:[%s10 + $0x8] sm:$0xff]
        %v1879 = vld [vmem:[%s10 + $0x10] sm:$0xff]
        %v1880 = vld [vmem:[%s10 + $0x18] sm:$0xff]
        %v1881 = vld [vmem:[%s10 + $0x20] sm:$0xff]
        %v1882 = vld [vmem:[%s10 + $0x28] sm:$0xff]
        %v1883 = vadd.f32 %v1863, %v1780
        %v1884 = vadd.f32 %v1864, %v1783
        %v1885 = vsel %vm645, %v1863, 0.0
        %v1886 = vsel %vm645, %v1864, 0.0
        %v1887 = vadd.f32 %v1885, %v1886
        %v1888 = vrot.slane %v1887, 4
        %v1889 = vadd.f32 %v1887, %v1888
        %v1890 = vrot.slane %v1889, 2
        %v1891 = vadd.f32 %v1889, %v1890
        %v1892 = vrot.slane %v1891, 1
        %v1893 = vadd.f32 %v1891, %v1892
        %v1894 = vrcp.pop 16.0
        %v1895 = vmul.f32 16.0, %v1894
        %v1896 = vsub.f32 1.0, %v1895
        %v1897 = vmul.f32 %v1894, %v1896
        %v1898 = vadd.f32 %v1894, %v1897
        %vm1899 = vweird.f32 %v1894
        %v1900 = vsel %vm1899, %v1894, %v1898
        %v1901 = vmul.f32 %v1893, %v1900
        %v1902 = vsel %vm645, %v1780, 0.0
        %v1903 = vsel %vm645, %v1783, 0.0
        %v1904 = vadd.f32 %v1902, %v1903
        %v1905 = vrot.slane %v1904, 4
        %v1906 = vadd.f32 %v1904, %v1905
        %v1907 = vrot.slane %v1906, 2
        %v1908 = vadd.f32 %v1906, %v1907
        %v1909 = vrot.slane %v1908, 1
        %v1910 = vadd.f32 %v1908, %v1909
        %v1911 = vmul.f32 %v1910, %v1900
        %v1912 = vadd.f32 %v1901, %v1911
        %v1914 = vsel %vm645, %v1912, 0
        %1916 = vmatpush.msra.mxu0 0.0
        %1917 = vmatpush.msra.mxu0 0.0
        %1918 = vmatpush.msra.mxu0 0.0
        %1919 = vmatpush.msra.mxu0 0.0
        %1920 = vmatpush.msra.mxu0 0.0
        %1921 = vmatpush.msra.mxu0 0.0
        %1922 = vmatpush.msra.mxu0 0.0
        %1923 = vmatpush.msra.mxu0 0.0
        %1924 = vmatpush.msra.mxu0 0.0
        %1925 = vmatpush.msra.mxu0 0.0
        %1926 = vmatpush.msra.mxu0 %v1870
        %1927 = vmatpush.msra.mxu0 %v1869
        %1928 = vmatpush.msra.mxu0 %v1868
        %1929 = vmatpush.msra.mxu0 %v1867
        %1930 = vmatpush.msra.mxu0 %v1866
        %1931 = vmatpush.msra.mxu0 %v1865
        %1932 = vmatmul.f32.gmra.mxu0 %v1914
        %v1933 = vpop.f32.mrf.mxu0
        %v1934 = vadd.f32 0.0, %v1933
        %1935 = vdwg.mxu0
        %v1937 = vsel %vm645, %v1901, 0
        %1939 = vmatpush.msra.mxu0 0.0
        %1940 = vmatpush.msra.mxu0 0.0
        %1941 = vmatpush.msra.mxu0 0.0
        %1942 = vmatpush.msra.mxu0 0.0
        %1943 = vmatpush.msra.mxu0 0.0
        %1944 = vmatpush.msra.mxu0 0.0
        %1945 = vmatpush.msra.mxu0 0.0
        %1946 = vmatpush.msra.mxu0 0.0
        %1947 = vmatpush.msra.mxu0 0.0
        %1948 = vmatpush.msra.mxu0 0.0
        %1949 = vmatpush.msra.mxu0 %v1876
        %1950 = vmatpush.msra.mxu0 %v1875
        %1951 = vmatpush.msra.mxu0 %v1874
        %1952 = vmatpush.msra.mxu0 %v1873
        %1953 = vmatpush.msra.mxu0 %v1872
        %1954 = vmatpush.msra.mxu0 %v1871
        %1955 = vmatmul.f32.gmra.mxu0 %v1937
        %v1956 = vpop.f32.mrf.mxu0
        %v1957 = vadd.f32 0.0, %v1956
        %1958 = vdwg.mxu0
        %v1960 = vsel %vm645, %v1911, 0
        %1962 = vmatpush.msra.mxu0 0.0
        %1963 = vmatpush.msra.mxu0 0.0
        %1964 = vmatpush.msra.mxu0 0.0
        %1965 = vmatpush.msra.mxu0 0.0
        %1966 = vmatpush.msra.mxu0 0.0
        %1967 = vmatpush.msra.mxu0 0.0
        %1968 = vmatpush.msra.mxu0 0.0
        %1969 = vmatpush.msra.mxu0 0.0
        %1970 = vmatpush.msra.mxu0 0.0
        %1971 = vmatpush.msra.mxu0 0.0
        %1972 = vmatpush.msra.mxu0 %v1882
        %1973 = vmatpush.msra.mxu0 %v1881
        %1974 = vmatpush.msra.mxu0 %v1880
        %1975 = vmatpush.msra.mxu0 %v1879
        %1976 = vmatpush.msra.mxu0 %v1878
        %1977 = vmatpush.msra.mxu0 %v1877
        %1978 = vmatmul.f32.gmra.mxu0 %v1960
        %v1979 = vpop.f32.mrf.mxu0
        %v1980 = vadd.f32 0.0, %v1979
        %1981 = vdwg.mxu0
        %v1982 = vperm.slane %v1934, 0
        %v1983 = vsel %vm1026, %v1982, 0.0
        %vm1984 = vcmask 18432
        %v1985 = vsel %vm1984, %v1983, 0.0
        %1986 = vadd.xlane.f32.xlu0 %v1985
        %v1987 = vpop.xlane.xlu0 %1986
        %v1988 = vmul.f32 %v1987, %v1901
        %v1989 = vmul.f32 %v1988, 0.14433756
        %vm1990 = vcmask 387072
        %v1991 = vsel %vm1990, %v1989, -inf
        %v1992 = vrot.slane %v1991, 4
        %v1993 = vmax.f32 %v1991, %v1992
        %v1994 = vrot.slane %v1993, 2
        %v1995 = vmax.f32 %v1993, %v1994
        %v1996 = vrot.slane %v1995, 1
        %v1997 = vmax.f32 %v1995, %v1996
        %v1998 = vsub.f32 %v1989, %v1997
        %v1999 = vmul.f32 %v1998, 1.442695
        %v2000 = vpow.pop %v1999
        %v2001 = vsel %vm1990, %v2000, 0.0
        %v2002 = vrot.slane %v2001, 4
        %v2003 = vadd.f32 %v2001, %v2002
        %v2004 = vrot.slane %v2003, 2
        %v2005 = vadd.f32 %v2003, %v2004
        %v2006 = vrot.slane %v2005, 1
        %v2007 = vadd.f32 %v2005, %v2006
        %v2008 = vrcp.pop %v2007
        %v2009 = vmul.f32 %v2007, %v2008
        %v2010 = vsub.f32 1.0, %v2009
        %v2011 = vmul.f32 %v2008, %v2010
        %v2012 = vadd.f32 %v2008, %v2011
        %vm2013 = vweird.f32 %v2007
        %vm2014 = vweird.f32 %v2008
        %vm2015 = vmor %vm2013, %vm2014
        %v2016 = vsel %vm2015, %v2008, %v2012
        %v2017 = vand.u32 2147483647, %v2007
        %vm2018 = vcmp.eq.f32.partialorder %v2017, 8.507059e+37
        %v2019 = vand.u32 %v2007, 2147483648
        %v2020 = vor.u32 1.1754944e-38, %v2019
        %v2021 = vsel %vm2018, %v2020, %v2016
        %v2022 = vmul.f32 %v2000, %v2021
        %v2023 = vmul.f32 %v1987, %v1911
        %v2024 = vmul.f32 %v2023, 0.14433756
        %v2025 = vsel %vm1990, %v2024, -inf
        %v2026 = vrot.slane %v2025, 4
        %v2027 = vmax.f32 %v2025, %v2026
        %v2028 = vrot.slane %v2027, 2
        %v2029 = vmax.f32 %v2027, %v2028
        %v2030 = vrot.slane %v2029, 1
        %v2031 = vmax.f32 %v2029, %v2030
        %v2032 = vsub.f32 %v2024, %v2031
        %v2033 = vmul.f32 %v2032, 1.442695
        %v2034 = vpow.pop %v2033
        %v2035 = vsel %vm1990, %v2034, 0.0
        %v2036 = vrot.slane %v2035, 4
        %v2037 = vadd.f32 %v2035, %v2036
        %v2038 = vrot.slane %v2037, 2
        %v2039 = vadd.f32 %v2037, %v2038
        %v2040 = vrot.slane %v2039, 1
        %v2041 = vadd.f32 %v2039, %v2040
        %v2042 = vrcp.pop %v2041
        %v2043 = vmul.f32 %v2041, %v2042
        %v2044 = vsub.f32 1.0, %v2043
        %v2045 = vmul.f32 %v2042, %v2044
        %v2046 = vadd.f32 %v2042, %v2045
        %vm2047 = vweird.f32 %v2041
        %vm2048 = vweird.f32 %v2042
        %vm2049 = vmor %vm2047, %vm2048
        %v2050 = vsel %vm2049, %v2042, %v2046
        %v2051 = vand.u32 2147483647, %v2041
        %vm2052 = vcmp.eq.f32.partialorder %v2051, 8.507059e+37
        %v2053 = vand.u32 %v2041, 2147483648
        %v2054 = vor.u32 1.1754944e-38, %v2053
        %v2055 = vsel %vm2052, %v2054, %v2050
        %v2056 = vmul.f32 %v2034, %v2055
        %v2057 = vperm.slane %v1957, 0
        %v2058 = vsel %vm1026, %v2057, 0.0
        %v2059 = vsel %vm1984, %v2058, 0.0
        %2060 = vadd.xlane.f32.xlu0 %v2059
        %v2061 = vpop.xlane.xlu0 %2060
        %v2062 = vmul.f32 %v2022, %v2061
        %v2063 = vsel %vm1990, %v2062, 0.0
        %v2064 = vrot.slane %v2063, 4
        %v2065 = vadd.f32 %v2063, %v2064
        %v2066 = vrot.slane %v2065, 2
        %v2067 = vadd.f32 %v2065, %v2066
        %v2068 = vrot.slane %v2067, 1
        %v2069 = vadd.f32 %v2067, %v2068
        %v2070 = vmul.f32 %v2069, 0.5
        %v2071 = vtanh.pop %v2070
        %v2072 = vmul.f32 %v2071, 0.5
        %v2073 = vadd.f32 %v2072, 0.5
        %v2074 = vperm.slane %v1980, 0
        %v2075 = vsel %vm1026, %v2074, 0.0
        %v2076 = vsel %vm1984, %v2075, 0.0
        %2077 = vadd.xlane.f32.xlu0 %v2076
        %v2078 = vpop.xlane.xlu0 %2077
        %v2079 = vmul.f32 %v2056, %v2078
        %v2080 = vsel %vm1990, %v2079, 0.0
        %v2081 = vrot.slane %v2080, 4
        %v2082 = vadd.f32 %v2080, %v2081
        %v2083 = vrot.slane %v2082, 2
        %v2084 = vadd.f32 %v2082, %v2083
        %v2085 = vrot.slane %v2084, 1
        %v2086 = vadd.f32 %v2084, %v2085
        %v2087 = vmul.f32 %v2086, 0.5
        %v2088 = vtanh.pop %v2087
        %v2089 = vmul.f32 %v2088, 0.5
        %v2090 = vadd.f32 %v2089, 0.5
        %v2091 = vmul.f32 %v1863, %v2073
        %v2092 = vmul.f32 %v1864, %v2073
        %v2093 = vadd.f32 %v1883, %v2091
        %v2094 = vadd.f32 %v1884, %v2092
        %v2095 = vmul.f32 %v1780, %v2090
        %v2096 = vmul.f32 %v1783, %v2090
        %v2097 = vadd.f32 %v2093, %v2095
        %v2098 = vadd.f32 %v2094, %v2096
        %s2099 = scalar_lea.vmem %s7, 24
        %v2100 = vld [vmem:[%s2099] sm:$0x7]
        %v2101 = vld [vmem:[%s2099 + $0x4] sm:$0x7]
        %v2102 = vld [vmem:[%s2099 + $0x8] sm:$0x7]
        %v2111 = vrot.slane %v1428, 7
        %v2112 = vrot.slane %v1431, 7
        %v2113 = vsel %vm1709, %v2111, %v2112
        %v2114 = vrot.slane %v1434, 7
        %v2115 = vsel %vm1709, %v2112, %v2114
        %v2116 = vrot.slane %v1437, 7
        %v2117 = vsel %vm1709, %v2114, %v2116
        %v2118 = vrot.slane %v1440, 7
        %v2119 = vsel %vm1709, %v2116, %v2118
        %v2120 = vrot.slane %v1443, 7
        %v2121 = vsel %vm1709, %v2118, %v2120
        %v2122 = vrot.slane %v1446, 7
        %v2123 = vsel %vm1709, %v2120, %v2122
        %v2124 = vrot.slane %v1449, 7
        %v2125 = vsel %vm1709, %v2122, %v2124
        %v2134 = vsel %vm1709, 0.0, %v2111
        %v2135 = vsel %vm1677, %v2134, 0.0
        %v2136 = vsel %vm1678, %v2113, 0.0
        %v2137 = vsel %vm1679, %v2115, 0.0
        %v2138 = vsel %vm1680, %v2117, 0.0
        %v2139 = vsel %vm1681, %v2119, 0.0
        %v2140 = vsel %vm1682, %v2121, 0.0
        %v2141 = vsel %vm1683, %v2123, 0.0
        %v2142 = vsel %vm1684, %v2125, 0.0
        %v2143 = vrot.slane %v1428, 1
        %v2144 = vrot.slane %v1431, 1
        %v2145 = vsel %vm1714, %v2143, %v2144
        %v2146 = vrot.slane %v1434, 1
        %v2147 = vsel %vm1714, %v2144, %v2146
        %v2148 = vrot.slane %v1437, 1
        %v2149 = vsel %vm1714, %v2146, %v2148
        %v2150 = vrot.slane %v1440, 1
        %v2151 = vsel %vm1714, %v2148, %v2150
        %v2152 = vrot.slane %v1443, 1
        %v2153 = vsel %vm1714, %v2150, %v2152
        %v2154 = vrot.slane %v1446, 1
        %v2155 = vsel %vm1714, %v2152, %v2154
        %v2156 = vrot.slane %v1449, 1
        %v2157 = vsel %vm1714, %v2154, %v2156
        %v2166 = vsel %vm1714, %v2156, 0.0
        %v2167 = vsel %vm1685, %v2145, 0.0
        %v2168 = vsel %vm1686, %v2147, 0.0
        %v2169 = vsel %vm1687, %v2149, 0.0
        %v2170 = vsel %vm1688, %v2151, 0.0
        %v2171 = vsel %vm1689, %v2153, 0.0
        %v2172 = vsel %vm1690, %v2155, 0.0
        %v2173 = vsel %vm1691, %v2157, 0.0
        %v2174 = vsel %vm1692, %v2166, 0.0
        %v2175 = vperm.slane %v2100, 0
        %v2176 = vmul.f32 %v2135, %v2175
        %v2177 = vmul.f32 %v2136, %v2175
        %v2178 = vmul.f32 %v2137, %v2175
        %v2179 = vmul.f32 %v2138, %v2175
        %v2180 = vmul.f32 %v2139, %v2175
        %v2181 = vmul.f32 %v2140, %v2175
        %v2182 = vmul.f32 %v2141, %v2175
        %v2183 = vperm.slane %v2100, 1
        %v2184 = vmul.f32 %v1428, %v2183
        %v2185 = vmul.f32 %v1431, %v2183
        %v2186 = vmul.f32 %v1434, %v2183
        %v2187 = vmul.f32 %v1437, %v2183
        %v2188 = vmul.f32 %v1440, %v2183
        %v2189 = vmul.f32 %v1443, %v2183
        %v2190 = vmul.f32 %v1446, %v2183
        %v2191 = vadd.f32 %v2176, %v2184
        %v2192 = vadd.f32 %v2177, %v2185
        %v2193 = vadd.f32 %v2178, %v2186
        %v2194 = vadd.f32 %v2179, %v2187
        %v2195 = vadd.f32 %v2180, %v2188
        %v2196 = vadd.f32 %v2181, %v2189
        %v2197 = vadd.f32 %v2182, %v2190
        %v2198 = vperm.slane %v2100, 2
        %v2199 = vmul.f32 %v2167, %v2198
        %v2200 = vmul.f32 %v2168, %v2198
        %v2201 = vmul.f32 %v2169, %v2198
        %v2202 = vmul.f32 %v2170, %v2198
        %v2203 = vmul.f32 %v2171, %v2198
        %v2204 = vmul.f32 %v2172, %v2198
        %v2205 = vmul.f32 %v2173, %v2198
        %v2206 = vadd.f32 %v2191, %v2199
        %v2207 = vadd.f32 %v2192, %v2200
        %v2208 = vadd.f32 %v2193, %v2201
        %v2209 = vadd.f32 %v2194, %v2202
        %v2210 = vadd.f32 %v2195, %v2203
        %v2211 = vadd.f32 %v2196, %v2204
        %v2212 = vadd.f32 %v2197, %v2205
        %v2213 = vperm.slane %v2101, 0
        %v2214 = vmul.f32 %v2135, %v2213
        %v2215 = vmul.f32 %v2136, %v2213
        %v2216 = vmul.f32 %v2137, %v2213
        %v2217 = vmul.f32 %v2138, %v2213
        %v2218 = vmul.f32 %v2139, %v2213
        %v2219 = vmul.f32 %v2140, %v2213
        %v2220 = vmul.f32 %v2141, %v2213
        %v2221 = vmul.f32 %v2142, %v2213
        %v2222 = vperm.slane %v2101, 1
        %v2223 = vmul.f32 %v1428, %v2222
        %v2224 = vmul.f32 %v1431, %v2222
        %v2225 = vmul.f32 %v1434, %v2222
        %v2226 = vmul.f32 %v1437, %v2222
        %v2227 = vmul.f32 %v1440, %v2222
        %v2228 = vmul.f32 %v1443, %v2222
        %v2229 = vmul.f32 %v1446, %v2222
        %v2230 = vmul.f32 %v1449, %v2222
        %v2231 = vadd.f32 %v2214, %v2223
        %v2232 = vadd.f32 %v2215, %v2224
        %v2233 = vadd.f32 %v2216, %v2225
        %v2234 = vadd.f32 %v2217, %v2226
        %v2235 = vadd.f32 %v2218, %v2227
        %v2236 = vadd.f32 %v2219, %v2228
        %v2237 = vadd.f32 %v2220, %v2229
        %v2238 = vadd.f32 %v2221, %v2230
        %v2239 = vperm.slane %v2101, 2
        %v2240 = vmul.f32 %v2167, %v2239
        %v2241 = vmul.f32 %v2168, %v2239
        %v2242 = vmul.f32 %v2169, %v2239
        %v2243 = vmul.f32 %v2170, %v2239
        %v2244 = vmul.f32 %v2171, %v2239
        %v2245 = vmul.f32 %v2172, %v2239
        %v2246 = vmul.f32 %v2173, %v2239
        %v2247 = vmul.f32 %v2174, %v2239
        %v2248 = vadd.f32 %v2231, %v2240
        %v2249 = vadd.f32 %v2232, %v2241
        %v2250 = vadd.f32 %v2233, %v2242
        %v2251 = vadd.f32 %v2234, %v2243
        %v2252 = vadd.f32 %v2235, %v2244
        %v2253 = vadd.f32 %v2236, %v2245
        %v2254 = vadd.f32 %v2237, %v2246
        %v2255 = vadd.f32 %v2238, %v2247
        %v2256 = vperm.slane %v2102, 0
        %v2257 = vmul.f32 %v2136, %v2256
        %v2258 = vmul.f32 %v2137, %v2256
        %v2259 = vmul.f32 %v2138, %v2256
        %v2260 = vmul.f32 %v2139, %v2256
        %v2261 = vmul.f32 %v2140, %v2256
        %v2262 = vmul.f32 %v2141, %v2256
        %v2263 = vmul.f32 %v2142, %v2256
        %v2264 = vperm.slane %v2102, 1
        %v2265 = vmul.f32 %v1431, %v2264
        %v2266 = vmul.f32 %v1434, %v2264
        %v2267 = vmul.f32 %v1437, %v2264
        %v2268 = vmul.f32 %v1440, %v2264
        %v2269 = vmul.f32 %v1443, %v2264
        %v2270 = vmul.f32 %v1446, %v2264
        %v2271 = vmul.f32 %v1449, %v2264
        %v2272 = vadd.f32 %v2257, %v2265
        %v2273 = vadd.f32 %v2258, %v2266
        %v2274 = vadd.f32 %v2259, %v2267
        %v2275 = vadd.f32 %v2260, %v2268
        %v2276 = vadd.f32 %v2261, %v2269
        %v2277 = vadd.f32 %v2262, %v2270
        %v2278 = vadd.f32 %v2263, %v2271
        %v2279 = vperm.slane %v2102, 2
        %v2280 = vmul.f32 %v2168, %v2279
        %v2281 = vmul.f32 %v2169, %v2279
        %v2282 = vmul.f32 %v2170, %v2279
        %v2283 = vmul.f32 %v2171, %v2279
        %v2284 = vmul.f32 %v2172, %v2279
        %v2285 = vmul.f32 %v2173, %v2279
        %v2286 = vmul.f32 %v2174, %v2279
        %v2287 = vadd.f32 %v2272, %v2280
        %v2288 = vadd.f32 %v2273, %v2281
        %v2289 = vadd.f32 %v2274, %v2282
        %v2290 = vadd.f32 %v2275, %v2283
        %v2291 = vadd.f32 %v2276, %v2284
        %v2292 = vadd.f32 %v2277, %v2285
        %v2293 = vadd.f32 %v2278, %v2286
        %v2294 = vadd.f32 %v2248, 0.0
        %v2295 = vadd.f32 %v2206, %v2249
        %v2296 = vadd.f32 %v2207, %v2250
        %v2297 = vadd.f32 %v2208, %v2251
        %v2298 = vadd.f32 %v2209, %v2252
        %v2299 = vadd.f32 %v2210, %v2253
        %v2300 = vadd.f32 %v2211, %v2254
        %v2301 = vadd.f32 %v2212, %v2255
        %v2302 = vadd.f32 %v2294, %v2287
        %v2303 = vadd.f32 %v2295, %v2288
        %v2304 = vadd.f32 %v2296, %v2289
        %v2305 = vadd.f32 %v2297, %v2290
        %v2306 = vadd.f32 %v2298, %v2291
        %v2307 = vadd.f32 %v2299, %v2292
        %v2308 = vadd.f32 %v2300, %v2293
        %v2309 = vadd.f32 %v2301, 0.0
        %s2310 = scalar_lea.vmem %s7, 36
        %v2311 = vld [vmem:[%s2310] sm:$0x7]
        %v2312 = vld [vmem:[%s2310 + $0x4] sm:$0x7]
        %v2313 = vld [vmem:[%s2310 + $0x8] sm:$0x7]
        %v2316 = vrot.slane %v2097, 7
        %v2317 = vrot.slane %v2098, 7
        %v2318 = vsel %vm1709, %v2316, %v2317
        %v2321 = vsel %vm1709, 0.0, %v2316
        %v2322 = vsel %vm1695, %v2321, 0.0
        %v2323 = vsel %vm1696, %v2318, 0.0
        %v2324 = vrot.slane %v2097, 1
        %v2325 = vrot.slane %v2098, 1
        %v2326 = vsel %vm1714, %v2324, %v2325
        %v2329 = vsel %vm1714, %v2325, 0.0
        %v2330 = vsel %vm1697, %v2326, 0.0
        %v2331 = vsel %vm1698, %v2329, 0.0
        %v2332 = vperm.slane %v2311, 0
        %v2333 = vmul.f32 %v2322, %v2332
        %v2334 = vmul.f32 %v2323, %v2332
        %v2335 = vperm.slane %v2311, 1
        %v2336 = vmul.f32 %v2097, %v2335
        %v2337 = vmul.f32 %v2098, %v2335
        %v2338 = vadd.f32 %v2333, %v2336
        %v2339 = vadd.f32 %v2334, %v2337
        %v2340 = vperm.slane %v2311, 2
        %v2341 = vmul.f32 %v2330, %v2340
        %v2342 = vmul.f32 %v2331, %v2340
        %v2343 = vadd.f32 %v2338, %v2341
        %v2344 = vadd.f32 %v2339, %v2342
        %v2345 = vperm.slane %v2312, 0
        %v2346 = vmul.f32 %v2322, %v2345
        %v2347 = vmul.f32 %v2323, %v2345
        %v2348 = vperm.slane %v2312, 1
        %v2349 = vmul.f32 %v2097, %v2348
        %v2350 = vmul.f32 %v2098, %v2348
        %v2351 = vadd.f32 %v2346, %v2349
        %v2352 = vadd.f32 %v2347, %v2350
        %v2353 = vperm.slane %v2312, 2
        %v2354 = vmul.f32 %v2330, %v2353
        %v2355 = vmul.f32 %v2331, %v2353
        %v2356 = vadd.f32 %v2351, %v2354
        %v2357 = vadd.f32 %v2352, %v2355
        %v2358 = vperm.slane %v2313, 0
        %v2359 = vmul.f32 %v2322, %v2358
        %v2360 = vmul.f32 %v2323, %v2358
        %v2361 = vperm.slane %v2313, 1
        %v2362 = vmul.f32 %v2097, %v2361
        %v2363 = vmul.f32 %v2098, %v2361
        %v2364 = vadd.f32 %v2359, %v2362
        %v2365 = vadd.f32 %v2360, %v2363
        %v2366 = vperm.slane %v2313, 2
        %v2367 = vmul.f32 %v2330, %v2366
        %v2368 = vmul.f32 %v2331, %v2366
        %v2369 = vadd.f32 %v2364, %v2367
        %v2370 = vadd.f32 %v2365, %v2368
        %v2373 = vrot.slane %v2343, 4
        %v2374 = vrot.slane %v2344, 4
        %v2375 = vsel %vm971, %v2373, %v2374
        %v2378 = vsel %vm971, 0.0, %v2373
        %v2379 = vadd.f32 %v2378, %v2356
        %v2380 = vadd.f32 %v2375, %v2357
        %v2383 = vrot.slane %v2369, 4
        %v2384 = vrot.slane %v2370, 4
        %v2385 = vsel %vm971, %v2383, %v2384
        %v2388 = vsel %vm971, %v2384, 0.0
        %v2389 = vadd.f32 %v2379, %v2385
        %v2390 = vadd.f32 %v2380, %v2388
        %v2391 = vld [vmem:[%s15] sm:$0xff]
        %v2392 = vld [vmem:[%s15 + $0x8] sm:$0xff]
        %v2393 = vld [vmem:[%s15 + $0x10] sm:$0xff]
        %v2394 = vld [vmem:[%s15 + $0x18] sm:$0xff]
        %v2395 = vld [vmem:[%s15 + $0x20] sm:$0xff]
        %v2396 = vld [vmem:[%s15 + $0x28] sm:$0xff]
        %v2397 = vld [vmem:[%s15 + $0x30] sm:$0xff]
        %v2398 = vld [vmem:[%s15 + $0x38] sm:$0xff]
        %vm2399 = vcmask 130048
        %v2401 = vsel %vm2399, %v2391, 0
        %v2404 = vsel %vm2399, %v2392, 0
        %v2407 = vsel %vm2399, %v2393, 0
        %v2410 = vsel %vm2399, %v2394, 0
        %v2413 = vsel %vm2399, %v2395, 0
        %v2416 = vsel %vm2399, %v2396, 0
        %v2419 = vsel %vm2399, %v2397, 0
        %v2422 = vsel %vm2399, %v2398, 0
        %2424 = vmatpush.msra.mxu0 0.0
        %2425 = vmatpush.msra.mxu0 0.0
        %2426 = vmatpush.msra.mxu0 0.0
        %2427 = vmatpush.msra.mxu0 0.0
        %2428 = vmatpush.msra.mxu0 0.0
        %2429 = vmatpush.msra.mxu0 0.0
        %2430 = vmatpush.msra.mxu0 0.0
        %2431 = vmatpush.msra.mxu0 0.0
        %2432 = vmatpush.msra.mxu0 0.0
        %2433 = vmatpush.msra.mxu0 0.0
        %2434 = vmatpush.msra.mxu0 0.0
        %2435 = vmatpush.msra.mxu0 0.0
        %2436 = vmatpush.msra.mxu0 0.0
        %2437 = vmatpush.msra.mxu0 0.0
        %2438 = vmatpush.msra.mxu0 %v2390
        %2439 = vmatpush.msra.mxu0 %v2389
        %2440 = vmatmul.f32.gmra.mxu0 %v2401
        %v2441 = vpop.f32.mrf.mxu0
        %v2442 = vadd.f32 0.0, %v2441
        %2443 = vmatmul.f32.gmra.mxu0 %v2404
        %v2444 = vpop.f32.mrf.mxu0
        %v2445 = vadd.f32 0.0, %v2444
        %2446 = vmatmul.f32.gmra.mxu0 %v2407
        %v2447 = vpop.f32.mrf.mxu0
        %v2448 = vadd.f32 0.0, %v2447
        %2449 = vmatmul.f32.gmra.mxu0 %v2410
        %v2450 = vpop.f32.mrf.mxu0
        %v2451 = vadd.f32 0.0, %v2450
        %2452 = vmatmul.f32.gmra.mxu0 %v2413
        %v2453 = vpop.f32.mrf.mxu0
        %v2454 = vadd.f32 0.0, %v2453
        %2455 = vmatmul.f32.gmra.mxu0 %v2416
        %v2456 = vpop.f32.mrf.mxu0
        %v2457 = vadd.f32 0.0, %v2456
        %2458 = vmatmul.f32.gmra.mxu0 %v2419
        %v2459 = vpop.f32.mrf.mxu0
        %v2460 = vadd.f32 0.0, %v2459
        %2461 = vmatmul.f32.gmra.mxu0 %v2422
        %v2462 = vpop.f32.mrf.mxu0
        %v2463 = vadd.f32 0.0, %v2462
        %2464 = vdwg.mxu0
        %s2465 = scalar_lea.vmem %s8, 48
        %v2466 = vld [vmem:[%s2465] sm:$0xff]
        %v2467 = vld [vmem:[%s2465 + $0x8] sm:$0xff]
        %v2468 = vld [vmem:[%s2465 + $0x10] sm:$0xff]
        %v2469 = vld [vmem:[%s2465 + $0x18] sm:$0xff]
        %v2470 = vld [vmem:[%s2465 + $0x20] sm:$0xff]
        %v2471 = vld [vmem:[%s2465 + $0x28] sm:$0xff]
        %s2472 = scalar_lea.vmem %s9, 48
        %v2473 = vld [vmem:[%s2472] sm:$0xff]
        %v2474 = vld [vmem:[%s2472 + $0x8] sm:$0xff]
        %v2475 = vld [vmem:[%s2472 + $0x10] sm:$0xff]
        %v2476 = vld [vmem:[%s2472 + $0x18] sm:$0xff]
        %v2477 = vld [vmem:[%s2472 + $0x20] sm:$0xff]
        %v2478 = vld [vmem:[%s2472 + $0x28] sm:$0xff]
        %s2479 = scalar_lea.vmem %s10, 48
        %v2480 = vld [vmem:[%s2479] sm:$0xff]
        %v2481 = vld [vmem:[%s2479 + $0x8] sm:$0xff]
        %v2482 = vld [vmem:[%s2479 + $0x10] sm:$0xff]
        %v2483 = vld [vmem:[%s2479 + $0x18] sm:$0xff]
        %v2484 = vld [vmem:[%s2479 + $0x20] sm:$0xff]
        %v2485 = vld [vmem:[%s2479 + $0x28] sm:$0xff]
        %v2486 = vadd.f32 %v2302, %v2442
        %v2487 = vadd.f32 %v2303, %v2445
        %v2488 = vadd.f32 %v2304, %v2448
        %v2489 = vadd.f32 %v2305, %v2451
        %v2490 = vadd.f32 %v2306, %v2454
        %v2491 = vadd.f32 %v2307, %v2457
        %v2492 = vadd.f32 %v2308, %v2460
        %v2493 = vadd.f32 %v2309, %v2463
        %v2494 = vsel %vm645, %v2302, 0.0
        %v2495 = vsel %vm645, %v2303, 0.0
        %v2496 = vadd.f32 %v2494, %v2495
        %v2497 = vsel %vm645, %v2304, 0.0
        %v2498 = vadd.f32 %v2496, %v2497
        %v2499 = vsel %vm645, %v2305, 0.0
        %v2500 = vadd.f32 %v2498, %v2499
        %v2501 = vsel %vm645, %v2306, 0.0
        %v2502 = vadd.f32 %v2500, %v2501
        %v2503 = vsel %vm645, %v2307, 0.0
        %v2504 = vadd.f32 %v2502, %v2503
        %v2505 = vsel %vm645, %v2308, 0.0
        %v2506 = vadd.f32 %v2504, %v2505
        %v2507 = vsel %vm645, %v2309, 0.0
        %v2508 = vadd.f32 %v2506, %v2507
        %v2509 = vrot.slane %v2508, 4
        %v2510 = vadd.f32 %v2508, %v2509
        %v2511 = vrot.slane %v2510, 2
        %v2512 = vadd.f32 %v2510, %v2511
        %v2513 = vrot.slane %v2512, 1
        %v2514 = vadd.f32 %v2512, %v2513
        %v2515 = vrcp.pop 64.0
        %v2516 = vmul.f32 64.0, %v2515
        %v2517 = vsub.f32 1.0, %v2516
        %v2518 = vmul.f32 %v2515, %v2517
        %v2519 = vadd.f32 %v2515, %v2518
        %vm2520 = vweird.f32 %v2515
        %v2521 = vsel %vm2520, %v2515, %v2519
        %v2522 = vmul.f32 %v2514, %v2521
        %v2523 = vsel %vm645, %v2442, 0.0
        %v2524 = vsel %vm645, %v2445, 0.0
        %v2525 = vadd.f32 %v2523, %v2524
        %v2526 = vsel %vm645, %v2448, 0.0
        %v2527 = vadd.f32 %v2525, %v2526
        %v2528 = vsel %vm645, %v2451, 0.0
        %v2529 = vadd.f32 %v2527, %v2528
        %v2530 = vsel %vm645, %v2454, 0.0
        %v2531 = vadd.f32 %v2529, %v2530
        %v2532 = vsel %vm645, %v2457, 0.0
        %v2533 = vadd.f32 %v2531, %v2532
        %v2534 = vsel %vm645, %v2460, 0.0
        %v2535 = vadd.f32 %v2533, %v2534
        %v2536 = vsel %vm645, %v2463, 0.0
        %v2537 = vadd.f32 %v2535, %v2536
        %v2538 = vrot.slane %v2537, 4
        %v2539 = vadd.f32 %v2537, %v2538
        %v2540 = vrot.slane %v2539, 2
        %v2541 = vadd.f32 %v2539, %v2540
        %v2542 = vrot.slane %v2541, 1
        %v2543 = vadd.f32 %v2541, %v2542
        %v2544 = vmul.f32 %v2543, %v2521
        %v2545 = vadd.f32 %v2522, %v2544
        %v2547 = vsel %vm645, %v2545, 0
        %2549 = vmatpush.msra.mxu0 0.0
        %2550 = vmatpush.msra.mxu0 0.0
        %2551 = vmatpush.msra.mxu0 0.0
        %2552 = vmatpush.msra.mxu0 0.0
        %2553 = vmatpush.msra.mxu0 0.0
        %2554 = vmatpush.msra.mxu0 0.0
        %2555 = vmatpush.msra.mxu0 0.0
        %2556 = vmatpush.msra.mxu0 0.0
        %2557 = vmatpush.msra.mxu0 0.0
        %2558 = vmatpush.msra.mxu0 0.0
        %2559 = vmatpush.msra.mxu0 %v2471
        %2560 = vmatpush.msra.mxu0 %v2470
        %2561 = vmatpush.msra.mxu0 %v2469
        %2562 = vmatpush.msra.mxu0 %v2468
        %2563 = vmatpush.msra.mxu0 %v2467
        %2564 = vmatpush.msra.mxu0 %v2466
        %2565 = vmatmul.f32.gmra.mxu0 %v2547
        %v2566 = vpop.f32.mrf.mxu0
        %v2567 = vadd.f32 0.0, %v2566
        %2568 = vdwg.mxu0
        %v2570 = vsel %vm645, %v2522, 0
        %2572 = vmatpush.msra.mxu0 0.0
        %2573 = vmatpush.msra.mxu0 0.0
        %2574 = vmatpush.msra.mxu0 0.0
        %2575 = vmatpush.msra.mxu0 0.0
        %2576 = vmatpush.msra.mxu0 0.0
        %2577 = vmatpush.msra.mxu0 0.0
        %2578 = vmatpush.msra.mxu0 0.0
        %2579 = vmatpush.msra.mxu0 0.0
        %2580 = vmatpush.msra.mxu0 0.0
        %2581 = vmatpush.msra.mxu0 0.0
        %2582 = vmatpush.msra.mxu0 %v2478
        %2583 = vmatpush.msra.mxu0 %v2477
        %2584 = vmatpush.msra.mxu0 %v2476
        %2585 = vmatpush.msra.mxu0 %v2475
        %2586 = vmatpush.msra.mxu0 %v2474
        %2587 = vmatpush.msra.mxu0 %v2473
        %2588 = vmatmul.f32.gmra.mxu0 %v2570
        %v2589 = vpop.f32.mrf.mxu0
        %v2590 = vadd.f32 0.0, %v2589
        %2591 = vdwg.mxu0
        %v2593 = vsel %vm645, %v2544, 0
        %2595 = vmatpush.msra.mxu0 0.0
        %2596 = vmatpush.msra.mxu0 0.0
        %2597 = vmatpush.msra.mxu0 0.0
        %2598 = vmatpush.msra.mxu0 0.0
        %2599 = vmatpush.msra.mxu0 0.0
        %2600 = vmatpush.msra.mxu0 0.0
        %2601 = vmatpush.msra.mxu0 0.0
        %2602 = vmatpush.msra.mxu0 0.0
        %2603 = vmatpush.msra.mxu0 0.0
        %2604 = vmatpush.msra.mxu0 0.0
        %2605 = vmatpush.msra.mxu0 %v2485
        %2606 = vmatpush.msra.mxu0 %v2484
        %2607 = vmatpush.msra.mxu0 %v2483
        %2608 = vmatpush.msra.mxu0 %v2482
        %2609 = vmatpush.msra.mxu0 %v2481
        %2610 = vmatpush.msra.mxu0 %v2480
        %2611 = vmatmul.f32.gmra.mxu0 %v2593
        %v2612 = vpop.f32.mrf.mxu0
        %v2613 = vadd.f32 0.0, %v2612
        %2614 = vdwg.mxu0
        %v2615 = vperm.slane %v2567, 0
        %v2616 = vsel %vm1026, %v2615, 0.0
        %v2617 = vsel %vm1984, %v2616, 0.0
        %2618 = vadd.xlane.f32.xlu0 %v2617
        %v2619 = vpop.xlane.xlu0 %2618
        %v2620 = vmul.f32 %v2619, %v2522
        %v2621 = vmul.f32 %v2620, 0.14433756
        %v2622 = vsel %vm1990, %v2621, -inf
        %v2623 = vrot.slane %v2622, 4
        %v2624 = vmax.f32 %v2622, %v2623
        %v2625 = vrot.slane %v2624, 2
        %v2626 = vmax.f32 %v2624, %v2625
        %v2627 = vrot.slane %v2626, 1
        %v2628 = vmax.f32 %v2626, %v2627
        %v2629 = vsub.f32 %v2621, %v2628
        %v2630 = vmul.f32 %v2629, 1.442695
        %v2631 = vpow.pop %v2630
        %v2632 = vsel %vm1990, %v2631, 0.0
        %v2633 = vrot.slane %v2632, 4
        %v2634 = vadd.f32 %v2632, %v2633
        %v2635 = vrot.slane %v2634, 2
        %v2636 = vadd.f32 %v2634, %v2635
        %v2637 = vrot.slane %v2636, 1
        %v2638 = vadd.f32 %v2636, %v2637
        %v2639 = vrcp.pop %v2638
        %v2640 = vmul.f32 %v2638, %v2639
        %v2641 = vsub.f32 1.0, %v2640
        %v2642 = vmul.f32 %v2639, %v2641
        %v2643 = vadd.f32 %v2639, %v2642
        %vm2644 = vweird.f32 %v2638
        %vm2645 = vweird.f32 %v2639
        %vm2646 = vmor %vm2644, %vm2645
        %v2647 = vsel %vm2646, %v2639, %v2643
        %v2648 = vand.u32 2147483647, %v2638
        %vm2649 = vcmp.eq.f32.partialorder %v2648, 8.507059e+37
        %v2650 = vand.u32 %v2638, 2147483648
        %v2651 = vor.u32 1.1754944e-38, %v2650
        %v2652 = vsel %vm2649, %v2651, %v2647
        %v2653 = vmul.f32 %v2631, %v2652
        %v2654 = vmul.f32 %v2619, %v2544
        %v2655 = vmul.f32 %v2654, 0.14433756
        %v2656 = vsel %vm1990, %v2655, -inf
        %v2657 = vrot.slane %v2656, 4
        %v2658 = vmax.f32 %v2656, %v2657
        %v2659 = vrot.slane %v2658, 2
        %v2660 = vmax.f32 %v2658, %v2659
        %v2661 = vrot.slane %v2660, 1
        %v2662 = vmax.f32 %v2660, %v2661
        %v2663 = vsub.f32 %v2655, %v2662
        %v2664 = vmul.f32 %v2663, 1.442695
        %v2665 = vpow.pop %v2664
        %v2666 = vsel %vm1990, %v2665, 0.0
        %v2667 = vrot.slane %v2666, 4
        %v2668 = vadd.f32 %v2666, %v2667
        %v2669 = vrot.slane %v2668, 2
        %v2670 = vadd.f32 %v2668, %v2669
        %v2671 = vrot.slane %v2670, 1
        %v2672 = vadd.f32 %v2670, %v2671
        %v2673 = vrcp.pop %v2672
        %v2674 = vmul.f32 %v2672, %v2673
        %v2675 = vsub.f32 1.0, %v2674
        %v2676 = vmul.f32 %v2673, %v2675
        %v2677 = vadd.f32 %v2673, %v2676
        %vm2678 = vweird.f32 %v2672
        %vm2679 = vweird.f32 %v2673
        %vm2680 = vmor %vm2678, %vm2679
        %v2681 = vsel %vm2680, %v2673, %v2677
        %v2682 = vand.u32 2147483647, %v2672
        %vm2683 = vcmp.eq.f32.partialorder %v2682, 8.507059e+37
        %v2684 = vand.u32 %v2672, 2147483648
        %v2685 = vor.u32 1.1754944e-38, %v2684
        %v2686 = vsel %vm2683, %v2685, %v2681
        %v2687 = vmul.f32 %v2665, %v2686
        %v2688 = vperm.slane %v2590, 0
        %v2689 = vsel %vm1026, %v2688, 0.0
        %v2690 = vsel %vm1984, %v2689, 0.0
        %2691 = vadd.xlane.f32.xlu0 %v2690
        %v2692 = vpop.xlane.xlu0 %2691
        %v2693 = vmul.f32 %v2653, %v2692
        %v2694 = vsel %vm1990, %v2693, 0.0
        %v2695 = vrot.slane %v2694, 4
        %v2696 = vadd.f32 %v2694, %v2695
        %v2697 = vrot.slane %v2696, 2
        %v2698 = vadd.f32 %v2696, %v2697
        %v2699 = vrot.slane %v2698, 1
        %v2700 = vadd.f32 %v2698, %v2699
        %v2701 = vmul.f32 %v2700, 0.5
        %v2702 = vtanh.pop %v2701
        %v2703 = vmul.f32 %v2702, 0.5
        %v2704 = vadd.f32 %v2703, 0.5
        %v2705 = vperm.slane %v2613, 0
        %v2706 = vsel %vm1026, %v2705, 0.0
        %v2707 = vsel %vm1984, %v2706, 0.0
        %2708 = vadd.xlane.f32.xlu0 %v2707
        %v2709 = vpop.xlane.xlu0 %2708
        %v2710 = vmul.f32 %v2687, %v2709
        %v2711 = vsel %vm1990, %v2710, 0.0
        %v2712 = vrot.slane %v2711, 4
        %v2713 = vadd.f32 %v2711, %v2712
        %v2714 = vrot.slane %v2713, 2
        %v2715 = vadd.f32 %v2713, %v2714
        %v2716 = vrot.slane %v2715, 1
        %v2717 = vadd.f32 %v2715, %v2716
        %v2718 = vmul.f32 %v2717, 0.5
        %v2719 = vtanh.pop %v2718
        %v2720 = vmul.f32 %v2719, 0.5
        %v2721 = vadd.f32 %v2720, 0.5
        %v2722 = vmul.f32 %v2302, %v2704
        %v2723 = vmul.f32 %v2303, %v2704
        %v2724 = vmul.f32 %v2304, %v2704
        %v2725 = vmul.f32 %v2305, %v2704
        %v2726 = vmul.f32 %v2306, %v2704
        %v2727 = vmul.f32 %v2307, %v2704
        %v2728 = vmul.f32 %v2308, %v2704
        %v2729 = vmul.f32 %v2309, %v2704
        %v2730 = vadd.f32 %v2486, %v2722
        %v2731 = vadd.f32 %v2487, %v2723
        %v2732 = vadd.f32 %v2488, %v2724
        %v2733 = vadd.f32 %v2489, %v2725
        %v2734 = vadd.f32 %v2490, %v2726
        %v2735 = vadd.f32 %v2491, %v2727
        %v2736 = vadd.f32 %v2492, %v2728
        %v2737 = vadd.f32 %v2493, %v2729
        %v2738 = vmul.f32 %v2442, %v2721
        %v2739 = vmul.f32 %v2445, %v2721
        %v2740 = vmul.f32 %v2448, %v2721
        %v2741 = vmul.f32 %v2451, %v2721
        %v2742 = vmul.f32 %v2454, %v2721
        %v2743 = vmul.f32 %v2457, %v2721
        %v2744 = vmul.f32 %v2460, %v2721
        %v2745 = vmul.f32 %v2463, %v2721
        %v2746 = vadd.f32 %v2730, %v2738
        %v2747 = vadd.f32 %v2731, %v2739
        %v2748 = vadd.f32 %v2732, %v2740
        %v2749 = vadd.f32 %v2733, %v2741
        %v2750 = vadd.f32 %v2734, %v2742
        %v2751 = vadd.f32 %v2735, %v2743
        %v2752 = vadd.f32 %v2736, %v2744
        %v2753 = vadd.f32 %v2737, %v2745
        %s2754 = scalar_lea.vmem %s7, 48
        %v2755 = vld [vmem:[%s2754] sm:$0x7]
        %v2756 = vld [vmem:[%s2754 + $0x4] sm:$0x7]
        %v2757 = vld [vmem:[%s2754 + $0x8] sm:$0x7]
        %v2790 = vrot.slane %v1258, 7
        %v2791 = vrot.slane %v1261, 7
        %v2792 = vsel %vm1709, %v2790, %v2791
        %v2793 = vrot.slane %v1264, 7
        %v2794 = vsel %vm1709, %v2791, %v2793
        %v2795 = vrot.slane %v1267, 7
        %v2796 = vsel %vm1709, %v2793, %v2795
        %v2797 = vrot.slane %v1270, 7
        %v2798 = vsel %vm1709, %v2795, %v2797
        %v2799 = vrot.slane %v1273, 7
        %v2800 = vsel %vm1709, %v2797, %v2799
        %v2801 = vrot.slane %v1276, 7
        %v2802 = vsel %vm1709, %v2799, %v2801
        %v2803 = vrot.slane %v1279, 7
        %v2804 = vsel %vm1709, %v2801, %v2803
        %v2805 = vrot.slane %v1282, 7
        %v2806 = vsel %vm1709, %v2803, %v2805
        %v2807 = vrot.slane %v1285, 7
        %v2808 = vsel %vm1709, %v2805, %v2807
        %v2809 = vrot.slane %v1288, 7
        %v2810 = vsel %vm1709, %v2807, %v2809
        %v2811 = vrot.slane %v1291, 7
        %v2812 = vsel %vm1709, %v2809, %v2811
        %v2813 = vrot.slane %v1294, 7
        %v2814 = vsel %vm1709, %v2811, %v2813
        %v2815 = vrot.slane %v1297, 7
        %v2816 = vsel %vm1709, %v2813, %v2815
        %v2817 = vrot.slane %v1300, 7
        %v2818 = vsel %vm1709, %v2815, %v2817
        %v2819 = vrot.slane %v1303, 7
        %v2820 = vsel %vm1709, %v2817, %v2819
        %v2821 = vrot.slane %v1306, 7
        %v2822 = vsel %vm1709, %v2819, %v2821
        %v2823 = vrot.slane %v1309, 7
        %v2824 = vsel %vm1709, %v2821, %v2823
        %v2825 = vrot.slane %v1312, 7
        %v2826 = vsel %vm1709, %v2823, %v2825
        %v2827 = vrot.slane %v1315, 7
        %v2828 = vsel %vm1709, %v2825, %v2827
        %v2829 = vrot.slane %v1318, 7
        %v2830 = vsel %vm1709, %v2827, %v2829
        %v2831 = vrot.slane %v1321, 7
        %v2832 = vsel %vm1709, %v2829, %v2831
        %v2833 = vrot.slane %v1324, 7
        %v2834 = vsel %vm1709, %v2831, %v2833
        %v2835 = vrot.slane %v1327, 7
        %v2836 = vsel %vm1709, %v2833, %v2835
        %v2837 = vrot.slane %v1330, 7
        %v2838 = vsel %vm1709, %v2835, %v2837
        %v2839 = vrot.slane %v1333, 7
        %v2840 = vsel %vm1709, %v2837, %v2839
        %v2841 = vrot.slane %v1336, 7
        %v2842 = vsel %vm1709, %v2839, %v2841
        %v2843 = vrot.slane %v1339, 7
        %v2844 = vsel %vm1709, %v2841, %v2843
        %v2845 = vrot.slane %v1342, 7
        %v2846 = vsel %vm1709, %v2843, %v2845
        %v2847 = vrot.slane %v1345, 7
        %v2848 = vsel %vm1709, %v2845, %v2847
        %v2849 = vrot.slane %v1348, 7
        %v2850 = vsel %vm1709, %v2847, %v2849
        %v2851 = vrot.slane %v1351, 7
        %v2852 = vsel %vm1709, %v2849, %v2851
        %v2885 = vsel %vm1709, 0.0, %v2790
        %v2886 = vsel %vm1605, %v2885, 0.0
        %v2887 = vsel %vm1606, %v2792, 0.0
        %v2888 = vsel %vm1607, %v2794, 0.0
        %v2889 = vsel %vm1608, %v2796, 0.0
        %v2890 = vsel %vm1609, %v2798, 0.0
        %v2891 = vsel %vm1610, %v2800, 0.0
        %v2892 = vsel %vm1611, %v2802, 0.0
        %v2893 = vsel %vm1612, %v2804, 0.0
        %v2894 = vsel %vm1613, %v2806, 0.0
        %v2895 = vsel %vm1614, %v2808, 0.0
        %v2896 = vsel %vm1615, %v2810, 0.0
        %v2897 = vsel %vm1616, %v2812, 0.0
        %v2898 = vsel %vm1617, %v2814, 0.0
        %v2899 = vsel %vm1618, %v2816, 0.0
        %v2900 = vsel %vm1619, %v2818, 0.0
        %v2901 = vsel %vm1620, %v2820, 0.0
        %v2902 = vsel %vm1621, %v2822, 0.0
        %v2903 = vsel %vm1622, %v2824, 0.0
        %v2904 = vsel %vm1623, %v2826, 0.0
        %v2905 = vsel %vm1624, %v2828, 0.0
        %v2906 = vsel %vm1625, %v2830, 0.0
        %v2907 = vsel %vm1626, %v2832, 0.0
        %v2908 = vsel %vm1627, %v2834, 0.0
        %v2909 = vsel %vm1628, %v2836, 0.0
        %v2910 = vsel %vm1629, %v2838, 0.0
        %v2911 = vsel %vm1630, %v2840, 0.0
        %v2912 = vsel %vm1631, %v2842, 0.0
        %v2913 = vsel %vm1632, %v2844, 0.0
        %v2914 = vsel %vm1633, %v2846, 0.0
        %v2915 = vsel %vm1634, %v2848, 0.0
        %v2916 = vsel %vm1635, %v2850, 0.0
        %v2917 = vsel %vm1636, %v2852, 0.0
        %v2918 = vrot.slane %v1258, 1
        %v2919 = vrot.slane %v1261, 1
        %v2920 = vsel %vm1714, %v2918, %v2919
        %v2921 = vrot.slane %v1264, 1
        %v2922 = vsel %vm1714, %v2919, %v2921
        %v2923 = vrot.slane %v1267, 1
        %v2924 = vsel %vm1714, %v2921, %v2923
        %v2925 = vrot.slane %v1270, 1
        %v2926 = vsel %vm1714, %v2923, %v2925
        %v2927 = vrot.slane %v1273, 1
        %v2928 = vsel %vm1714, %v2925, %v2927
        %v2929 = vrot.slane %v1276, 1
        %v2930 = vsel %vm1714, %v2927, %v2929
        %v2931 = vrot.slane %v1279, 1
        %v2932 = vsel %vm1714, %v2929, %v2931
        %v2933 = vrot.slane %v1282, 1
        %v2934 = vsel %vm1714, %v2931, %v2933
        %v2935 = vrot.slane %v1285, 1
        %v2936 = vsel %vm1714, %v2933, %v2935
        %v2937 = vrot.slane %v1288, 1
        %v2938 = vsel %vm1714, %v2935, %v2937
        %v2939 = vrot.slane %v1291, 1
        %v2940 = vsel %vm1714, %v2937, %v2939
        %v2941 = vrot.slane %v1294, 1
        %v2942 = vsel %vm1714, %v2939, %v2941
        %v2943 = vrot.slane %v1297, 1
        %v2944 = vsel %vm1714, %v2941, %v2943
        %v2945 = vrot.slane %v1300, 1
        %v2946 = vsel %vm1714, %v2943, %v2945
        %v2947 = vrot.slane %v1303, 1
        %v2948 = vsel %vm1714, %v2945, %v2947
        %v2949 = vrot.slane %v1306, 1
        %v2950 = vsel %vm1714, %v2947, %v2949
        %v2951 = vrot.slane %v1309, 1
        %v2952 = vsel %vm1714, %v2949, %v2951
        %v2953 = vrot.slane %v1312, 1
        %v2954 = vsel %vm1714, %v2951, %v2953
        %v2955 = vrot.slane %v1315, 1
        %v2956 = vsel %vm1714, %v2953, %v2955
        %v2957 = vrot.slane %v1318, 1
        %v2958 = vsel %vm1714, %v2955, %v2957
        %v2959 = vrot.slane %v1321, 1
        %v2960 = vsel %vm1714, %v2957, %v2959
        %v2961 = vrot.slane %v1324, 1
        %v2962 = vsel %vm1714, %v2959, %v2961
        %v2963 = vrot.slane %v1327, 1
        %v2964 = vsel %vm1714, %v2961, %v2963
        %v2965 = vrot.slane %v1330, 1
        %v2966 = vsel %vm1714, %v2963, %v2965
        %v2967 = vrot.slane %v1333, 1
        %v2968 = vsel %vm1714, %v2965, %v2967
        %v2969 = vrot.slane %v1336, 1
        %v2970 = vsel %vm1714, %v2967, %v2969
        %v2971 = vrot.slane %v1339, 1
        %v2972 = vsel %vm1714, %v2969, %v2971
        %v2973 = vrot.slane %v1342, 1
        %v2974 = vsel %vm1714, %v2971, %v2973
        %v2975 = vrot.slane %v1345, 1
        %v2976 = vsel %vm1714, %v2973, %v2975
        %v2977 = vrot.slane %v1348, 1
        %v2978 = vsel %vm1714, %v2975, %v2977
        %v2979 = vrot.slane %v1351, 1
        %v2980 = vsel %vm1714, %v2977, %v2979
        %v3013 = vsel %vm1714, %v2979, 0.0
        %v3014 = vsel %vm1637, %v2920, 0.0
        %v3015 = vsel %vm1638, %v2922, 0.0
        %v3016 = vsel %vm1639, %v2924, 0.0
        %v3017 = vsel %vm1640, %v2926, 0.0
        %v3018 = vsel %vm1641, %v2928, 0.0
        %v3019 = vsel %vm1642, %v2930, 0.0
        %v3020 = vsel %vm1643, %v2932, 0.0
        %v3021 = vsel %vm1644, %v2934, 0.0
        %v3022 = vsel %vm1645, %v2936, 0.0
        %v3023 = vsel %vm1646, %v2938, 0.0
        %v3024 = vsel %vm1647, %v2940, 0.0
        %v3025 = vsel %vm1648, %v2942, 0.0
        %v3026 = vsel %vm1649, %v2944, 0.0
        %v3027 = vsel %vm1650, %v2946, 0.0
        %v3028 = vsel %vm1651, %v2948, 0.0
        %v3029 = vsel %vm1652, %v2950, 0.0
        %v3030 = vsel %vm1653, %v2952, 0.0
        %v3031 = vsel %vm1654, %v2954, 0.0
        %v3032 = vsel %vm1655, %v2956, 0.0
        %v3033 = vsel %vm1656, %v2958, 0.0
        %v3034 = vsel %vm1657, %v2960, 0.0
        %v3035 = vsel %vm1658, %v2962, 0.0
        %v3036 = vsel %vm1659, %v2964, 0.0
        %v3037 = vsel %vm1660, %v2966, 0.0
        %v3038 = vsel %vm1661, %v2968, 0.0
        %v3039 = vsel %vm1662, %v2970, 0.0
        %v3040 = vsel %vm1663, %v2972, 0.0
        %v3041 = vsel %vm1664, %v2974, 0.0
        %v3042 = vsel %vm1665, %v2976, 0.0
        %v3043 = vsel %vm1666, %v2978, 0.0
        %v3044 = vsel %vm1667, %v2980, 0.0
        %v3045 = vsel %vm1668, %v3013, 0.0
        %v3046 = vperm.slane %v2755, 0
        %v3047 = vmul.f32 %v2886, %v3046
        %v3048 = vmul.f32 %v2887, %v3046
        %v3049 = vmul.f32 %v2888, %v3046
        %v3050 = vmul.f32 %v2889, %v3046
        %v3051 = vmul.f32 %v2890, %v3046
        %v3052 = vmul.f32 %v2891, %v3046
        %v3053 = vmul.f32 %v2892, %v3046
        %v3054 = vmul.f32 %v2893, %v3046
        %v3055 = vmul.f32 %v2894, %v3046
        %v3056 = vmul.f32 %v2895, %v3046
        %v3057 = vmul.f32 %v2896, %v3046
        %v3058 = vmul.f32 %v2897, %v3046
        %v3059 = vmul.f32 %v2898, %v3046
        %v3060 = vmul.f32 %v2899, %v3046
        %v3061 = vmul.f32 %v2900, %v3046
        %v3062 = vmul.f32 %v2901, %v3046
        %v3063 = vmul.f32 %v2902, %v3046
        %v3064 = vmul.f32 %v2903, %v3046
        %v3065 = vmul.f32 %v2904, %v3046
        %v3066 = vmul.f32 %v2905, %v3046
        %v3067 = vmul.f32 %v2906, %v3046
        %v3068 = vmul.f32 %v2907, %v3046
        %v3069 = vmul.f32 %v2908, %v3046
        %v3070 = vmul.f32 %v2909, %v3046
        %v3071 = vmul.f32 %v2910, %v3046
        %v3072 = vmul.f32 %v2911, %v3046
        %v3073 = vmul.f32 %v2912, %v3046
        %v3074 = vmul.f32 %v2913, %v3046
        %v3075 = vmul.f32 %v2914, %v3046
        %v3076 = vmul.f32 %v2915, %v3046
        %v3077 = vperm.slane %v2755, 1
        %v3078 = vmul.f32 %v1258, %v3077
        %v3079 = vmul.f32 %v1261, %v3077
        %v3080 = vmul.f32 %v1264, %v3077
        %v3081 = vmul.f32 %v1267, %v3077
        %v3082 = vmul.f32 %v1270, %v3077
        %v3083 = vmul.f32 %v1273, %v3077
        %v3084 = vmul.f32 %v1276, %v3077
        %v3085 = vmul.f32 %v1279, %v3077
        %v3086 = vmul.f32 %v1282, %v3077
        %v3087 = vmul.f32 %v1285, %v3077
        %v3088 = vmul.f32 %v1288, %v3077
        %v3089 = vmul.f32 %v1291, %v3077
        %v3090 = vmul.f32 %v1294, %v3077
        %v3091 = vmul.f32 %v1297, %v3077
        %v3092 = vmul.f32 %v1300, %v3077
        %v3093 = vmul.f32 %v1303, %v3077
        %v3094 = vmul.f32 %v1306, %v3077
        %v3095 = vmul.f32 %v1309, %v3077
        %v3096 = vmul.f32 %v1312, %v3077
        %v3097 = vmul.f32 %v1315, %v3077
        %v3098 = vmul.f32 %v1318, %v3077
        %v3099 = vmul.f32 %v1321, %v3077
        %v3100 = vmul.f32 %v1324, %v3077
        %v3101 = vmul.f32 %v1327, %v3077
        %v3102 = vmul.f32 %v1330, %v3077
        %v3103 = vmul.f32 %v1333, %v3077
        %v3104 = vmul.f32 %v1336, %v3077
        %v3105 = vmul.f32 %v1339, %v3077
        %v3106 = vmul.f32 %v1342, %v3077
        %v3107 = vmul.f32 %v1345, %v3077
        %v3108 = vadd.f32 %v3047, %v3078
        %v3109 = vadd.f32 %v3048, %v3079
        %v3110 = vadd.f32 %v3049, %v3080
        %v3111 = vadd.f32 %v3050, %v3081
        %v3112 = vadd.f32 %v3051, %v3082
        %v3113 = vadd.f32 %v3052, %v3083
        %v3114 = vadd.f32 %v3053, %v3084
        %v3115 = vadd.f32 %v3054, %v3085
        %v3116 = vadd.f32 %v3055, %v3086
        %v3117 = vadd.f32 %v3056, %v3087
        %v3118 = vadd.f32 %v3057, %v3088
        %v3119 = vadd.f32 %v3058, %v3089
        %v3120 = vadd.f32 %v3059, %v3090
        %v3121 = vadd.f32 %v3060, %v3091
        %v3122 = vadd.f32 %v3061, %v3092
        %v3123 = vadd.f32 %v3062, %v3093
        %v3124 = vadd.f32 %v3063, %v3094
        %v3125 = vadd.f32 %v3064, %v3095
        %v3126 = vadd.f32 %v3065, %v3096
        %v3127 = vadd.f32 %v3066, %v3097
        %v3128 = vadd.f32 %v3067, %v3098
        %v3129 = vadd.f32 %v3068, %v3099
        %v3130 = vadd.f32 %v3069, %v3100
        %v3131 = vadd.f32 %v3070, %v3101
        %v3132 = vadd.f32 %v3071, %v3102
        %v3133 = vadd.f32 %v3072, %v3103
        %v3134 = vadd.f32 %v3073, %v3104
        %v3135 = vadd.f32 %v3074, %v3105
        %v3136 = vadd.f32 %v3075, %v3106
        %v3137 = vadd.f32 %v3076, %v3107
        %v3138 = vperm.slane %v2755, 2
        %v3139 = vmul.f32 %v3014, %v3138
        %v3140 = vmul.f32 %v3015, %v3138
        %v3141 = vmul.f32 %v3016, %v3138
        %v3142 = vmul.f32 %v3017, %v3138
        %v3143 = vmul.f32 %v3018, %v3138
        %v3144 = vmul.f32 %v3019, %v3138
        %v3145 = vmul.f32 %v3020, %v3138
        %v3146 = vmul.f32 %v3021, %v3138
        %v3147 = vmul.f32 %v3022, %v3138
        %v3148 = vmul.f32 %v3023, %v3138
        %v3149 = vmul.f32 %v3024, %v3138
        %v3150 = vmul.f32 %v3025, %v3138
        %v3151 = vmul.f32 %v3026, %v3138
        %v3152 = vmul.f32 %v3027, %v3138
        %v3153 = vmul.f32 %v3028, %v3138
        %v3154 = vmul.f32 %v3029, %v3138
        %v3155 = vmul.f32 %v3030, %v3138
        %v3156 = vmul.f32 %v3031, %v3138
        %v3157 = vmul.f32 %v3032, %v3138
        %v3158 = vmul.f32 %v3033, %v3138
        %v3159 = vmul.f32 %v3034, %v3138
        %v3160 = vmul.f32 %v3035, %v3138
        %v3161 = vmul.f32 %v3036, %v3138
        %v3162 = vmul.f32 %v3037, %v3138
        %v3163 = vmul.f32 %v3038, %v3138
        %v3164 = vmul.f32 %v3039, %v3138
        %v3165 = vmul.f32 %v3040, %v3138
        %v3166 = vmul.f32 %v3041, %v3138
        %v3167 = vmul.f32 %v3042, %v3138
        %v3168 = vmul.f32 %v3043, %v3138
        %v3169 = vadd.f32 %v3108, %v3139
        %v3170 = vadd.f32 %v3109, %v3140
        %v3171 = vadd.f32 %v3110, %v3141
        %v3172 = vadd.f32 %v3111, %v3142
        %v3173 = vadd.f32 %v3112, %v3143
        %v3174 = vadd.f32 %v3113, %v3144
        %v3175 = vadd.f32 %v3114, %v3145
        %v3176 = vadd.f32 %v3115, %v3146
        %v3177 = vadd.f32 %v3116, %v3147
        %v3178 = vadd.f32 %v3117, %v3148
        %v3179 = vadd.f32 %v3118, %v3149
        %v3180 = vadd.f32 %v3119, %v3150
        %v3181 = vadd.f32 %v3120, %v3151
        %v3182 = vadd.f32 %v3121, %v3152
        %v3183 = vadd.f32 %v3122, %v3153
        %v3184 = vadd.f32 %v3123, %v3154
        %v3185 = vadd.f32 %v3124, %v3155
        %v3186 = vadd.f32 %v3125, %v3156
        %v3187 = vadd.f32 %v3126, %v3157
        %v3188 = vadd.f32 %v3127, %v3158
        %v3189 = vadd.f32 %v3128, %v3159
        %v3190 = vadd.f32 %v3129, %v3160
        %v3191 = vadd.f32 %v3130, %v3161
        %v3192 = vadd.f32 %v3131, %v3162
        %v3193 = vadd.f32 %v3132, %v3163
        %v3194 = vadd.f32 %v3133, %v3164
        %v3195 = vadd.f32 %v3134, %v3165
        %v3196 = vadd.f32 %v3135, %v3166
        %v3197 = vadd.f32 %v3136, %v3167
        %v3198 = vadd.f32 %v3137, %v3168
        %v3199 = vperm.slane %v2756, 0
        %v3200 = vmul.f32 %v2886, %v3199
        %v3201 = vmul.f32 %v2887, %v3199
        %v3202 = vmul.f32 %v2888, %v3199
        %v3203 = vmul.f32 %v2889, %v3199
        %v3204 = vmul.f32 %v2890, %v3199
        %v3205 = vmul.f32 %v2891, %v3199
        %v3206 = vmul.f32 %v2892, %v3199
        %v3207 = vmul.f32 %v2893, %v3199
        %v3208 = vmul.f32 %v2894, %v3199
        %v3209 = vmul.f32 %v2895, %v3199
        %v3210 = vmul.f32 %v2896, %v3199
        %v3211 = vmul.f32 %v2897, %v3199
        %v3212 = vmul.f32 %v2898, %v3199
        %v3213 = vmul.f32 %v2899, %v3199
        %v3214 = vmul.f32 %v2900, %v3199
        %v3215 = vmul.f32 %v2901, %v3199
        %v3216 = vmul.f32 %v2902, %v3199
        %v3217 = vmul.f32 %v2903, %v3199
        %v3218 = vmul.f32 %v2904, %v3199
        %v3219 = vmul.f32 %v2905, %v3199
        %v3220 = vmul.f32 %v2906, %v3199
        %v3221 = vmul.f32 %v2907, %v3199
        %v3222 = vmul.f32 %v2908, %v3199
        %v3223 = vmul.f32 %v2909, %v3199
        %v3224 = vmul.f32 %v2910, %v3199
        %v3225 = vmul.f32 %v2911, %v3199
        %v3226 = vmul.f32 %v2912, %v3199
        %v3227 = vmul.f32 %v2913, %v3199
        %v3228 = vmul.f32 %v2914, %v3199
        %v3229 = vmul.f32 %v2915, %v3199
        %v3230 = vmul.f32 %v2916, %v3199
        %v3231 = vmul.f32 %v2917, %v3199
        %v3232 = vperm.slane %v2756, 1
        %v3233 = vmul.f32 %v1258, %v3232
        %v3234 = vmul.f32 %v1261, %v3232
        %v3235 = vmul.f32 %v1264, %v3232
        %v3236 = vmul.f32 %v1267, %v3232
        %v3237 = vmul.f32 %v1270, %v3232
        %v3238 = vmul.f32 %v1273, %v3232
        %v3239 = vmul.f32 %v1276, %v3232
        %v3240 = vmul.f32 %v1279, %v3232
        %v3241 = vmul.f32 %v1282, %v3232
        %v3242 = vmul.f32 %v1285, %v3232
        %v3243 = vmul.f32 %v1288, %v3232
        %v3244 = vmul.f32 %v1291, %v3232
        %v3245 = vmul.f32 %v1294, %v3232
        %v3246 = vmul.f32 %v1297, %v3232
        %v3247 = vmul.f32 %v1300, %v3232
        %v3248 = vmul.f32 %v1303, %v3232
        %v3249 = vmul.f32 %v1306, %v3232
        %v3250 = vmul.f32 %v1309, %v3232
        %v3251 = vmul.f32 %v1312, %v3232
        %v3252 = vmul.f32 %v1315, %v3232
        %v3253 = vmul.f32 %v1318, %v3232
        %v3254 = vmul.f32 %v1321, %v3232
        %v3255 = vmul.f32 %v1324, %v3232
        %v3256 = vmul.f32 %v1327, %v3232
        %v3257 = vmul.f32 %v1330, %v3232
        %v3258 = vmul.f32 %v1333, %v3232
        %v3259 = vmul.f32 %v1336, %v3232
        %v3260 = vmul.f32 %v1339, %v3232
        %v3261 = vmul.f32 %v1342, %v3232
        %v3262 = vmul.f32 %v1345, %v3232
        %v3263 = vmul.f32 %v1348, %v3232
        %v3264 = vmul.f32 %v1351, %v3232
        %v3265 = vadd.f32 %v3200, %v3233
        %v3266 = vadd.f32 %v3201, %v3234
        %v3267 = vadd.f32 %v3202, %v3235
        %v3268 = vadd.f32 %v3203, %v3236
        %v3269 = vadd.f32 %v3204, %v3237
        %v3270 = vadd.f32 %v3205, %v3238
        %v3271 = vadd.f32 %v3206, %v3239
        %v3272 = vadd.f32 %v3207, %v3240
        %v3273 = vadd.f32 %v3208, %v3241
        %v3274 = vadd.f32 %v3209, %v3242
        %v3275 = vadd.f32 %v3210, %v3243
        %v3276 = vadd.f32 %v3211, %v3244
        %v3277 = vadd.f32 %v3212, %v3245
        %v3278 = vadd.f32 %v3213, %v3246
        %v3279 = vadd.f32 %v3214, %v3247
        %v3280 = vadd.f32 %v3215, %v3248
        %v3281 = vadd.f32 %v3216, %v3249
        %v3282 = vadd.f32 %v3217, %v3250
        %v3283 = vadd.f32 %v3218, %v3251
        %v3284 = vadd.f32 %v3219, %v3252
        %v3285 = vadd.f32 %v3220, %v3253
        %v3286 = vadd.f32 %v3221, %v3254
        %v3287 = vadd.f32 %v3222, %v3255
        %v3288 = vadd.f32 %v3223, %v3256
        %v3289 = vadd.f32 %v3224, %v3257
        %v3290 = vadd.f32 %v3225, %v3258
        %v3291 = vadd.f32 %v3226, %v3259
        %v3292 = vadd.f32 %v3227, %v3260
        %v3293 = vadd.f32 %v3228, %v3261
        %v3294 = vadd.f32 %v3229, %v3262
        %v3295 = vadd.f32 %v3230, %v3263
        %v3296 = vadd.f32 %v3231, %v3264
        %v3297 = vperm.slane %v2756, 2
        %v3298 = vmul.f32 %v3014, %v3297
        %v3299 = vmul.f32 %v3015, %v3297
        %v3300 = vmul.f32 %v3016, %v3297
        %v3301 = vmul.f32 %v3017, %v3297
        %v3302 = vmul.f32 %v3018, %v3297
        %v3303 = vmul.f32 %v3019, %v3297
        %v3304 = vmul.f32 %v3020, %v3297
        %v3305 = vmul.f32 %v3021, %v3297
        %v3306 = vmul.f32 %v3022, %v3297
        %v3307 = vmul.f32 %v3023, %v3297
        %v3308 = vmul.f32 %v3024, %v3297
        %v3309 = vmul.f32 %v3025, %v3297
        %v3310 = vmul.f32 %v3026, %v3297
        %v3311 = vmul.f32 %v3027, %v3297
        %v3312 = vmul.f32 %v3028, %v3297
        %v3313 = vmul.f32 %v3029, %v3297
        %v3314 = vmul.f32 %v3030, %v3297
        %v3315 = vmul.f32 %v3031, %v3297
        %v3316 = vmul.f32 %v3032, %v3297
        %v3317 = vmul.f32 %v3033, %v3297
        %v3318 = vmul.f32 %v3034, %v3297
        %v3319 = vmul.f32 %v3035, %v3297
        %v3320 = vmul.f32 %v3036, %v3297
        %v3321 = vmul.f32 %v3037, %v3297
        %v3322 = vmul.f32 %v3038, %v3297
        %v3323 = vmul.f32 %v3039, %v3297
        %v3324 = vmul.f32 %v3040, %v3297
        %v3325 = vmul.f32 %v3041, %v3297
        %v3326 = vmul.f32 %v3042, %v3297
        %v3327 = vmul.f32 %v3043, %v3297
        %v3328 = vmul.f32 %v3044, %v3297
        %v3329 = vmul.f32 %v3045, %v3297
        %v3330 = vadd.f32 %v3265, %v3298
        %v3331 = vadd.f32 %v3266, %v3299
        %v3332 = vadd.f32 %v3267, %v3300
        %v3333 = vadd.f32 %v3268, %v3301
        %v3334 = vadd.f32 %v3269, %v3302
        %v3335 = vadd.f32 %v3270, %v3303
        %v3336 = vadd.f32 %v3271, %v3304
        %v3337 = vadd.f32 %v3272, %v3305
        %v3338 = vadd.f32 %v3273, %v3306
        %v3339 = vadd.f32 %v3274, %v3307
        %v3340 = vadd.f32 %v3275, %v3308
        %v3341 = vadd.f32 %v3276, %v3309
        %v3342 = vadd.f32 %v3277, %v3310
        %v3343 = vadd.f32 %v3278, %v3311
        %v3344 = vadd.f32 %v3279, %v3312
        %v3345 = vadd.f32 %v3280, %v3313
        %v3346 = vadd.f32 %v3281, %v3314
        %v3347 = vadd.f32 %v3282, %v3315
        %v3348 = vadd.f32 %v3283, %v3316
        %v3349 = vadd.f32 %v3284, %v3317
        %v3350 = vadd.f32 %v3285, %v3318
        %v3351 = vadd.f32 %v3286, %v3319
        %v3352 = vadd.f32 %v3287, %v3320
        %v3353 = vadd.f32 %v3288, %v3321
        %v3354 = vadd.f32 %v3289, %v3322
        %v3355 = vadd.f32 %v3290, %v3323
        %v3356 = vadd.f32 %v3291, %v3324
        %v3357 = vadd.f32 %v3292, %v3325
        %v3358 = vadd.f32 %v3293, %v3326
        %v3359 = vadd.f32 %v3294, %v3327
        %v3360 = vadd.f32 %v3295, %v3328
        %v3361 = vadd.f32 %v3296, %v3329
        %v3362 = vperm.slane %v2757, 0
        %v3363 = vmul.f32 %v2888, %v3362
        %v3364 = vmul.f32 %v2889, %v3362
        %v3365 = vmul.f32 %v2890, %v3362
        %v3366 = vmul.f32 %v2891, %v3362
        %v3367 = vmul.f32 %v2892, %v3362
        %v3368 = vmul.f32 %v2893, %v3362
        %v3369 = vmul.f32 %v2894, %v3362
        %v3370 = vmul.f32 %v2895, %v3362
        %v3371 = vmul.f32 %v2896, %v3362
        %v3372 = vmul.f32 %v2897, %v3362
        %v3373 = vmul.f32 %v2898, %v3362
        %v3374 = vmul.f32 %v2899, %v3362
        %v3375 = vmul.f32 %v2900, %v3362
        %v3376 = vmul.f32 %v2901, %v3362
        %v3377 = vmul.f32 %v2902, %v3362
        %v3378 = vmul.f32 %v2903, %v3362
        %v3379 = vmul.f32 %v2904, %v3362
        %v3380 = vmul.f32 %v2905, %v3362
        %v3381 = vmul.f32 %v2906, %v3362
        %v3382 = vmul.f32 %v2907, %v3362
        %v3383 = vmul.f32 %v2908, %v3362
        %v3384 = vmul.f32 %v2909, %v3362
        %v3385 = vmul.f32 %v2910, %v3362
        %v3386 = vmul.f32 %v2911, %v3362
        %v3387 = vmul.f32 %v2912, %v3362
        %v3388 = vmul.f32 %v2913, %v3362
        %v3389 = vmul.f32 %v2914, %v3362
        %v3390 = vmul.f32 %v2915, %v3362
        %v3391 = vmul.f32 %v2916, %v3362
        %v3392 = vmul.f32 %v2917, %v3362
        %v3393 = vperm.slane %v2757, 1
        %v3394 = vmul.f32 %v1264, %v3393
        %v3395 = vmul.f32 %v1267, %v3393
        %v3396 = vmul.f32 %v1270, %v3393
        %v3397 = vmul.f32 %v1273, %v3393
        %v3398 = vmul.f32 %v1276, %v3393
        %v3399 = vmul.f32 %v1279, %v3393
        %v3400 = vmul.f32 %v1282, %v3393
        %v3401 = vmul.f32 %v1285, %v3393
        %v3402 = vmul.f32 %v1288, %v3393
        %v3403 = vmul.f32 %v1291, %v3393
        %v3404 = vmul.f32 %v1294, %v3393
        %v3405 = vmul.f32 %v1297, %v3393
        %v3406 = vmul.f32 %v1300, %v3393
        %v3407 = vmul.f32 %v1303, %v3393
        %v3408 = vmul.f32 %v1306, %v3393
        %v3409 = vmul.f32 %v1309, %v3393
        %v3410 = vmul.f32 %v1312, %v3393
        %v3411 = vmul.f32 %v1315, %v3393
        %v3412 = vmul.f32 %v1318, %v3393
        %v3413 = vmul.f32 %v1321, %v3393
        %v3414 = vmul.f32 %v1324, %v3393
        %v3415 = vmul.f32 %v1327, %v3393
        %v3416 = vmul.f32 %v1330, %v3393
        %v3417 = vmul.f32 %v1333, %v3393
        %v3418 = vmul.f32 %v1336, %v3393
        %v3419 = vmul.f32 %v1339, %v3393
        %v3420 = vmul.f32 %v1342, %v3393
        %v3421 = vmul.f32 %v1345, %v3393
        %v3422 = vmul.f32 %v1348, %v3393
        %v3423 = vmul.f32 %v1351, %v3393
        %v3424 = vadd.f32 %v3363, %v3394
        %v3425 = vadd.f32 %v3364, %v3395
        %v3426 = vadd.f32 %v3365, %v3396
        %v3427 = vadd.f32 %v3366, %v3397
        %v3428 = vadd.f32 %v3367, %v3398
        %v3429 = vadd.f32 %v3368, %v3399
        %v3430 = vadd.f32 %v3369, %v3400
        %v3431 = vadd.f32 %v3370, %v3401
        %v3432 = vadd.f32 %v3371, %v3402
        %v3433 = vadd.f32 %v3372, %v3403
        %v3434 = vadd.f32 %v3373, %v3404
        %v3435 = vadd.f32 %v3374, %v3405
        %v3436 = vadd.f32 %v3375, %v3406
        %v3437 = vadd.f32 %v3376, %v3407
        %v3438 = vadd.f32 %v3377, %v3408
        %v3439 = vadd.f32 %v3378, %v3409
        %v3440 = vadd.f32 %v3379, %v3410
        %v3441 = vadd.f32 %v3380, %v3411
        %v3442 = vadd.f32 %v3381, %v3412
        %v3443 = vadd.f32 %v3382, %v3413
        %v3444 = vadd.f32 %v3383, %v3414
        %v3445 = vadd.f32 %v3384, %v3415
        %v3446 = vadd.f32 %v3385, %v3416
        %v3447 = vadd.f32 %v3386, %v3417
        %v3448 = vadd.f32 %v3387, %v3418
        %v3449 = vadd.f32 %v3388, %v3419
        %v3450 = vadd.f32 %v3389, %v3420
        %v3451 = vadd.f32 %v3390, %v3421
        %v3452 = vadd.f32 %v3391, %v3422
        %v3453 = vadd.f32 %v3392, %v3423
        %v3454 = vperm.slane %v2757, 2
        %v3455 = vmul.f32 %v3016, %v3454
        %v3456 = vmul.f32 %v3017, %v3454
        %v3457 = vmul.f32 %v3018, %v3454
        %v3458 = vmul.f32 %v3019, %v3454
        %v3459 = vmul.f32 %v3020, %v3454
        %v3460 = vmul.f32 %v3021, %v3454
        %v3461 = vmul.f32 %v3022, %v3454
        %v3462 = vmul.f32 %v3023, %v3454
        %v3463 = vmul.f32 %v3024, %v3454
        %v3464 = vmul.f32 %v3025, %v3454
        %v3465 = vmul.f32 %v3026, %v3454
        %v3466 = vmul.f32 %v3027, %v3454
        %v3467 = vmul.f32 %v3028, %v3454
        %v3468 = vmul.f32 %v3029, %v3454
        %v3469 = vmul.f32 %v3030, %v3454
        %v3470 = vmul.f32 %v3031, %v3454
        %v3471 = vmul.f32 %v3032, %v3454
        %v3472 = vmul.f32 %v3033, %v3454
        %v3473 = vmul.f32 %v3034, %v3454
        %v3474 = vmul.f32 %v3035, %v3454
        %v3475 = vmul.f32 %v3036, %v3454
        %v3476 = vmul.f32 %v3037, %v3454
        %v3477 = vmul.f32 %v3038, %v3454
        %v3478 = vmul.f32 %v3039, %v3454
        %v3479 = vmul.f32 %v3040, %v3454
        %v3480 = vmul.f32 %v3041, %v3454
        %v3481 = vmul.f32 %v3042, %v3454
        %v3482 = vmul.f32 %v3043, %v3454
        %v3483 = vmul.f32 %v3044, %v3454
        %v3484 = vmul.f32 %v3045, %v3454
        %v3485 = vadd.f32 %v3424, %v3455
        %v3486 = vadd.f32 %v3425, %v3456
        %v3487 = vadd.f32 %v3426, %v3457
        %v3488 = vadd.f32 %v3427, %v3458
        %v3489 = vadd.f32 %v3428, %v3459
        %v3490 = vadd.f32 %v3429, %v3460
        %v3491 = vadd.f32 %v3430, %v3461
        %v3492 = vadd.f32 %v3431, %v3462
        %v3493 = vadd.f32 %v3432, %v3463
        %v3494 = vadd.f32 %v3433, %v3464
        %v3495 = vadd.f32 %v3434, %v3465
        %v3496 = vadd.f32 %v3435, %v3466
        %v3497 = vadd.f32 %v3436, %v3467
        %v3498 = vadd.f32 %v3437, %v3468
        %v3499 = vadd.f32 %v3438, %v3469
        %v3500 = vadd.f32 %v3439, %v3470
        %v3501 = vadd.f32 %v3440, %v3471
        %v3502 = vadd.f32 %v3441, %v3472
        %v3503 = vadd.f32 %v3442, %v3473
        %v3504 = vadd.f32 %v3443, %v3474
        %v3505 = vadd.f32 %v3444, %v3475
        %v3506 = vadd.f32 %v3445, %v3476
        %v3507 = vadd.f32 %v3446, %v3477
        %v3508 = vadd.f32 %v3447, %v3478
        %v3509 = vadd.f32 %v3448, %v3479
        %v3510 = vadd.f32 %v3449, %v3480
        %v3511 = vadd.f32 %v3450, %v3481
        %v3512 = vadd.f32 %v3451, %v3482
        %v3513 = vadd.f32 %v3452, %v3483
        %v3514 = vadd.f32 %v3453, %v3484
        %v3515 = vadd.f32 %v3330, 0.0
        %v3516 = vadd.f32 %v3331, 0.0
        %v3517 = vadd.f32 %v3169, %v3332
        %v3518 = vadd.f32 %v3170, %v3333
        %v3519 = vadd.f32 %v3171, %v3334
        %v3520 = vadd.f32 %v3172, %v3335
        %v3521 = vadd.f32 %v3173, %v3336
        %v3522 = vadd.f32 %v3174, %v3337
        %v3523 = vadd.f32 %v3175, %v3338
        %v3524 = vadd.f32 %v3176, %v3339
        %v3525 = vadd.f32 %v3177, %v3340
        %v3526 = vadd.f32 %v3178, %v3341
        %v3527 = vadd.f32 %v3179, %v3342
        %v3528 = vadd.f32 %v3180, %v3343
        %v3529 = vadd.f32 %v3181, %v3344
        %v3530 = vadd.f32 %v3182, %v3345
        %v3531 = vadd.f32 %v3183, %v3346
        %v3532 = vadd.f32 %v3184, %v3347
        %v3533 = vadd.f32 %v3185, %v3348
        %v3534 = vadd.f32 %v3186, %v3349
        %v3535 = vadd.f32 %v3187, %v3350
        %v3536 = vadd.f32 %v3188, %v3351
        %v3537 = vadd.f32 %v3189, %v3352
        %v3538 = vadd.f32 %v3190, %v3353
        %v3539 = vadd.f32 %v3191, %v3354
        %v3540 = vadd.f32 %v3192, %v3355
        %v3541 = vadd.f32 %v3193, %v3356
        %v3542 = vadd.f32 %v3194, %v3357
        %v3543 = vadd.f32 %v3195, %v3358
        %v3544 = vadd.f32 %v3196, %v3359
        %v3545 = vadd.f32 %v3197, %v3360
        %v3546 = vadd.f32 %v3198, %v3361
        %v3547 = vadd.f32 %v3515, %v3485
        %v3548 = vadd.f32 %v3516, %v3486
        %v3549 = vadd.f32 %v3517, %v3487
        %v3550 = vadd.f32 %v3518, %v3488
        %v3551 = vadd.f32 %v3519, %v3489
        %v3552 = vadd.f32 %v3520, %v3490
        %v3553 = vadd.f32 %v3521, %v3491
        %v3554 = vadd.f32 %v3522, %v3492
        %v3555 = vadd.f32 %v3523, %v3493
        %v3556 = vadd.f32 %v3524, %v3494
        %v3557 = vadd.f32 %v3525, %v3495
        %v3558 = vadd.f32 %v3526, %v3496
        %v3559 = vadd.f32 %v3527, %v3497
        %v3560 = vadd.f32 %v3528, %v3498
        %v3561 = vadd.f32 %v3529, %v3499
        %v3562 = vadd.f32 %v3530, %v3500
        %v3563 = vadd.f32 %v3531, %v3501
        %v3564 = vadd.f32 %v3532, %v3502
        %v3565 = vadd.f32 %v3533, %v3503
        %v3566 = vadd.f32 %v3534, %v3504
        %v3567 = vadd.f32 %v3535, %v3505
        %v3568 = vadd.f32 %v3536, %v3506
        %v3569 = vadd.f32 %v3537, %v3507
        %v3570 = vadd.f32 %v3538, %v3508
        %v3571 = vadd.f32 %v3539, %v3509
        %v3572 = vadd.f32 %v3540, %v3510
        %v3573 = vadd.f32 %v3541, %v3511
        %v3574 = vadd.f32 %v3542, %v3512
        %v3575 = vadd.f32 %v3543, %v3513
        %v3576 = vadd.f32 %v3544, %v3514
        %v3577 = vadd.f32 %v3545, 0.0
        %v3578 = vadd.f32 %v3546, 0.0
        %s3579 = scalar_lea.vmem %s7, 60
        %v3580 = vld [vmem:[%s3579] sm:$0x7]
        %v3581 = vld [vmem:[%s3579 + $0x4] sm:$0x7]
        %v3582 = vld [vmem:[%s3579 + $0x8] sm:$0x7]
        %v3591 = vrot.slane %v2746, 7
        %v3592 = vrot.slane %v2747, 7
        %v3593 = vsel %vm1709, %v3591, %v3592
        %v3594 = vrot.slane %v2748, 7
        %v3595 = vsel %vm1709, %v3592, %v3594
        %v3596 = vrot.slane %v2749, 7
        %v3597 = vsel %vm1709, %v3594, %v3596
        %v3598 = vrot.slane %v2750, 7
        %v3599 = vsel %vm1709, %v3596, %v3598
        %v3600 = vrot.slane %v2751, 7
        %v3601 = vsel %vm1709, %v3598, %v3600
        %v3602 = vrot.slane %v2752, 7
        %v3603 = vsel %vm1709, %v3600, %v3602
        %v3604 = vrot.slane %v2753, 7
        %v3605 = vsel %vm1709, %v3602, %v3604
        %v3614 = vsel %vm1709, 0.0, %v3591
        %v3615 = vsel %vm1677, %v3614, 0.0
        %v3616 = vsel %vm1678, %v3593, 0.0
        %v3617 = vsel %vm1679, %v3595, 0.0
        %v3618 = vsel %vm1680, %v3597, 0.0
        %v3619 = vsel %vm1681, %v3599, 0.0
        %v3620 = vsel %vm1682, %v3601, 0.0
        %v3621 = vsel %vm1683, %v3603, 0.0
        %v3622 = vsel %vm1684, %v3605, 0.0
        %v3623 = vrot.slane %v2746, 1
        %v3624 = vrot.slane %v2747, 1
        %v3625 = vsel %vm1714, %v3623, %v3624
        %v3626 = vrot.slane %v2748, 1
        %v3627 = vsel %vm1714, %v3624, %v3626
        %v3628 = vrot.slane %v2749, 1
        %v3629 = vsel %vm1714, %v3626, %v3628
        %v3630 = vrot.slane %v2750, 1
        %v3631 = vsel %vm1714, %v3628, %v3630
        %v3632 = vrot.slane %v2751, 1
        %v3633 = vsel %vm1714, %v3630, %v3632
        %v3634 = vrot.slane %v2752, 1
        %v3635 = vsel %vm1714, %v3632, %v3634
        %v3636 = vrot.slane %v2753, 1
        %v3637 = vsel %vm1714, %v3634, %v3636
        %v3646 = vsel %vm1714, %v3636, 0.0
        %v3647 = vsel %vm1685, %v3625, 0.0
        %v3648 = vsel %vm1686, %v3627, 0.0
        %v3649 = vsel %vm1687, %v3629, 0.0
        %v3650 = vsel %vm1688, %v3631, 0.0
        %v3651 = vsel %vm1689, %v3633, 0.0
        %v3652 = vsel %vm1690, %v3635, 0.0
        %v3653 = vsel %vm1691, %v3637, 0.0
        %v3654 = vsel %vm1692, %v3646, 0.0
        %v3655 = vperm.slane %v3580, 0
        %v3656 = vmul.f32 %v3615, %v3655
        %v3657 = vmul.f32 %v3616, %v3655
        %v3658 = vmul.f32 %v3617, %v3655
        %v3659 = vmul.f32 %v3618, %v3655
        %v3660 = vmul.f32 %v3619, %v3655
        %v3661 = vmul.f32 %v3620, %v3655
        %v3662 = vmul.f32 %v3621, %v3655
        %v3663 = vperm.slane %v3580, 1
        %v3664 = vmul.f32 %v2746, %v3663
        %v3665 = vmul.f32 %v2747, %v3663
        %v3666 = vmul.f32 %v2748, %v3663
        %v3667 = vmul.f32 %v2749, %v3663
        %v3668 = vmul.f32 %v2750, %v3663
        %v3669 = vmul.f32 %v2751, %v3663
        %v3670 = vmul.f32 %v2752, %v3663
        %v3671 = vadd.f32 %v3656, %v3664
        %v3672 = vadd.f32 %v3657, %v3665
        %v3673 = vadd.f32 %v3658, %v3666
        %v3674 = vadd.f32 %v3659, %v3667
        %v3675 = vadd.f32 %v3660, %v3668
        %v3676 = vadd.f32 %v3661, %v3669
        %v3677 = vadd.f32 %v3662, %v3670
        %v3678 = vperm.slane %v3580, 2
        %v3679 = vmul.f32 %v3647, %v3678
        %v3680 = vmul.f32 %v3648, %v3678
        %v3681 = vmul.f32 %v3649, %v3678
        %v3682 = vmul.f32 %v3650, %v3678
        %v3683 = vmul.f32 %v3651, %v3678
        %v3684 = vmul.f32 %v3652, %v3678
        %v3685 = vmul.f32 %v3653, %v3678
        %v3686 = vadd.f32 %v3671, %v3679
        %v3687 = vadd.f32 %v3672, %v3680
        %v3688 = vadd.f32 %v3673, %v3681
        %v3689 = vadd.f32 %v3674, %v3682
        %v3690 = vadd.f32 %v3675, %v3683
        %v3691 = vadd.f32 %v3676, %v3684
        %v3692 = vadd.f32 %v3677, %v3685
        %v3693 = vperm.slane %v3581, 0
        %v3694 = vmul.f32 %v3615, %v3693
        %v3695 = vmul.f32 %v3616, %v3693
        %v3696 = vmul.f32 %v3617, %v3693
        %v3697 = vmul.f32 %v3618, %v3693
        %v3698 = vmul.f32 %v3619, %v3693
        %v3699 = vmul.f32 %v3620, %v3693
        %v3700 = vmul.f32 %v3621, %v3693
        %v3701 = vmul.f32 %v3622, %v3693
        %v3702 = vperm.slane %v3581, 1
        %v3703 = vmul.f32 %v2746, %v3702
        %v3704 = vmul.f32 %v2747, %v3702
        %v3705 = vmul.f32 %v2748, %v3702
        %v3706 = vmul.f32 %v2749, %v3702
        %v3707 = vmul.f32 %v2750, %v3702
        %v3708 = vmul.f32 %v2751, %v3702
        %v3709 = vmul.f32 %v2752, %v3702
        %v3710 = vmul.f32 %v2753, %v3702
        %v3711 = vadd.f32 %v3694, %v3703
        %v3712 = vadd.f32 %v3695, %v3704
        %v3713 = vadd.f32 %v3696, %v3705
        %v3714 = vadd.f32 %v3697, %v3706
        %v3715 = vadd.f32 %v3698, %v3707
        %v3716 = vadd.f32 %v3699, %v3708
        %v3717 = vadd.f32 %v3700, %v3709
        %v3718 = vadd.f32 %v3701, %v3710
        %v3719 = vperm.slane %v3581, 2
        %v3720 = vmul.f32 %v3647, %v3719
        %v3721 = vmul.f32 %v3648, %v3719
        %v3722 = vmul.f32 %v3649, %v3719
        %v3723 = vmul.f32 %v3650, %v3719
        %v3724 = vmul.f32 %v3651, %v3719
        %v3725 = vmul.f32 %v3652, %v3719
        %v3726 = vmul.f32 %v3653, %v3719
        %v3727 = vmul.f32 %v3654, %v3719
        %v3728 = vadd.f32 %v3711, %v3720
        %v3729 = vadd.f32 %v3712, %v3721
        %v3730 = vadd.f32 %v3713, %v3722
        %v3731 = vadd.f32 %v3714, %v3723
        %v3732 = vadd.f32 %v3715, %v3724
        %v3733 = vadd.f32 %v3716, %v3725
        %v3734 = vadd.f32 %v3717, %v3726
        %v3735 = vadd.f32 %v3718, %v3727
        %v3736 = vperm.slane %v3582, 0
        %v3737 = vmul.f32 %v3616, %v3736
        %v3738 = vmul.f32 %v3617, %v3736
        %v3739 = vmul.f32 %v3618, %v3736
        %v3740 = vmul.f32 %v3619, %v3736
        %v3741 = vmul.f32 %v3620, %v3736
        %v3742 = vmul.f32 %v3621, %v3736
        %v3743 = vmul.f32 %v3622, %v3736
        %v3744 = vperm.slane %v3582, 1
        %v3745 = vmul.f32 %v2747, %v3744
        %v3746 = vmul.f32 %v2748, %v3744
        %v3747 = vmul.f32 %v2749, %v3744
        %v3748 = vmul.f32 %v2750, %v3744
        %v3749 = vmul.f32 %v2751, %v3744
        %v3750 = vmul.f32 %v2752, %v3744
        %v3751 = vmul.f32 %v2753, %v3744
        %v3752 = vadd.f32 %v3737, %v3745
        %v3753 = vadd.f32 %v3738, %v3746
        %v3754 = vadd.f32 %v3739, %v3747
        %v3755 = vadd.f32 %v3740, %v3748
        %v3756 = vadd.f32 %v3741, %v3749
        %v3757 = vadd.f32 %v3742, %v3750
        %v3758 = vadd.f32 %v3743, %v3751
        %v3759 = vperm.slane %v3582, 2
        %v3760 = vmul.f32 %v3648, %v3759
        %v3761 = vmul.f32 %v3649, %v3759
        %v3762 = vmul.f32 %v3650, %v3759
        %v3763 = vmul.f32 %v3651, %v3759
        %v3764 = vmul.f32 %v3652, %v3759
        %v3765 = vmul.f32 %v3653, %v3759
        %v3766 = vmul.f32 %v3654, %v3759
        %v3767 = vadd.f32 %v3752, %v3760
        %v3768 = vadd.f32 %v3753, %v3761
        %v3769 = vadd.f32 %v3754, %v3762
        %v3770 = vadd.f32 %v3755, %v3763
        %v3771 = vadd.f32 %v3756, %v3764
        %v3772 = vadd.f32 %v3757, %v3765
        %v3773 = vadd.f32 %v3758, %v3766
        %v3774 = vadd.f32 %v3728, 0.0
        %v3775 = vadd.f32 %v3686, %v3729
        %v3776 = vadd.f32 %v3687, %v3730
        %v3777 = vadd.f32 %v3688, %v3731
        %v3778 = vadd.f32 %v3689, %v3732
        %v3779 = vadd.f32 %v3690, %v3733
        %v3780 = vadd.f32 %v3691, %v3734
        %v3781 = vadd.f32 %v3692, %v3735
        %v3782 = vadd.f32 %v3774, %v3767
        %v3783 = vadd.f32 %v3775, %v3768
        %v3784 = vadd.f32 %v3776, %v3769
        %v3785 = vadd.f32 %v3777, %v3770
        %v3786 = vadd.f32 %v3778, %v3771
        %v3787 = vadd.f32 %v3779, %v3772
        %v3788 = vadd.f32 %v3780, %v3773
        %v3789 = vadd.f32 %v3781, 0.0
        %v3790 = vld [vmem:[%s16] sm:$0xff]
        %v3791 = vld [vmem:[%s16 + $0x8] sm:$0xff]
        %v3792 = vld [vmem:[%s16 + $0x10] sm:$0xff]
        %v3793 = vld [vmem:[%s16 + $0x18] sm:$0xff]
        %v3794 = vld [vmem:[%s16 + $0x20] sm:$0xff]
        %v3795 = vld [vmem:[%s16 + $0x28] sm:$0xff]
        %v3796 = vld [vmem:[%s16 + $0x30] sm:$0xff]
        %v3797 = vld [vmem:[%s16 + $0x38] sm:$0xff]
        %v3798 = vld [vmem:[%s16 + $0x40] sm:$0xff]
        %v3799 = vld [vmem:[%s16 + $0x48] sm:$0xff]
        %v3800 = vld [vmem:[%s16 + $0x50] sm:$0xff]
        %v3801 = vld [vmem:[%s16 + $0x58] sm:$0xff]
        %v3802 = vld [vmem:[%s16 + $0x60] sm:$0xff]
        %v3803 = vld [vmem:[%s16 + $0x68] sm:$0xff]
        %v3804 = vld [vmem:[%s16 + $0x70] sm:$0xff]
        %v3805 = vld [vmem:[%s16 + $0x78] sm:$0xff]
        %v3806 = vld [vmem:[%s16 + $0x80] sm:$0xff]
        %v3807 = vld [vmem:[%s16 + $0x88] sm:$0xff]
        %v3808 = vld [vmem:[%s16 + $0x90] sm:$0xff]
        %v3809 = vld [vmem:[%s16 + $0x98] sm:$0xff]
        %v3810 = vld [vmem:[%s16 + $0xa0] sm:$0xff]
        %v3811 = vld [vmem:[%s16 + $0xa8] sm:$0xff]
        %v3812 = vld [vmem:[%s16 + $0xb0] sm:$0xff]
        %v3813 = vld [vmem:[%s16 + $0xb8] sm:$0xff]
        %v3814 = vld [vmem:[%s16 + $0xc0] sm:$0xff]
        %v3815 = vld [vmem:[%s16 + $0xc8] sm:$0xff]
        %v3816 = vld [vmem:[%s16 + $0xd0] sm:$0xff]
        %v3817 = vld [vmem:[%s16 + $0xd8] sm:$0xff]
        %v3818 = vld [vmem:[%s16 + $0xe0] sm:$0xff]
        %v3819 = vld [vmem:[%s16 + $0xe8] sm:$0xff]
        %v3820 = vld [vmem:[%s16 + $0xf0] sm:$0xff]
        %v3821 = vld [vmem:[%s16 + $0xf8] sm:$0xff]
        %vm3822 = vcmask 523264
        %v3824 = vsel %vm3822, %v3790, 0
        %v3827 = vsel %vm3822, %v3791, 0
        %v3830 = vsel %vm3822, %v3792, 0
        %v3833 = vsel %vm3822, %v3793, 0
        %v3836 = vsel %vm3822, %v3794, 0
        %v3839 = vsel %vm3822, %v3795, 0
        %v3842 = vsel %vm3822, %v3796, 0
        %v3845 = vsel %vm3822, %v3797, 0
        %v3848 = vsel %vm3822, %v3798, 0
        %v3851 = vsel %vm3822, %v3799, 0
        %v3854 = vsel %vm3822, %v3800, 0
        %v3857 = vsel %vm3822, %v3801, 0
        %v3860 = vsel %vm3822, %v3802, 0
        %v3863 = vsel %vm3822, %v3803, 0
        %v3866 = vsel %vm3822, %v3804, 0
        %v3869 = vsel %vm3822, %v3805, 0
        %v3872 = vsel %vm3822, %v3806, 0
        %v3875 = vsel %vm3822, %v3807, 0
        %v3878 = vsel %vm3822, %v3808, 0
        %v3881 = vsel %vm3822, %v3809, 0
        %v3884 = vsel %vm3822, %v3810, 0
        %v3887 = vsel %vm3822, %v3811, 0
        %v3890 = vsel %vm3822, %v3812, 0
        %v3893 = vsel %vm3822, %v3813, 0
        %v3896 = vsel %vm3822, %v3814, 0
        %v3899 = vsel %vm3822, %v3815, 0
        %v3902 = vsel %vm3822, %v3816, 0
        %v3905 = vsel %vm3822, %v3817, 0
        %v3908 = vsel %vm3822, %v3818, 0
        %v3911 = vsel %vm3822, %v3819, 0
        %v3914 = vsel %vm3822, %v3820, 0
        %v3917 = vsel %vm3822, %v3821, 0
        %3919 = vmatpush.msra.mxu0 0.0
        %3920 = vmatpush.msra.mxu0 0.0
        %3921 = vmatpush.msra.mxu0 0.0
        %3922 = vmatpush.msra.mxu0 0.0
        %3923 = vmatpush.msra.mxu0 0.0
        %3924 = vmatpush.msra.mxu0 0.0
        %3925 = vmatpush.msra.mxu0 0.0
        %3926 = vmatpush.msra.mxu0 0.0
        %3927 = vmatpush.msra.mxu0 %v3789
        %3928 = vmatpush.msra.mxu0 %v3788
        %3929 = vmatpush.msra.mxu0 %v3787
        %3930 = vmatpush.msra.mxu0 %v3786
        %3931 = vmatpush.msra.mxu0 %v3785
        %3932 = vmatpush.msra.mxu0 %v3784
        %3933 = vmatpush.msra.mxu0 %v3783
        %3934 = vmatpush.msra.mxu0 %v3782
        %3935 = vmatmul.f32.gmra.mxu0 %v3824
        %v3936 = vpop.f32.mrf.mxu0
        %v3937 = vadd.f32 0.0, %v3936
        %3938 = vmatmul.f32.gmra.mxu0 %v3827
        %v3939 = vpop.f32.mrf.mxu0
        %v3940 = vadd.f32 0.0, %v3939
        %3941 = vmatmul.f32.gmra.mxu0 %v3830
        %v3942 = vpop.f32.mrf.mxu0
        %v3943 = vadd.f32 0.0, %v3942
        %3944 = vmatmul.f32.gmra.mxu0 %v3833
        %v3945 = vpop.f32.mrf.mxu0
        %v3946 = vadd.f32 0.0, %v3945
        %3947 = vmatmul.f32.gmra.mxu0 %v3836
        %v3948 = vpop.f32.mrf.mxu0
        %v3949 = vadd.f32 0.0, %v3948
        %3950 = vmatmul.f32.gmra.mxu0 %v3839
        %v3951 = vpop.f32.mrf.mxu0
        %v3952 = vadd.f32 0.0, %v3951
        %3953 = vmatmul.f32.gmra.mxu0 %v3842
        %v3954 = vpop.f32.mrf.mxu0
        %v3955 = vadd.f32 0.0, %v3954
        %3956 = vmatmul.f32.gmra.mxu0 %v3845
        %v3957 = vpop.f32.mrf.mxu0
        %v3958 = vadd.f32 0.0, %v3957
        %3959 = vmatmul.f32.gmra.mxu0 %v3848
        %v3960 = vpop.f32.mrf.mxu0
        %v3961 = vadd.f32 0.0, %v3960
        %3962 = vmatmul.f32.gmra.mxu0 %v3851
        %v3963 = vpop.f32.mrf.mxu0
        %v3964 = vadd.f32 0.0, %v3963
        %3965 = vmatmul.f32.gmra.mxu0 %v3854
        %v3966 = vpop.f32.mrf.mxu0
        %v3967 = vadd.f32 0.0, %v3966
        %3968 = vmatmul.f32.gmra.mxu0 %v3857
        %v3969 = vpop.f32.mrf.mxu0
        %v3970 = vadd.f32 0.0, %v3969
        %3971 = vmatmul.f32.gmra.mxu0 %v3860
        %v3972 = vpop.f32.mrf.mxu0
        %v3973 = vadd.f32 0.0, %v3972
        %3974 = vmatmul.f32.gmra.mxu0 %v3863
        %v3975 = vpop.f32.mrf.mxu0
        %v3976 = vadd.f32 0.0, %v3975
        %3977 = vmatmul.f32.gmra.mxu0 %v3866
        %v3978 = vpop.f32.mrf.mxu0
        %v3979 = vadd.f32 0.0, %v3978
        %3980 = vmatmul.f32.gmra.mxu0 %v3869
        %v3981 = vpop.f32.mrf.mxu0
        %v3982 = vadd.f32 0.0, %v3981
        %3983 = vmatmul.f32.gmra.mxu0 %v3872
        %v3984 = vpop.f32.mrf.mxu0
        %v3985 = vadd.f32 0.0, %v3984
        %3986 = vmatmul.f32.gmra.mxu0 %v3875
        %v3987 = vpop.f32.mrf.mxu0
        %v3988 = vadd.f32 0.0, %v3987
        %3989 = vmatmul.f32.gmra.mxu0 %v3878
        %v3990 = vpop.f32.mrf.mxu0
        %v3991 = vadd.f32 0.0, %v3990
        %3992 = vmatmul.f32.gmra.mxu0 %v3881
        %v3993 = vpop.f32.mrf.mxu0
        %v3994 = vadd.f32 0.0, %v3993
        %3995 = vmatmul.f32.gmra.mxu0 %v3884
        %v3996 = vpop.f32.mrf.mxu0
        %v3997 = vadd.f32 0.0, %v3996
        %3998 = vmatmul.f32.gmra.mxu0 %v3887
        %v3999 = vpop.f32.mrf.mxu0
        %v4000 = vadd.f32 0.0, %v3999
        %4001 = vmatmul.f32.gmra.mxu0 %v3890
        %v4002 = vpop.f32.mrf.mxu0
        %v4003 = vadd.f32 0.0, %v4002
        %4004 = vmatmul.f32.gmra.mxu0 %v3893
        %v4005 = vpop.f32.mrf.mxu0
        %v4006 = vadd.f32 0.0, %v4005
        %4007 = vmatmul.f32.gmra.mxu0 %v3896
        %v4008 = vpop.f32.mrf.mxu0
        %v4009 = vadd.f32 0.0, %v4008
        %4010 = vmatmul.f32.gmra.mxu0 %v3899
        %v4011 = vpop.f32.mrf.mxu0
        %v4012 = vadd.f32 0.0, %v4011
        %4013 = vmatmul.f32.gmra.mxu0 %v3902
        %v4014 = vpop.f32.mrf.mxu0
        %v4015 = vadd.f32 0.0, %v4014
        %4016 = vmatmul.f32.gmra.mxu0 %v3905
        %v4017 = vpop.f32.mrf.mxu0
        %v4018 = vadd.f32 0.0, %v4017
        %4019 = vmatmul.f32.gmra.mxu0 %v3908
        %v4020 = vpop.f32.mrf.mxu0
        %v4021 = vadd.f32 0.0, %v4020
        %4022 = vmatmul.f32.gmra.mxu0 %v3911
        %v4023 = vpop.f32.mrf.mxu0
        %v4024 = vadd.f32 0.0, %v4023
        %4025 = vmatmul.f32.gmra.mxu0 %v3914
        %v4026 = vpop.f32.mrf.mxu0
        %v4027 = vadd.f32 0.0, %v4026
        %4028 = vmatmul.f32.gmra.mxu0 %v3917
        %v4029 = vpop.f32.mrf.mxu0
        %v4030 = vadd.f32 0.0, %v4029
        %4031 = vdwg.mxu0
        %s4032 = scalar_lea.vmem %s8, 96
        %v4033 = vld [vmem:[%s4032] sm:$0xff]
        %v4034 = vld [vmem:[%s4032 + $0x8] sm:$0xff]
        %v4035 = vld [vmem:[%s4032 + $0x10] sm:$0xff]
        %v4036 = vld [vmem:[%s4032 + $0x18] sm:$0xff]
        %v4037 = vld [vmem:[%s4032 + $0x20] sm:$0xff]
        %v4038 = vld [vmem:[%s4032 + $0x28] sm:$0xff]
        %s4039 = scalar_lea.vmem %s9, 96
        %v4040 = vld [vmem:[%s4039] sm:$0xff]
        %v4041 = vld [vmem:[%s4039 + $0x8] sm:$0xff]
        %v4042 = vld [vmem:[%s4039 + $0x10] sm:$0xff]
        %v4043 = vld [vmem:[%s4039 + $0x18] sm:$0xff]
        %v4044 = vld [vmem:[%s4039 + $0x20] sm:$0xff]
        %v4045 = vld [vmem:[%s4039 + $0x28] sm:$0xff]
        %s4046 = scalar_lea.vmem %s10, 96
        %v4047 = vld [vmem:[%s4046] sm:$0xff]
        %v4048 = vld [vmem:[%s4046 + $0x8] sm:$0xff]
        %v4049 = vld [vmem:[%s4046 + $0x10] sm:$0xff]
        %v4050 = vld [vmem:[%s4046 + $0x18] sm:$0xff]
        %v4051 = vld [vmem:[%s4046 + $0x20] sm:$0xff]
        %v4052 = vld [vmem:[%s4046 + $0x28] sm:$0xff]
        %v4053 = vadd.f32 %v3547, %v3937
        %v4054 = vadd.f32 %v3548, %v3940
        %v4055 = vadd.f32 %v3549, %v3943
        %v4056 = vadd.f32 %v3550, %v3946
        %v4057 = vadd.f32 %v3551, %v3949
        %v4058 = vadd.f32 %v3552, %v3952
        %v4059 = vadd.f32 %v3553, %v3955
        %v4060 = vadd.f32 %v3554, %v3958
        %v4061 = vadd.f32 %v3555, %v3961
        %v4062 = vadd.f32 %v3556, %v3964
        %v4063 = vadd.f32 %v3557, %v3967
        %v4064 = vadd.f32 %v3558, %v3970
        %v4065 = vadd.f32 %v3559, %v3973
        %v4066 = vadd.f32 %v3560, %v3976
        %v4067 = vadd.f32 %v3561, %v3979
        %v4068 = vadd.f32 %v3562, %v3982
        %v4069 = vadd.f32 %v3563, %v3985
        %v4070 = vadd.f32 %v3564, %v3988
        %v4071 = vadd.f32 %v3565, %v3991
        %v4072 = vadd.f32 %v3566, %v3994
        %v4073 = vadd.f32 %v3567, %v3997
        %v4074 = vadd.f32 %v3568, %v4000
        %v4075 = vadd.f32 %v3569, %v4003
        %v4076 = vadd.f32 %v3570, %v4006
        %v4077 = vadd.f32 %v3571, %v4009
        %v4078 = vadd.f32 %v3572, %v4012
        %v4079 = vadd.f32 %v3573, %v4015
        %v4080 = vadd.f32 %v3574, %v4018
        %v4081 = vadd.f32 %v3575, %v4021
        %v4082 = vadd.f32 %v3576, %v4024
        %v4083 = vadd.f32 %v3577, %v4027
        %v4084 = vadd.f32 %v3578, %v4030
        %v4085 = vsel %vm645, %v3547, 0.0
        %v4086 = vsel %vm645, %v3548, 0.0
        %v4087 = vadd.f32 %v4085, %v4086
        %v4088 = vsel %vm645, %v3549, 0.0
        %v4089 = vadd.f32 %v4087, %v4088
        %v4090 = vsel %vm645, %v3550, 0.0
        %v4091 = vadd.f32 %v4089, %v4090
        %v4092 = vsel %vm645, %v3551, 0.0
        %v4093 = vadd.f32 %v4091, %v4092
        %v4094 = vsel %vm645, %v3552, 0.0
        %v4095 = vadd.f32 %v4093, %v4094
        %v4096 = vsel %vm645, %v3553, 0.0
        %v4097 = vadd.f32 %v4095, %v4096
        %v4098 = vsel %vm645, %v3554, 0.0
        %v4099 = vadd.f32 %v4097, %v4098
        %v4100 = vsel %vm645, %v3555, 0.0
        %v4101 = vadd.f32 %v4099, %v4100
        %v4102 = vsel %vm645, %v3556, 0.0
        %v4103 = vadd.f32 %v4101, %v4102
        %v4104 = vsel %vm645, %v3557, 0.0
        %v4105 = vadd.f32 %v4103, %v4104
        %v4106 = vsel %vm645, %v3558, 0.0
        %v4107 = vadd.f32 %v4105, %v4106
        %v4108 = vsel %vm645, %v3559, 0.0
        %v4109 = vadd.f32 %v4107, %v4108
        %v4110 = vsel %vm645, %v3560, 0.0
        %v4111 = vadd.f32 %v4109, %v4110
        %v4112 = vsel %vm645, %v3561, 0.0
        %v4113 = vadd.f32 %v4111, %v4112
        %v4114 = vsel %vm645, %v3562, 0.0
        %v4115 = vadd.f32 %v4113, %v4114
        %v4116 = vsel %vm645, %v3563, 0.0
        %v4117 = vadd.f32 %v4115, %v4116
        %v4118 = vsel %vm645, %v3564, 0.0
        %v4119 = vadd.f32 %v4117, %v4118
        %v4120 = vsel %vm645, %v3565, 0.0
        %v4121 = vadd.f32 %v4119, %v4120
        %v4122 = vsel %vm645, %v3566, 0.0
        %v4123 = vadd.f32 %v4121, %v4122
        %v4124 = vsel %vm645, %v3567, 0.0
        %v4125 = vadd.f32 %v4123, %v4124
        %v4126 = vsel %vm645, %v3568, 0.0
        %v4127 = vadd.f32 %v4125, %v4126
        %v4128 = vsel %vm645, %v3569, 0.0
        %v4129 = vadd.f32 %v4127, %v4128
        %v4130 = vsel %vm645, %v3570, 0.0
        %v4131 = vadd.f32 %v4129, %v4130
        %v4132 = vsel %vm645, %v3571, 0.0
        %v4133 = vadd.f32 %v4131, %v4132
        %v4134 = vsel %vm645, %v3572, 0.0
        %v4135 = vadd.f32 %v4133, %v4134
        %v4136 = vsel %vm645, %v3573, 0.0
        %v4137 = vadd.f32 %v4135, %v4136
        %v4138 = vsel %vm645, %v3574, 0.0
        %v4139 = vadd.f32 %v4137, %v4138
        %v4140 = vsel %vm645, %v3575, 0.0
        %v4141 = vadd.f32 %v4139, %v4140
        %v4142 = vsel %vm645, %v3576, 0.0
        %v4143 = vadd.f32 %v4141, %v4142
        %v4144 = vsel %vm645, %v3577, 0.0
        %v4145 = vadd.f32 %v4143, %v4144
        %v4146 = vsel %vm645, %v3578, 0.0
        %v4147 = vadd.f32 %v4145, %v4146
        %v4148 = vrot.slane %v4147, 4
        %v4149 = vadd.f32 %v4147, %v4148
        %v4150 = vrot.slane %v4149, 2
        %v4151 = vadd.f32 %v4149, %v4150
        %v4152 = vrot.slane %v4151, 1
        %v4153 = vadd.f32 %v4151, %v4152
        %v4154 = vmul.f32 %v4153, %v963
        %v4155 = vsel %vm645, %v3937, 0.0
        %v4156 = vsel %vm645, %v3940, 0.0
        %v4157 = vadd.f32 %v4155, %v4156
        %v4158 = vsel %vm645, %v3943, 0.0
        %v4159 = vadd.f32 %v4157, %v4158
        %v4160 = vsel %vm645, %v3946, 0.0
        %v4161 = vadd.f32 %v4159, %v4160
        %v4162 = vsel %vm645, %v3949, 0.0
        %v4163 = vadd.f32 %v4161, %v4162
        %v4164 = vsel %vm645, %v3952, 0.0
        %v4165 = vadd.f32 %v4163, %v4164
        %v4166 = vsel %vm645, %v3955, 0.0
        %v4167 = vadd.f32 %v4165, %v4166
        %v4168 = vsel %vm645, %v3958, 0.0
        %v4169 = vadd.f32 %v4167, %v4168
        %v4170 = vsel %vm645, %v3961, 0.0
        %v4171 = vadd.f32 %v4169, %v4170
        %v4172 = vsel %vm645, %v3964, 0.0
        %v4173 = vadd.f32 %v4171, %v4172
        %v4174 = vsel %vm645, %v3967, 0.0
        %v4175 = vadd.f32 %v4173, %v4174
        %v4176 = vsel %vm645, %v3970, 0.0
        %v4177 = vadd.f32 %v4175, %v4176
        %v4178 = vsel %vm645, %v3973, 0.0
        %v4179 = vadd.f32 %v4177, %v4178
        %v4180 = vsel %vm645, %v3976, 0.0
        %v4181 = vadd.f32 %v4179, %v4180
        %v4182 = vsel %vm645, %v3979, 0.0
        %v4183 = vadd.f32 %v4181, %v4182
        %v4184 = vsel %vm645, %v3982, 0.0
        %v4185 = vadd.f32 %v4183, %v4184
        %v4186 = vsel %vm645, %v3985, 0.0
        %v4187 = vadd.f32 %v4185, %v4186
        %v4188 = vsel %vm645, %v3988, 0.0
        %v4189 = vadd.f32 %v4187, %v4188
        %v4190 = vsel %vm645, %v3991, 0.0
        %v4191 = vadd.f32 %v4189, %v4190
        %v4192 = vsel %vm645, %v3994, 0.0
        %v4193 = vadd.f32 %v4191, %v4192
        %v4194 = vsel %vm645, %v3997, 0.0
        %v4195 = vadd.f32 %v4193, %v4194
        %v4196 = vsel %vm645, %v4000, 0.0
        %v4197 = vadd.f32 %v4195, %v4196
        %v4198 = vsel %vm645, %v4003, 0.0
        %v4199 = vadd.f32 %v4197, %v4198
        %v4200 = vsel %vm645, %v4006, 0.0
        %v4201 = vadd.f32 %v4199, %v4200
        %v4202 = vsel %vm645, %v4009, 0.0
        %v4203 = vadd.f32 %v4201, %v4202
        %v4204 = vsel %vm645, %v4012, 0.0
        %v4205 = vadd.f32 %v4203, %v4204
        %v4206 = vsel %vm645, %v4015, 0.0
        %v4207 = vadd.f32 %v4205, %v4206
        %v4208 = vsel %vm645, %v4018, 0.0
        %v4209 = vadd.f32 %v4207, %v4208
        %v4210 = vsel %vm645, %v4021, 0.0
        %v4211 = vadd.f32 %v4209, %v4210
        %v4212 = vsel %vm645, %v4024, 0.0
        %v4213 = vadd.f32 %v4211, %v4212
        %v4214 = vsel %vm645, %v4027, 0.0
        %v4215 = vadd.f32 %v4213, %v4214
        %v4216 = vsel %vm645, %v4030, 0.0
        %v4217 = vadd.f32 %v4215, %v4216
        %v4218 = vrot.slane %v4217, 4
        %v4219 = vadd.f32 %v4217, %v4218
        %v4220 = vrot.slane %v4219, 2
        %v4221 = vadd.f32 %v4219, %v4220
        %v4222 = vrot.slane %v4221, 1
        %v4223 = vadd.f32 %v4221, %v4222
        %v4224 = vmul.f32 %v4223, %v963
        %v4225 = vadd.f32 %v4154, %v4224
        %v4227 = vsel %vm645, %v4225, 0
        %4229 = vmatpush.msra.mxu0 0.0
        %4230 = vmatpush.msra.mxu0 0.0
        %4231 = vmatpush.msra.mxu0 0.0
        %4232 = vmatpush.msra.mxu0 0.0
        %4233 = vmatpush.msra.mxu0 0.0
        %4234 = vmatpush.msra.mxu0 0.0
        %4235 = vmatpush.msra.mxu0 0.0
        %4236 = vmatpush.msra.mxu0 0.0
        %4237 = vmatpush.msra.mxu0 0.0
        %4238 = vmatpush.msra.mxu0 0.0
        %4239 = vmatpush.msra.mxu0 %v4038
        %4240 = vmatpush.msra.mxu0 %v4037
        %4241 = vmatpush.msra.mxu0 %v4036
        %4242 = vmatpush.msra.mxu0 %v4035
        %4243 = vmatpush.msra.mxu0 %v4034
        %4244 = vmatpush.msra.mxu0 %v4033
        %4245 = vmatmul.f32.gmra.mxu0 %v4227
        %v4246 = vpop.f32.mrf.mxu0
        %v4247 = vadd.f32 0.0, %v4246
        %4248 = vdwg.mxu0
        %v4250 = vsel %vm645, %v4154, 0
        %4252 = vmatpush.msra.mxu0 0.0
        %4253 = vmatpush.msra.mxu0 0.0
        %4254 = vmatpush.msra.mxu0 0.0
        %4255 = vmatpush.msra.mxu0 0.0
        %4256 = vmatpush.msra.mxu0 0.0
        %4257 = vmatpush.msra.mxu0 0.0
        %4258 = vmatpush.msra.mxu0 0.0
        %4259 = vmatpush.msra.mxu0 0.0
        %4260 = vmatpush.msra.mxu0 0.0
        %4261 = vmatpush.msra.mxu0 0.0
        %4262 = vmatpush.msra.mxu0 %v4045
        %4263 = vmatpush.msra.mxu0 %v4044
        %4264 = vmatpush.msra.mxu0 %v4043
        %4265 = vmatpush.msra.mxu0 %v4042
        %4266 = vmatpush.msra.mxu0 %v4041
        %4267 = vmatpush.msra.mxu0 %v4040
        %4268 = vmatmul.f32.gmra.mxu0 %v4250
        %v4269 = vpop.f32.mrf.mxu0
        %v4270 = vadd.f32 0.0, %v4269
        %4271 = vdwg.mxu0
        %v4273 = vsel %vm645, %v4224, 0
        %4275 = vmatpush.msra.mxu0 0.0
        %4276 = vmatpush.msra.mxu0 0.0
        %4277 = vmatpush.msra.mxu0 0.0
        %4278 = vmatpush.msra.mxu0 0.0
        %4279 = vmatpush.msra.mxu0 0.0
        %4280 = vmatpush.msra.mxu0 0.0
        %4281 = vmatpush.msra.mxu0 0.0
        %4282 = vmatpush.msra.mxu0 0.0
        %4283 = vmatpush.msra.mxu0 0.0
        %4284 = vmatpush.msra.mxu0 0.0
        %4285 = vmatpush.msra.mxu0 %v4052
        %4286 = vmatpush.msra.mxu0 %v4051
        %4287 = vmatpush.msra.mxu0 %v4050
        %4288 = vmatpush.msra.mxu0 %v4049
        %4289 = vmatpush.msra.mxu0 %v4048
        %4290 = vmatpush.msra.mxu0 %v4047
        %4291 = vmatmul.f32.gmra.mxu0 %v4273
        %v4292 = vpop.f32.mrf.mxu0
        %v4293 = vadd.f32 0.0, %v4292
        %4294 = vdwg.mxu0
        %v4295 = vperm.slane %v4247, 0
        %v4296 = vsel %vm1026, %v4295, 0.0
        %v4297 = vsel %vm1984, %v4296, 0.0
        %4298 = vadd.xlane.f32.xlu0 %v4297
        %v4299 = vpop.xlane.xlu0 %4298
        %v4300 = vmul.f32 %v4299, %v4154
        %v4301 = vmul.f32 %v4300, 0.14433756
        %v4302 = vsel %vm1990, %v4301, -inf
        %v4303 = vrot.slane %v4302, 4
        %v4304 = vmax.f32 %v4302, %v4303
        %v4305 = vrot.slane %v4304, 2
        %v4306 = vmax.f32 %v4304, %v4305
        %v4307 = vrot.slane %v4306, 1
        %v4308 = vmax.f32 %v4306, %v4307
        %v4309 = vsub.f32 %v4301, %v4308
        %v4310 = vmul.f32 %v4309, 1.442695
        %v4311 = vpow.pop %v4310
        %v4312 = vsel %vm1990, %v4311, 0.0
        %v4313 = vrot.slane %v4312, 4
        %v4314 = vadd.f32 %v4312, %v4313
        %v4315 = vrot.slane %v4314, 2
        %v4316 = vadd.f32 %v4314, %v4315
        %v4317 = vrot.slane %v4316, 1
        %v4318 = vadd.f32 %v4316, %v4317
        %v4319 = vrcp.pop %v4318
        %v4320 = vmul.f32 %v4318, %v4319
        %v4321 = vsub.f32 1.0, %v4320
        %v4322 = vmul.f32 %v4319, %v4321
        %v4323 = vadd.f32 %v4319, %v4322
        %vm4324 = vweird.f32 %v4318
        %vm4325 = vweird.f32 %v4319
        %vm4326 = vmor %vm4324, %vm4325
        %v4327 = vsel %vm4326, %v4319, %v4323
        %v4328 = vand.u32 2147483647, %v4318
        %vm4329 = vcmp.eq.f32.partialorder %v4328, 8.507059e+37
        %v4330 = vand.u32 %v4318, 2147483648
        %v4331 = vor.u32 1.1754944e-38, %v4330
        %v4332 = vsel %vm4329, %v4331, %v4327
        %v4333 = vmul.f32 %v4311, %v4332
        %v4334 = vmul.f32 %v4299, %v4224
        %v4335 = vmul.f32 %v4334, 0.14433756
        %v4336 = vsel %vm1990, %v4335, -inf
        %v4337 = vrot.slane %v4336, 4
        %v4338 = vmax.f32 %v4336, %v4337
        %v4339 = vrot.slane %v4338, 2
        %v4340 = vmax.f32 %v4338, %v4339
        %v4341 = vrot.slane %v4340, 1
        %v4342 = vmax.f32 %v4340, %v4341
        %v4343 = vsub.f32 %v4335, %v4342
        %v4344 = vmul.f32 %v4343, 1.442695
        %v4345 = vpow.pop %v4344
        %v4346 = vsel %vm1990, %v4345, 0.0
        %v4347 = vrot.slane %v4346, 4
        %v4348 = vadd.f32 %v4346, %v4347
        %v4349 = vrot.slane %v4348, 2
        %v4350 = vadd.f32 %v4348, %v4349
        %v4351 = vrot.slane %v4350, 1
        %v4352 = vadd.f32 %v4350, %v4351
        %v4353 = vrcp.pop %v4352
        %v4354 = vmul.f32 %v4352, %v4353
        %v4355 = vsub.f32 1.0, %v4354
        %v4356 = vmul.f32 %v4353, %v4355
        %v4357 = vadd.f32 %v4353, %v4356
        %vm4358 = vweird.f32 %v4352
        %vm4359 = vweird.f32 %v4353
        %vm4360 = vmor %vm4358, %vm4359
        %v4361 = vsel %vm4360, %v4353, %v4357
        %v4362 = vand.u32 2147483647, %v4352
        %vm4363 = vcmp.eq.f32.partialorder %v4362, 8.507059e+37
        %v4364 = vand.u32 %v4352, 2147483648
        %v4365 = vor.u32 1.1754944e-38, %v4364
        %v4366 = vsel %vm4363, %v4365, %v4361
        %v4367 = vmul.f32 %v4345, %v4366
        %v4368 = vperm.slane %v4270, 0
        %v4369 = vsel %vm1026, %v4368, 0.0
        %v4370 = vsel %vm1984, %v4369, 0.0
        %4371 = vadd.xlane.f32.xlu0 %v4370
        %v4372 = vpop.xlane.xlu0 %4371
        %v4373 = vmul.f32 %v4333, %v4372
        %v4374 = vsel %vm1990, %v4373, 0.0
        %v4375 = vrot.slane %v4374, 4
        %v4376 = vadd.f32 %v4374, %v4375
        %v4377 = vrot.slane %v4376, 2
        %v4378 = vadd.f32 %v4376, %v4377
        %v4379 = vrot.slane %v4378, 1
        %v4380 = vadd.f32 %v4378, %v4379
        %v4381 = vmul.f32 %v4380, 0.5
        %v4382 = vtanh.pop %v4381
        %v4383 = vmul.f32 %v4382, 0.5
        %v4384 = vadd.f32 %v4383, 0.5
        %v4385 = vperm.slane %v4293, 0
        %v4386 = vsel %vm1026, %v4385, 0.0
        %v4387 = vsel %vm1984, %v4386, 0.0
        %4388 = vadd.xlane.f32.xlu0 %v4387
        %v4389 = vpop.xlane.xlu0 %4388
        %v4390 = vmul.f32 %v4367, %v4389
        %v4391 = vsel %vm1990, %v4390, 0.0
        %v4392 = vrot.slane %v4391, 4
        %v4393 = vadd.f32 %v4391, %v4392
        %v4394 = vrot.slane %v4393, 2
        %v4395 = vadd.f32 %v4393, %v4394
        %v4396 = vrot.slane %v4395, 1
        %v4397 = vadd.f32 %v4395, %v4396
        %v4398 = vmul.f32 %v4397, 0.5
        %v4399 = vtanh.pop %v4398
        %v4400 = vmul.f32 %v4399, 0.5
        %v4401 = vadd.f32 %v4400, 0.5
        %v4402 = vmul.f32 %v3547, %v4384
        %v4403 = vmul.f32 %v3548, %v4384
        %v4404 = vmul.f32 %v3549, %v4384
        %v4405 = vmul.f32 %v3550, %v4384
        %v4406 = vmul.f32 %v3551, %v4384
        %v4407 = vmul.f32 %v3552, %v4384
        %v4408 = vmul.f32 %v3553, %v4384
        %v4409 = vmul.f32 %v3554, %v4384
        %v4410 = vmul.f32 %v3555, %v4384
        %v4411 = vmul.f32 %v3556, %v4384
        %v4412 = vmul.f32 %v3557, %v4384
        %v4413 = vmul.f32 %v3558, %v4384
        %v4414 = vmul.f32 %v3559, %v4384
        %v4415 = vmul.f32 %v3560, %v4384
        %v4416 = vmul.f32 %v3561, %v4384
        %v4417 = vmul.f32 %v3562, %v4384
        %v4418 = vmul.f32 %v3563, %v4384
        %v4419 = vmul.f32 %v3564, %v4384
        %v4420 = vmul.f32 %v3565, %v4384
        %v4421 = vmul.f32 %v3566, %v4384
        %v4422 = vmul.f32 %v3567, %v4384
        %v4423 = vmul.f32 %v3568, %v4384
        %v4424 = vmul.f32 %v3569, %v4384
        %v4425 = vmul.f32 %v3570, %v4384
        %v4426 = vmul.f32 %v3571, %v4384
        %v4427 = vmul.f32 %v3572, %v4384
        %v4428 = vmul.f32 %v3573, %v4384
        %v4429 = vmul.f32 %v3574, %v4384
        %v4430 = vmul.f32 %v3575, %v4384
        %v4431 = vmul.f32 %v3576, %v4384
        %v4432 = vmul.f32 %v3577, %v4384
        %v4433 = vmul.f32 %v3578, %v4384
        %v4434 = vadd.f32 %v4053, %v4402
        %v4435 = vadd.f32 %v4054, %v4403
        %v4436 = vadd.f32 %v4055, %v4404
        %v4437 = vadd.f32 %v4056, %v4405
        %v4438 = vadd.f32 %v4057, %v4406
        %v4439 = vadd.f32 %v4058, %v4407
        %v4440 = vadd.f32 %v4059, %v4408
        %v4441 = vadd.f32 %v4060, %v4409
        %v4442 = vadd.f32 %v4061, %v4410
        %v4443 = vadd.f32 %v4062, %v4411
        %v4444 = vadd.f32 %v4063, %v4412
        %v4445 = vadd.f32 %v4064, %v4413
        %v4446 = vadd.f32 %v4065, %v4414
        %v4447 = vadd.f32 %v4066, %v4415
        %v4448 = vadd.f32 %v4067, %v4416
        %v4449 = vadd.f32 %v4068, %v4417
        %v4450 = vadd.f32 %v4069, %v4418
        %v4451 = vadd.f32 %v4070, %v4419
        %v4452 = vadd.f32 %v4071, %v4420
        %v4453 = vadd.f32 %v4072, %v4421
        %v4454 = vadd.f32 %v4073, %v4422
        %v4455 = vadd.f32 %v4074, %v4423
        %v4456 = vadd.f32 %v4075, %v4424
        %v4457 = vadd.f32 %v4076, %v4425
        %v4458 = vadd.f32 %v4077, %v4426
        %v4459 = vadd.f32 %v4078, %v4427
        %v4460 = vadd.f32 %v4079, %v4428
        %v4461 = vadd.f32 %v4080, %v4429
        %v4462 = vadd.f32 %v4081, %v4430
        %v4463 = vadd.f32 %v4082, %v4431
        %v4464 = vadd.f32 %v4083, %v4432
        %v4465 = vadd.f32 %v4084, %v4433
        %v4466 = vmul.f32 %v3937, %v4401
        %v4467 = vmul.f32 %v3940, %v4401
        %v4468 = vmul.f32 %v3943, %v4401
        %v4469 = vmul.f32 %v3946, %v4401
        %v4470 = vmul.f32 %v3949, %v4401
        %v4471 = vmul.f32 %v3952, %v4401
        %v4472 = vmul.f32 %v3955, %v4401
        %v4473 = vmul.f32 %v3958, %v4401
        %v4474 = vmul.f32 %v3961, %v4401
        %v4475 = vmul.f32 %v3964, %v4401
        %v4476 = vmul.f32 %v3967, %v4401
        %v4477 = vmul.f32 %v3970, %v4401
        %v4478 = vmul.f32 %v3973, %v4401
        %v4479 = vmul.f32 %v3976, %v4401
        %v4480 = vmul.f32 %v3979, %v4401
        %v4481 = vmul.f32 %v3982, %v4401
        %v4482 = vmul.f32 %v3985, %v4401
        %v4483 = vmul.f32 %v3988, %v4401
        %v4484 = vmul.f32 %v3991, %v4401
        %v4485 = vmul.f32 %v3994, %v4401
        %v4486 = vmul.f32 %v3997, %v4401
        %v4487 = vmul.f32 %v4000, %v4401
        %v4488 = vmul.f32 %v4003, %v4401
        %v4489 = vmul.f32 %v4006, %v4401
        %v4490 = vmul.f32 %v4009, %v4401
        %v4491 = vmul.f32 %v4012, %v4401
        %v4492 = vmul.f32 %v4015, %v4401
        %v4493 = vmul.f32 %v4018, %v4401
        %v4494 = vmul.f32 %v4021, %v4401
        %v4495 = vmul.f32 %v4024, %v4401
        %v4496 = vmul.f32 %v4027, %v4401
        %v4497 = vmul.f32 %v4030, %v4401
        %v4498 = vadd.f32 %v4434, %v4466
        %v4499 = vadd.f32 %v4435, %v4467
        %v4500 = vadd.f32 %v4436, %v4468
        %v4501 = vadd.f32 %v4437, %v4469
        %v4502 = vadd.f32 %v4438, %v4470
        %v4503 = vadd.f32 %v4439, %v4471
        %v4504 = vadd.f32 %v4440, %v4472
        %v4505 = vadd.f32 %v4441, %v4473
        %v4506 = vadd.f32 %v4442, %v4474
        %v4507 = vadd.f32 %v4443, %v4475
        %v4508 = vadd.f32 %v4444, %v4476
        %v4509 = vadd.f32 %v4445, %v4477
        %v4510 = vadd.f32 %v4446, %v4478
        %v4511 = vadd.f32 %v4447, %v4479
        %v4512 = vadd.f32 %v4448, %v4480
        %v4513 = vadd.f32 %v4449, %v4481
        %v4514 = vadd.f32 %v4450, %v4482
        %v4515 = vadd.f32 %v4451, %v4483
        %v4516 = vadd.f32 %v4452, %v4484
        %v4517 = vadd.f32 %v4453, %v4485
        %v4518 = vadd.f32 %v4454, %v4486
        %v4519 = vadd.f32 %v4455, %v4487
        %v4520 = vadd.f32 %v4456, %v4488
        %v4521 = vadd.f32 %v4457, %v4489
        %v4522 = vadd.f32 %v4458, %v4490
        %v4523 = vadd.f32 %v4459, %v4491
        %v4524 = vadd.f32 %v4460, %v4492
        %v4525 = vadd.f32 %v4461, %v4493
        %v4526 = vadd.f32 %v4462, %v4494
        %v4527 = vadd.f32 %v4463, %v4495
        %v4528 = vadd.f32 %v4464, %v4496
        %v4529 = vadd.f32 %v4465, %v4497
        %4530 = vst.msk [vmem:[%s599] sm:$0xff] %vm645, %v4498
        %4531 = vst.msk [vmem:[%s599 + $0x8] sm:$0xff] %vm645, %v4499
        %4532 = vst.msk [vmem:[%s599 + $0x10] sm:$0xff] %vm645, %v4500
        %4533 = vst.msk [vmem:[%s599 + $0x18] sm:$0xff] %vm645, %v4501
        %4534 = vst.msk [vmem:[%s599 + $0x20] sm:$0xff] %vm645, %v4502
        %4535 = vst.msk [vmem:[%s599 + $0x28] sm:$0xff] %vm645, %v4503
        %4536 = vst.msk [vmem:[%s599 + $0x30] sm:$0xff] %vm645, %v4504
        %4537 = vst.msk [vmem:[%s599 + $0x38] sm:$0xff] %vm645, %v4505
        %4538 = vst.msk [vmem:[%s599 + $0x40] sm:$0xff] %vm645, %v4506
        %4539 = vst.msk [vmem:[%s599 + $0x48] sm:$0xff] %vm645, %v4507
        %4540 = vst.msk [vmem:[%s599 + $0x50] sm:$0xff] %vm645, %v4508
        %4541 = vst.msk [vmem:[%s599 + $0x58] sm:$0xff] %vm645, %v4509
        %4542 = vst.msk [vmem:[%s599 + $0x60] sm:$0xff] %vm645, %v4510
        %4543 = vst.msk [vmem:[%s599 + $0x68] sm:$0xff] %vm645, %v4511
        %4544 = vst.msk [vmem:[%s599 + $0x70] sm:$0xff] %vm645, %v4512
        %4545 = vst.msk [vmem:[%s599 + $0x78] sm:$0xff] %vm645, %v4513
        %4546 = vst.msk [vmem:[%s599 + $0x80] sm:$0xff] %vm645, %v4514
        %4547 = vst.msk [vmem:[%s599 + $0x88] sm:$0xff] %vm645, %v4515
        %4548 = vst.msk [vmem:[%s599 + $0x90] sm:$0xff] %vm645, %v4516
        %4549 = vst.msk [vmem:[%s599 + $0x98] sm:$0xff] %vm645, %v4517
        %4550 = vst.msk [vmem:[%s599 + $0xa0] sm:$0xff] %vm645, %v4518
        %4551 = vst.msk [vmem:[%s599 + $0xa8] sm:$0xff] %vm645, %v4519
        %4552 = vst.msk [vmem:[%s599 + $0xb0] sm:$0xff] %vm645, %v4520
        %4553 = vst.msk [vmem:[%s599 + $0xb8] sm:$0xff] %vm645, %v4521
        %4554 = vst.msk [vmem:[%s599 + $0xc0] sm:$0xff] %vm645, %v4522
        %4555 = vst.msk [vmem:[%s599 + $0xc8] sm:$0xff] %vm645, %v4523
        %4556 = vst.msk [vmem:[%s599 + $0xd0] sm:$0xff] %vm645, %v4524
        %4557 = vst.msk [vmem:[%s599 + $0xd8] sm:$0xff] %vm645, %v4525
        %4558 = vst.msk [vmem:[%s599 + $0xe0] sm:$0xff] %vm645, %v4526
        %4559 = vst.msk [vmem:[%s599 + $0xe8] sm:$0xff] %vm645, %v4527
        %4560 = vst.msk [vmem:[%s599 + $0xf0] sm:$0xff] %vm645, %v4528
        %4561 = vst.msk [vmem:[%s599 + $0xf8] sm:$0xff] %vm645, %v4529
        %v4562 = vmul.f32 %v4498, 0.5
        %v4563 = vmul.f32 %v4499, 0.5
        %v4564 = vmul.f32 %v4500, 0.5
        %v4565 = vmul.f32 %v4501, 0.5
        %v4566 = vmul.f32 %v4502, 0.5
        %v4567 = vmul.f32 %v4503, 0.5
        %v4568 = vmul.f32 %v4504, 0.5
        %v4569 = vmul.f32 %v4505, 0.5
        %v4570 = vmul.f32 %v4506, 0.5
        %v4571 = vmul.f32 %v4507, 0.5
        %v4572 = vmul.f32 %v4508, 0.5
        %v4573 = vmul.f32 %v4509, 0.5
        %v4574 = vmul.f32 %v4510, 0.5
        %v4575 = vmul.f32 %v4511, 0.5
        %v4576 = vmul.f32 %v4512, 0.5
        %v4577 = vmul.f32 %v4513, 0.5
        %v4578 = vmul.f32 %v4514, 0.5
        %v4579 = vmul.f32 %v4515, 0.5
        %v4580 = vmul.f32 %v4516, 0.5
        %v4581 = vmul.f32 %v4517, 0.5
        %v4582 = vmul.f32 %v4518, 0.5
        %v4583 = vmul.f32 %v4519, 0.5
        %v4584 = vmul.f32 %v4520, 0.5
        %v4585 = vmul.f32 %v4521, 0.5
        %v4586 = vmul.f32 %v4522, 0.5
        %v4587 = vmul.f32 %v4523, 0.5
        %v4588 = vmul.f32 %v4524, 0.5
        %v4589 = vmul.f32 %v4525, 0.5
        %v4590 = vmul.f32 %v4526, 0.5
        %v4591 = vmul.f32 %v4527, 0.5
        %v4592 = vmul.f32 %v4528, 0.5
        %v4593 = vmul.f32 %v4529, 0.5
        %v4594 = vtanh.pop %v4562
        %v4595 = vtanh.pop %v4563
        %v4596 = vtanh.pop %v4564
        %v4597 = vtanh.pop %v4565
        %v4598 = vtanh.pop %v4566
        %v4599 = vtanh.pop %v4567
        %v4600 = vtanh.pop %v4568
        %v4601 = vtanh.pop %v4569
        %v4602 = vtanh.pop %v4570
        %v4603 = vtanh.pop %v4571
        %v4604 = vtanh.pop %v4572
        %v4605 = vtanh.pop %v4573
        %v4606 = vtanh.pop %v4574
        %v4607 = vtanh.pop %v4575
        %v4608 = vtanh.pop %v4576
        %v4609 = vtanh.pop %v4577
        %v4610 = vtanh.pop %v4578
        %v4611 = vtanh.pop %v4579
        %v4612 = vtanh.pop %v4580
        %v4613 = vtanh.pop %v4581
        %v4614 = vtanh.pop %v4582
        %v4615 = vtanh.pop %v4583
        %v4616 = vtanh.pop %v4584
        %v4617 = vtanh.pop %v4585
        %v4618 = vtanh.pop %v4586
        %v4619 = vtanh.pop %v4587
        %v4620 = vtanh.pop %v4588
        %v4621 = vtanh.pop %v4589
        %v4622 = vtanh.pop %v4590
        %v4623 = vtanh.pop %v4591
        %v4624 = vtanh.pop %v4592
        %v4625 = vtanh.pop %v4593
        %v4626 = vmul.f32 %v4594, 0.5
        %v4627 = vmul.f32 %v4595, 0.5
        %v4628 = vmul.f32 %v4596, 0.5
        %v4629 = vmul.f32 %v4597, 0.5
        %v4630 = vmul.f32 %v4598, 0.5
        %v4631 = vmul.f32 %v4599, 0.5
        %v4632 = vmul.f32 %v4600, 0.5
        %v4633 = vmul.f32 %v4601, 0.5
        %v4634 = vmul.f32 %v4602, 0.5
        %v4635 = vmul.f32 %v4603, 0.5
        %v4636 = vmul.f32 %v4604, 0.5
        %v4637 = vmul.f32 %v4605, 0.5
        %v4638 = vmul.f32 %v4606, 0.5
        %v4639 = vmul.f32 %v4607, 0.5
        %v4640 = vmul.f32 %v4608, 0.5
        %v4641 = vmul.f32 %v4609, 0.5
        %v4642 = vmul.f32 %v4610, 0.5
        %v4643 = vmul.f32 %v4611, 0.5
        %v4644 = vmul.f32 %v4612, 0.5
        %v4645 = vmul.f32 %v4613, 0.5
        %v4646 = vmul.f32 %v4614, 0.5
        %v4647 = vmul.f32 %v4615, 0.5
        %v4648 = vmul.f32 %v4616, 0.5
        %v4649 = vmul.f32 %v4617, 0.5
        %v4650 = vmul.f32 %v4618, 0.5
        %v4651 = vmul.f32 %v4619, 0.5
        %v4652 = vmul.f32 %v4620, 0.5
        %v4653 = vmul.f32 %v4621, 0.5
        %v4654 = vmul.f32 %v4622, 0.5
        %v4655 = vmul.f32 %v4623, 0.5
        %v4656 = vmul.f32 %v4624, 0.5
        %v4657 = vmul.f32 %v4625, 0.5
        %v4658 = vadd.f32 %v4626, 0.5
        %v4659 = vadd.f32 %v4627, 0.5
        %v4660 = vadd.f32 %v4628, 0.5
        %v4661 = vadd.f32 %v4629, 0.5
        %v4662 = vadd.f32 %v4630, 0.5
        %v4663 = vadd.f32 %v4631, 0.5
        %v4664 = vadd.f32 %v4632, 0.5
        %v4665 = vadd.f32 %v4633, 0.5
        %v4666 = vadd.f32 %v4634, 0.5
        %v4667 = vadd.f32 %v4635, 0.5
        %v4668 = vadd.f32 %v4636, 0.5
        %v4669 = vadd.f32 %v4637, 0.5
        %v4670 = vadd.f32 %v4638, 0.5
        %v4671 = vadd.f32 %v4639, 0.5
        %v4672 = vadd.f32 %v4640, 0.5
        %v4673 = vadd.f32 %v4641, 0.5
        %v4674 = vadd.f32 %v4642, 0.5
        %v4675 = vadd.f32 %v4643, 0.5
        %v4676 = vadd.f32 %v4644, 0.5
        %v4677 = vadd.f32 %v4645, 0.5
        %v4678 = vadd.f32 %v4646, 0.5
        %v4679 = vadd.f32 %v4647, 0.5
        %v4680 = vadd.f32 %v4648, 0.5
        %v4681 = vadd.f32 %v4649, 0.5
        %v4682 = vadd.f32 %v4650, 0.5
        %v4683 = vadd.f32 %v4651, 0.5
        %v4684 = vadd.f32 %v4652, 0.5
        %v4685 = vadd.f32 %v4653, 0.5
        %v4686 = vadd.f32 %v4654, 0.5
        %v4687 = vadd.f32 %v4655, 0.5
        %v4688 = vadd.f32 %v4656, 0.5
        %v4689 = vadd.f32 %v4657, 0.5
        %v4690 = vmul.f32 %v607, %v4658
        %v4691 = vmul.f32 %v608, %v4659
        %v4692 = vmul.f32 %v609, %v4660
        %v4693 = vmul.f32 %v610, %v4661
        %v4694 = vmul.f32 %v611, %v4662
        %v4695 = vmul.f32 %v612, %v4663
        %v4696 = vmul.f32 %v613, %v4664
        %v4697 = vmul.f32 %v614, %v4665
        %v4698 = vmul.f32 %v615, %v4666
        %v4699 = vmul.f32 %v616, %v4667
        %v4700 = vmul.f32 %v617, %v4668
        %v4701 = vmul.f32 %v618, %v4669
        %v4702 = vmul.f32 %v619, %v4670
        %v4703 = vmul.f32 %v620, %v4671
        %v4704 = vmul.f32 %v621, %v4672
        %v4705 = vmul.f32 %v622, %v4673
        %v4706 = vmul.f32 %v623, %v4674
        %v4707 = vmul.f32 %v624, %v4675
        %v4708 = vmul.f32 %v625, %v4676
        %v4709 = vmul.f32 %v626, %v4677
        %v4710 = vmul.f32 %v627, %v4678
        %v4711 = vmul.f32 %v628, %v4679
        %v4712 = vmul.f32 %v629, %v4680
        %v4713 = vmul.f32 %v630, %v4681
        %v4714 = vmul.f32 %v631, %v4682
        %v4715 = vmul.f32 %v632, %v4683
        %v4716 = vmul.f32 %v633, %v4684
        %v4717 = vmul.f32 %v634, %v4685
        %v4718 = vmul.f32 %v635, %v4686
        %v4719 = vmul.f32 %v636, %v4687
        %v4720 = vmul.f32 %v637, %v4688
        %v4721 = vmul.f32 %v638, %v4689
        %4722 = vst.msk [vmem:[%s606] sm:$0xff] %vm645, %v4690
        %4723 = vst.msk [vmem:[%s606 + $0x8] sm:$0xff] %vm645, %v4691
        %4724 = vst.msk [vmem:[%s606 + $0x10] sm:$0xff] %vm645, %v4692
        %4725 = vst.msk [vmem:[%s606 + $0x18] sm:$0xff] %vm645, %v4693
        %4726 = vst.msk [vmem:[%s606 + $0x20] sm:$0xff] %vm645, %v4694
        %4727 = vst.msk [vmem:[%s606 + $0x28] sm:$0xff] %vm645, %v4695
        %4728 = vst.msk [vmem:[%s606 + $0x30] sm:$0xff] %vm645, %v4696
        %4729 = vst.msk [vmem:[%s606 + $0x38] sm:$0xff] %vm645, %v4697
        %4730 = vst.msk [vmem:[%s606 + $0x40] sm:$0xff] %vm645, %v4698
        %4731 = vst.msk [vmem:[%s606 + $0x48] sm:$0xff] %vm645, %v4699
        %4732 = vst.msk [vmem:[%s606 + $0x50] sm:$0xff] %vm645, %v4700
        %4733 = vst.msk [vmem:[%s606 + $0x58] sm:$0xff] %vm645, %v4701
        %4734 = vst.msk [vmem:[%s606 + $0x60] sm:$0xff] %vm645, %v4702
        %4735 = vst.msk [vmem:[%s606 + $0x68] sm:$0xff] %vm645, %v4703
        %4736 = vst.msk [vmem:[%s606 + $0x70] sm:$0xff] %vm645, %v4704
        %4737 = vst.msk [vmem:[%s606 + $0x78] sm:$0xff] %vm645, %v4705
        %4738 = vst.msk [vmem:[%s606 + $0x80] sm:$0xff] %vm645, %v4706
        %4739 = vst.msk [vmem:[%s606 + $0x88] sm:$0xff] %vm645, %v4707
        %4740 = vst.msk [vmem:[%s606 + $0x90] sm:$0xff] %vm645, %v4708
        %4741 = vst.msk [vmem:[%s606 + $0x98] sm:$0xff] %vm645, %v4709
        %4742 = vst.msk [vmem:[%s606 + $0xa0] sm:$0xff] %vm645, %v4710
        %4743 = vst.msk [vmem:[%s606 + $0xa8] sm:$0xff] %vm645, %v4711
        %4744 = vst.msk [vmem:[%s606 + $0xb0] sm:$0xff] %vm645, %v4712
        %4745 = vst.msk [vmem:[%s606 + $0xb8] sm:$0xff] %vm645, %v4713
        %4746 = vst.msk [vmem:[%s606 + $0xc0] sm:$0xff] %vm645, %v4714
        %4747 = vst.msk [vmem:[%s606 + $0xc8] sm:$0xff] %vm645, %v4715
        %4748 = vst.msk [vmem:[%s606 + $0xd0] sm:$0xff] %vm645, %v4716
        %4749 = vst.msk [vmem:[%s606 + $0xd8] sm:$0xff] %vm645, %v4717
        %4750 = vst.msk [vmem:[%s606 + $0xe0] sm:$0xff] %vm645, %v4718
        %4751 = vst.msk [vmem:[%s606 + $0xe8] sm:$0xff] %vm645, %v4719
        %4752 = vst.msk [vmem:[%s606 + $0xf0] sm:$0xff] %vm645, %v4720
        %4753 = vst.msk [vmem:[%s606 + $0xf8] sm:$0xff] %vm645, %v4721
        %s4754 = sand.u32 %s409, 1
        %s4755 = scalar_lea.sflag [#allocation4], %s4754
        %s4756 = sand.u32 %s409, 1
        %s4757 = smul.addr %s4756, 256
        %s4758 = scalar_lea.vmem [#allocation5], %s4757
        %s4759 = sand.u32 %s435, 1
        %s4760 = scalar_lea.sflag [#allocation7], %s4759
        %s4761 = sand.u32 %s435, 1
        %s4762 = smul.addr %s4761, 256
        %s4763 = scalar_lea.vmem [#allocation6], %s4762
        // Predicated region
        $region93: #{lpam_head_forward.1} parent=87 // pred_check
          %p4764 = pneg %p419
        $region94: #{lpam_head_forward.1} parent=87 // pred_check_branch
          %4766 = sbr.rel (%p4764) target = $region96
        $region95: #{lpam_head_forward.1} parent=87 // pred_region
          %4768 = vsyncadd %s4755, 0
          %s4769 = smul.addr %s39, 32
          %s4770 = smul.addr %s4769, 8
          %s4771 = scalar_lea.hbm %s17, %s4770
          %s4772 = sshll.u32 %s4758, 4
          %s4773 = int_to_ptr.vmem [resolvable:$true] %s4772
          %s4774 = sshll.u32 %s4771, 4
          %s4775 = int_to_ptr.hbm [resolvable:$true] %s4774
          %4780 = dma.vmem_to_hbm [thread:$0]  %s4773, 4096, %s4775, %s4755, 128, 128, 8
        $region96: #{lpam_head_forward.1} parent=87 // pred_fallthru
          _
        // Predicated region
        $region97: #{lpam_head_forward.1} parent=87 // pred_check
          %p4781 = pneg %p445
        $region98: #{lpam_head_forward.1} parent=87 // pred_check_branch
          %4783 = sbr.rel (%p4781) target = $region100
        $region99: #{lpam_head_forward.1} parent=87 // pred_region
          %4785 = vsyncadd %s4760, 0
          %s4786 = smul.addr %s39, 32
          %s4787 = smul.addr %s4786, 8
          %s4788 = scalar_lea.hbm %s18, %s4787
          %s4789 = sshll.u32 %s4763, 4
          %s4790 = int_to_ptr.vmem [resolvable:$true] %s4789
          %s4791 = sshll.u32 %s4788, 4
          %s4792 = int_to_ptr.hbm [resolvable:$true] %s4791
          %4797 = dma.vmem_to_hbm [thread:$0]  %s4790, 4096, %s4792, %s4760, 128, 128, 8
        $region100: #{lpam_head_forward.1} parent=87 // pred_fallthru
          _
      $region88: #{lpam_head_forward.1} parent=5 // pred_fallthru
        _
      %p4798 = scmp.le.s32.totalorder 2, %s34
      // Predicated region
      $region101: #{lpam_head_forward.1} parent=5 // pred_check
        %p4799 = pneg %p4798
      $region102: #{lpam_head_forward.1} parent=5 // pred_check_branch
        %4801 = sbr.rel (%p4799) target = $region104
      $region103: #{lpam_head_forward.1} parent=5 // pred_region
        %s4802 = ssub.s32 %s34, 2
        // Predicated region
        $region105: #{lpam_head_forward.1} parent=103 // pred_check
          %p4803 = pneg %p425
        $region106: #{lpam_head_forward.1} parent=103 // pred_check_branch
          %4805 = sbr.rel (%p4803) target = $region108
        $region107: #{lpam_head_forward.1} parent=103 // pred_region
          %s4806 = sand.u32 %s410, 1
          %s4807 = scalar_lea.sflag [#allocation4], %s4806
          %s4808 = sand.u32 %s410, 1
          %s4809 = smul.addr %s4808, 256
          %s4810 = scalar_lea.vmem [#allocation5], %s4809
          %4812 = dma.done %s4807, 4096
        $region108: #{lpam_head_forward.1} parent=103 // pred_fallthru
          _
        // Predicated region
        $region109: #{lpam_head_forward.1} parent=103 // pred_check
          %p4813 = pneg %p451
        $region110: #{lpam_head_forward.1} parent=103 // pred_check_branch
          %4815 = sbr.rel (%p4813) target = $region112
        $region111: #{lpam_head_forward.1} parent=103 // pred_region
          %s4816 = sand.u32 %s436, 1
          %s4817 = scalar_lea.sflag [#allocation7], %s4816
          %s4818 = sand.u32 %s436, 1
          %s4819 = smul.addr %s4818, 256
          %s4820 = scalar_lea.vmem [#allocation6], %s4819
          %4822 = dma.done %s4817, 4096
        $region112: #{lpam_head_forward.1} parent=103 // pred_fallthru
          _
      $region104: #{lpam_head_forward.1} parent=5 // pred_fallthru
        _
    $region6: #{lpam_head_forward.1} parent=1 // loop_footer
      %s38 = sadd.s32 1, %s34
    $region7: #{lpam_head_forward.1} parent=1 // loop_footer_branch
      %33 = sbr.rel target = $region3
    $region8: #{lpam_head_forward.1} parent=1 // loop_exit
      _
    %4823 = vsyncpa [#allocation3], 1
    %s4824 = scalar_lea.sflag [#allocation3], 1
    %4825 = vsyncpa %s4824, 1
    %4826 = vsyncpa [#allocation4], 1
    %s4827 = scalar_lea.sflag [#allocation4], 1
    %4828 = vsyncpa %s4827, 1
    %4829 = vsyncpa [#allocation7], 1
    %s4830 = scalar_lea.sflag [#allocation7], 1
    %4831 = vsyncpa %s4830, 1

</llo_original>
